<compile_context>
chip_gen: v7x
topology: tpu7x:2x2x1
jax: 0.10.0
libtpu: 0.0.40
codegen_flags: <defaults>
</compile_context>

<pallas_src>
import functools

import numpy as np

import jax
import jax.numpy as jnp
from jax.experimental import pallas as pl
from jax.experimental.pallas import tpu as pltpu


# ----------------------------------------------------------------------------
# in-kernel helper
# ----------------------------------------------------------------------------
def _mm_bias_relu(x_bf16, w_bf16, b_f32):
    # bf16 operands on the MXU, f32 accumulate + bias + relu, back to bf16 for the next matmul.
    y = jnp.dot(x_bf16, w_bf16, preferred_element_type=jnp.float32) + b_f32
    return jnp.maximum(y, 0.0).astype(jnp.bfloat16)


# ----------------------------------------------------------------------------
# Kernel 1: STN front = localization conv chain (dense matmuls) + fc_xform MLP
# ----------------------------------------------------------------------------
def _stn_fc_kernel(x_ref, d1_ref, db1_ref, d2_ref, db2_ref, d3_ref, db3_ref,
                   f1w_ref, f1b_ref, f2w_ref, f2b_ref, f3w_ref, f3b_ref, o_ref):
    h = _mm_bias_relu(x_ref[...], d1_ref[...], db1_ref[...])   # conv1 + relu
    h = _mm_bias_relu(h, d2_ref[...], db2_ref[...])            # conv2 + relu
    h = _mm_bias_relu(h, d3_ref[...], db3_ref[...])            # conv3 + relu
    h = _mm_bias_relu(h, f1w_ref[...], f1b_ref[...])           # fc_xform[0] + relu
    h = _mm_bias_relu(h, f2w_ref[...], f2b_ref[...])           # fc_xform[2] + relu
    o_ref[...] = (jnp.dot(h, f3w_ref[...], preferred_element_type=jnp.float32)
                  + f3b_ref[...])                              # fc_xform[-1]


def pallas_stn_localization_fc(x_flat, p):
    B = x_flat.shape[0]
    args = (x_flat, p["d1"], p["db1"], p["d2"], p["db2"], p["d3"], p["db3"],
            p["f1w"], p["f1b"], p["f2w"], p["f2b"], p["f3w"], p["f3b"])
    n_out = p["f3w"].shape[1]
    return pl.pallas_call(
        _stn_fc_kernel,
        out_shape=jax.ShapeDtypeStruct((B, n_out), jnp.float32),
        grid=(1,),
        in_specs=[pl.BlockSpec(a.shape, lambda i: (0, 0)) for a in args],
        out_specs=pl.BlockSpec((B, n_out), lambda i: (0, 0)),
        compiler_params=pltpu.CompilerParams(dimension_semantics=("arbitrary",)),
    )(*args)


# ----------------------------------------------------------------------------
# Kernel 2: grid-sample (in-kernel one-hot) + encoder + reparam + clamp + decoder
# ----------------------------------------------------------------------------
def _sample_enc_dec_kernel(gx_ref, gy_ref, xsrc_ref, eps_ref,
                           d1_ref, db1_ref, d2_ref, db2_ref, d3_ref, db3_ref,
                           wml_ref, bml_ref, lo_ref, hi_ref,
                           wd1_ref, bd1_ref, wd2_ref, bd2_ref, o_ref,
                           *, B, C, H, W, latent_dim, lv_offset):
    P = H * W

    def floor_nonneg(v):
        # floor for v >= 0 (int truncation == floor); avoids relying on a vector floor op.
        return v.astype(jnp.int32).astype(jnp.float32)

    def source_coord(g, size):
        # PyTorch grid_sample, align_corners=False, padding_mode='reflection':
        # unnormalize -> reflect around (-0.5, size-0.5) -> clip to [0, size-1].
        s = float(size)
        c = ((g + 1.0) * s - 1.0) * 0.5
        c = jnp.abs(c + 0.5)
        two = 2.0 * s
        c = c - two * floor_nonneg(c * (1.0 / two))            # fmod(c, 2*size), c >= 0
        c = jnp.where(c >= s, two - c, c) - 0.5
        return jnp.clip(c, 0.0, s - 1.0)

    ix = source_coord(gx_ref[...], W)                          # (B, P) f32
    iy = source_coord(gy_ref[...], H)
    ix0f = floor_nonneg(ix)
    iy0f = floor_nonneg(iy)
    ix0 = ix0f.astype(jnp.int32)
    iy0 = iy0f.astype(jnp.int32)
    wx1 = ix - ix0f
    wy1 = iy - iy0f
    wx0 = 1.0 - wx1
    wy0 = 1.0 - wy1
    # the +1 corner only exceeds size-1 when its bilinear weight is exactly 0, so
    # clamping it is equivalent to PyTorch's out-of-bounds zero contribution.
    ix1 = jnp.minimum(ix0 + 1, W - 1)
    iy1 = jnp.minimum(iy0 + 1, H - 1)
    corners = ((iy0 * W + ix0, wy0 * wx0), (iy0 * W + ix1, wy0 * wx1),
               (iy1 * W + ix0, wy1 * wx0), (iy1 * W + ix1, wy1 * wx1))

    # bilinear interpolation as a one-hot (source, output) matrix built on the VPU and
    # fed straight to the MXU; it never leaves VMEM.
    iota_q = jax.lax.broadcasted_iota(jnp.int32, (P, P), 0)    # source index along rows
    rows = []
    for b in range(B):                                         # B is tiny: static loop
        m = None
        for q, wgt in corners:
            term = jnp.where(q[b:b + 1, :] == iota_q, wgt[b:b + 1, :], 0.0)
            m = term if m is None else m + term                # (P, P) f32
        xb = xsrc_ref[b * 8:(b + 1) * 8, :]                    # (8, P) f32, rows >= C are zero
        samp = jnp.dot(xb, m, preferred_element_type=jnp.float32)   # f32 sample matmul
        rows.append(samp[0:C, :])
    x_stn = jnp.concatenate(rows, axis=0)                      # (B*C, P) == (B, C*H*W) for C == 1

    # encoder: same conv chain (shared dense matrices) as the localization
    e = _mm_bias_relu(x_stn.astype(jnp.bfloat16), d1_ref[...], db1_ref[...])
    e = _mm_bias_relu(e, d2_ref[...], db2_ref[...])
    e = _mm_bias_relu(e, d3_ref[...], db3_ref[...])

    # [mu || log_var] as one matmul; log_var starts at a 128-lane (vreg) boundary
    ml = jnp.dot(e, wml_ref[...], preferred_element_type=jnp.float32) + bml_ref[...]
    mu = ml[:, :latent_dim]
    log_var = ml[:, lv_offset:lv_offset + latent_dim]
    z = mu + eps_ref[...] * jnp.exp(0.5 * log_var)             # reparameterize
    z = jnp.minimum(jnp.maximum(z, lo_ref[...]), hi_ref[...])  # per-dim clamp

    # FC decoder + exact f32 sigmoid, lane-dense (B, C*H*W) store
    h = _mm_bias_relu(z.astype(jnp.bfloat16), wd1_ref[...], bd1_ref[...])
    y = jnp.dot(h, wd2_ref[...], preferred_element_type=jnp.float32) + bd2_ref[...]
    o_ref[...] = 1.0 / (1.0 + jnp.exp(-y))


def pallas_sample_encode_decode(gx, gy, x_src, eps, p, *, B, C, H, W, latent_dim):
    lv_off = p["wml"].shape[1] - latent_dim
    args = (gx, gy, x_src, eps,
            p["d1"], p["db1"], p["d2"], p["db2"], p["d3"], p["db3"],
            p["wml"], p["bml"], p["lo"], p["hi"],
            p["wd1"], p["bd1"], p["wd2"], p["bd2"])
    kern = functools.partial(_sample_enc_dec_kernel, B=B, C=C, H=H, W=W,
                             latent_dim=latent_dim, lv_offset=lv_off)
    return pl.pallas_call(
        kern,
        out_shape=jax.ShapeDtypeStruct((B, C * H * W), jnp.float32),
        grid=(1,),
        in_specs=[pl.BlockSpec(a.shape, lambda i: (0, 0)) for a in args],
        out_specs=pl.BlockSpec((B, C * H * W), lambda i: (0, 0)),
        compiler_params=pltpu.CompilerParams(dimension_semantics=("arbitrary",)),
    )(*args)


# ----------------------------------------------------------------------------
# One-time host-side weight preparation (hoisted out of the per-call path)
# ----------------------------------------------------------------------------
def conv_to_dense(w, b, H, W, stride, pad):
    """Fold a stride-2 Conv2d on a fixed (H, W) input into a dense matrix.

    Input flattened NCHW-style (ci*H*W + ih*W + iw), output (co*OH*OW + oh*OW + ow),
    so the chain's final flatten exactly matches x.view(B, -1) in the PyTorch module.
    """
    w = np.asarray(w, np.float32)
    b = np.asarray(b, np.float32)
    Cout, Cin, kh, kw = w.shape
    OH = (H + 2 * pad - kh) // stride + 1
    OW = (W + 2 * pad - kw) // stride + 1
    M = np.zeros((Cin * H * W, Cout * OH * OW), np.float32)
    for co in range(Cout):
        for ci in range(Cin):
            for dh in range(kh):
                for dw in range(kw):
                    wv = w[co, ci, dh, dw]
                    for oh in range(OH):
                        ih = oh * stride + dh - pad
                        if ih < 0 or ih >= H:
                            continue
                        for ow in range(OW):
                            iw = ow * stride + dw - pad
                            if iw < 0 or iw >= W:
                                continue
                            M[ci * H * W + ih * W + iw,
                              co * OH * OW + oh * OW + ow] = wv
    bias = np.repeat(b, OH * OW)
    return M, bias, OH, OW


def prepare_params(params, *, C, H, W, k, latent_dim):
    stride, pad = 2, k // 2
    d1, db1, H1, W1 = conv_to_dense(params["conv1_w"], params["conv1_b"], H, W, stride, pad)
    d2, db2, H2, W2 = conv_to_dense(params["conv2_w"], params["conv2_b"], H1, W1, stride, pad)
    d3, db3, H3, W3 = conv_to_dense(params["conv3_w"], params["conv3_b"], H2, W2, stride, pad)
    loc_numel = d3.shape[1]

    # mu at lanes [0, latent); log_var starting at a 128-lane (vreg) boundary
    lv_off = 128
    wml = np.zeros((loc_numel, lv_off + latent_dim), np.float32)
    wml[:, :latent_dim] = np.asarray(params["fc_mu_w"])
    wml[:, lv_off:lv_off + latent_dim] = np.asarray(params["fc_lv_w"])
    bml = np.zeros((1, lv_off + latent_dim), np.float32)
    bml[0, :latent_dim] = np.asarray(params["fc_mu_b"])
    bml[0, lv_off:lv_off + latent_dim] = np.asarray(params["fc_lv_b"])

    # fc_xform[-1]: 6 outputs padded to 8 lanes
    f3w = np.zeros((params["fcx3_w"].shape[0], 8), np.float32)
    f3w[:, :6] = np.asarray(params["fcx3_w"])
    f3b = np.zeros((1, 8), np.float32)
    f3b[0, :6] = np.asarray(params["fcx3_b"])

    # affine_grid base coordinates (align_corners=False), flattened p = oh*W + ow
    xs = (2.0 * np.arange(W, dtype=np.float32) + 1.0) / W - 1.0
    ys = (2.0 * np.arange(H, dtype=np.float32) + 1.0) / H - 1.0
    X, Y = np.meshgrid(xs, ys)

    init_dims = 11
    lo = np.array([-10.0] * init_dims + [0.0] * (latent_dim - init_dims),
                  np.float32).reshape(1, latent_dim)
    hi = np.array([10.0] * init_dims + [0.0] * (latent_dim - init_dims),
                  np.float32).reshape(1, latent_dim)

    bf16 = lambda a: jnp.asarray(a, jnp.bfloat16)
    f32 = lambda a: jnp.asarray(a, jnp.float32)
    return {
        "d1": bf16(d1), "db1": f32(db1.reshape(1, -1)),
        "d2": bf16(d2), "db2": f32(db2.reshape(1, -1)),
        "d3": bf16(d3), "db3": f32(db3.reshape(1, -1)),
        "f1w": bf16(params["fcx1_w"]), "f1b": f32(np.asarray(params["fcx1_b"]).reshape(1, -1)),
        "f2w": bf16(params["fcx2_w"]), "f2b": f32(np.asarray(params["fcx2_b"]).reshape(1, -1)),
        "f3w": bf16(f3w), "f3b": f32(f3b),
        "wml": bf16(wml), "bml": f32(bml),
        "wd1": bf16(params["dec1_w"]), "bd1": f32(np.asarray(params["dec1_b"]).reshape(1, -1)),
        "wd2": bf16(params["dec2_w"]), "bd2": f32(np.asarray(params["dec2_b"]).reshape(1, -1)),
        "lo": f32(lo), "hi": f32(hi),
        "base_x": f32(X.reshape(1, -1)), "base_y": f32(Y.reshape(1, -1)),
    }


# ----------------------------------------------------------------------------
# Parameters (deterministic, in-script; Encoder/Decoder assumed FC/conv as noted)
# ----------------------------------------------------------------------------
def init_params(key, C, H, W, k, directions, latent_dim, dec_hidden=64):
    ks = jax.random.split(key, 20)

    def nrm(kk, shape, std):
        return std * jax.random.normal(kk, shape, jnp.float32)

    pad = k // 2

    def conv_out(s):
        return (s + 2 * pad - k) // 2 + 1

    h3 = conv_out(conv_out(conv_out(H)))
    w3 = conv_out(conv_out(conv_out(W)))
    loc_numel = directions * h3 * w3          # exact PyTorch localization_out_numel

    return {
        # oriented_powermap convolutions (shared by localization and encoder)
        "conv1_w": nrm(ks[0], (directions, C, k, k), 0.1),
        "conv1_b": nrm(ks[1], (directions,), 0.1),
        "conv2_w": nrm(ks[2], (directions, directions, k, k), 0.1),
        "conv2_b": nrm(ks[3], (directions,), 0.1),
        "conv3_w": nrm(ks[4], (directions, directions, k, k), 0.1),
        "conv3_b": nrm(ks[5], (directions,), 0.1),
        # fc_xform: normal(0, 0.01) exactly as in the module
        "fcx1_w": nrm(ks[6], (loc_numel, 32), 0.01),
        "fcx1_b": nrm(ks[7], (32,), 0.01),
        "fcx2_w": nrm(ks[8], (32, 32), 0.01),
        "fcx2_b": nrm(ks[9], (32,), 0.01),
        "fcx3_w": nrm(ks[10], (32, 6), 0.01),
        "fcx3_b": nrm(ks[11], (6,), 0.01),
        # encoder heads
        "fc_mu_w": nrm(ks[12], (loc_numel, latent_dim), 0.05),
        "fc_mu_b": nrm(ks[13], (latent_dim,), 0.05),
        "fc_lv_w": nrm(ks[14], (loc_numel, latent_dim), 0.05),
        "fc_lv_b": nrm(ks[15], (latent_dim,), 0.05),
        # decoder (FC; reference Decoder class not provided)
        "dec1_w": nrm(ks[16], (latent_dim, dec_hidden), 0.05),
        "dec1_b": nrm(ks[17], (dec_hidden,), 0.05),
        "dec2_w": nrm(ks[18], (dec_hidden, C * H * W), 0.05),
        "dec2_b": nrm(ks[19], (C * H * W,), 0.05),
    }


# ----------------------------------------------------------------------------
# Forward pass (mirrors VAE.forward -> forward_dict -> x_back): 2 Pallas launches
# ----------------------------------------------------------------------------
def vae_forward(prep, x, eps, *, latent_dim):
    B, C, H, W = x.shape
    assert C == 1  # TODO(synk): generalize the in-kernel NCHW flatten for C > 1
    P = H * W

    # ---- STN front: localization conv chain + fc_xform (one fused kernel) ----
    fc = pallas_stn_localization_fc(x.reshape(B, C * H * W).astype(jnp.bfloat16), prep)

    # ---- theta + affine grid: one tiny XLA fusion (sin/cos kept out of Mosaic) ----
    shear = 0.09 * fc[:, 5:6]
    scale_x = jax.nn.sigmoid(0.1 * fc[:, 3:4]) + 0.5
    scale_y = jax.nn.sigmoid(0.1 * fc[:, 4:5]) + 0.5
    sa = jnp.sin(0.01 * fc[:, 2:3])
    ca = jnp.cos(0.01 * fc[:, 2:3])
    x_shift = 0.2 * fc[:, 0:1]
    y_shift = 0.2 * fc[:, 1:2]
    t00 = scale_x * ca
    t01 = scale_y * (-sa) + shear * scale_y * ca
    t02 = -0.5 * (ca - sa) + x_shift + 0.5
    t10 = scale_x * sa
    t11 = scale_y * ca + shear * scale_y * sa
    t12 = -0.5 * (sa + ca) + y_shift + 0.5
    bx, by = prep["base_x"], prep["base_y"]            # (1, P)
    gx = t00 * bx + t01 * by + t02                     # (B, P)
    gy = t10 * bx + t11 * by + t12

    # ---- grid-sample + encoder + reparam + clamp + decoder (one fused kernel) ----
    # channel dim padded to 8 so the per-batch sample matmul has a non-degenerate M
    x_src = jnp.pad(x.reshape(B, C, P), ((0, 0), (0, 8 - C), (0, 0))).reshape(B * 8, P)
    x_back = pallas_sample_encode_decode(gx, gy, x_src, eps, prep,
                                         B=B, C=C, H=H, W=W, latent_dim=latent_dim)
    return x_back.reshape(B, C, H, W)


# ----------------------------------------------------------------------------
if __name__ == "__main__":
    B, C, H, W = 2, 1, 16, 16
    init_kernel_size, directions, latent_dim = 5, 7, 32

    key = jax.random.PRNGKey(0)
    kx, keps, kparams = jax.random.split(key, 3)
    x = jax.random.normal(kx, (B, C, H, W), jnp.float32)
    # torch.randn_like eps for the reparameterization trick, pre-sampled here.
    eps = jax.random.normal(keps, (B, latent_dim), jnp.float32)

    params = init_params(kparams, C, H, W, init_kernel_size, directions, latent_dim)
    # one-time weight prep (dense conv folding, bf16 casts, head concat) — NOT per call
    prep = prepare_params(params, C=C, H=H, W=W, k=init_kernel_size, latent_dim=latent_dim)

    fwd = jax.jit(functools.partial(vae_forward, latent_dim=latent_dim))
    out = fwd(prep, x, eps)
    jax.block_until_ready(out)
    assert out.shape == (B, C, H, W)
    assert bool(jnp.isfinite(out).all())
    print("KERNEL_OK")
</pallas_src>

<mosaic_0001>
module attributes {stable_mosaic.version = 11 : i64} {
  func.func @_stn_fc_kernel(%arg0: i32, %arg1: memref<2x256xbf16, #tpu.memory_space<vmem>>, %arg2: memref<256x448xbf16, #tpu.memory_space<vmem>>, %arg3: memref<1x448xf32, #tpu.memory_space<vmem>>, %arg4: memref<448x112xbf16, #tpu.memory_space<vmem>>, %arg5: memref<1x112xf32, #tpu.memory_space<vmem>>, %arg6: memref<112x28xbf16, #tpu.memory_space<vmem>>, %arg7: memref<1x28xf32, #tpu.memory_space<vmem>>, %arg8: memref<28x32xbf16, #tpu.memory_space<vmem>>, %arg9: memref<1x32xf32, #tpu.memory_space<vmem>>, %arg10: memref<32x32xbf16, #tpu.memory_space<vmem>>, %arg11: memref<1x32xf32, #tpu.memory_space<vmem>>, %arg12: memref<32x8xbf16, #tpu.memory_space<vmem>>, %arg13: memref<1x8xf32, #tpu.memory_space<vmem>>, %arg14: memref<2x8xf32, #tpu.memory_space<vmem>>) attributes {dimension_semantics = [#tpu.dimension_semantics<arbitrary>], iteration_bounds = array<i64: 1>, scalar_prefetch = 0 : i64, scratch_operands = 0 : i64, tpu.core_type = #tpu.core_type<tc>, window_params = [{pipeline_mode = #tpu.pipeline_mode<synchronous>, transform_indices = @transform_0, window_bounds = array<i64: 2, 256>}, {pipeline_mode = #tpu.pipeline_mode<synchronous>, transform_indices = @transform_1, window_bounds = array<i64: 256, 448>}, {pipeline_mode = #tpu.pipeline_mode<synchronous>, transform_indices = @transform_2, window_bounds = array<i64: 1, 448>}, {pipeline_mode = #tpu.pipeline_mode<synchronous>, transform_indices = @transform_3, window_bounds = array<i64: 448, 112>}, {pipeline_mode = #tpu.pipeline_mode<synchronous>, transform_indices = @transform_4, window_bounds = array<i64: 1, 112>}, {pipeline_mode = #tpu.pipeline_mode<synchronous>, transform_indices = @transform_5, window_bounds = array<i64: 112, 28>}, {pipeline_mode = #tpu.pipeline_mode<synchronous>, transform_indices = @transform_6, window_bounds = array<i64: 1, 28>}, {pipeline_mode = #tpu.pipeline_mode<synchronous>, transform_indices = @transform_7, window_bounds = array<i64: 28, 32>}, {pipeline_mode = #tpu.pipeline_mode<synchronous>, transform_indices = @transform_8, window_bounds = array<i64: 1, 32>}, {pipeline_mode = #tpu.pipeline_mode<synchronous>, transform_indices = @transform_9, window_bounds = array<i64: 32, 32>}, {pipeline_mode = #tpu.pipeline_mode<synchronous>, transform_indices = @transform_10, window_bounds = array<i64: 1, 32>}, {pipeline_mode = #tpu.pipeline_mode<synchronous>, transform_indices = @transform_11, window_bounds = array<i64: 32, 8>}, {pipeline_mode = #tpu.pipeline_mode<synchronous>, transform_indices = @transform_12, window_bounds = array<i64: 1, 8>}, {pipeline_mode = #tpu.pipeline_mode<synchronous>, transform_indices = @transform_13, window_bounds = array<i64: 2, 8>}]} {
    %c0 = arith.constant 0 : index
    %c0_0 = arith.constant 0 : index
    %0 = vector.load %arg1[%c0, %c0_0] : memref<2x256xbf16, #tpu.memory_space<vmem>>, vector<2x256xbf16>
    %c0_1 = arith.constant 0 : index
    %c0_2 = arith.constant 0 : index
    %1 = vector.load %arg2[%c0_1, %c0_2] : memref<256x448xbf16, #tpu.memory_space<vmem>>, vector<256x448xbf16>
    %c0_3 = arith.constant 0 : index
    %c0_4 = arith.constant 0 : index
    %2 = vector.load %arg3[%c0_3, %c0_4] : memref<1x448xf32, #tpu.memory_space<vmem>>, vector<1x448xf32>
    %cst = arith.constant dense<0.000000e+00> : vector<2x448xf32>
    %3 = tpu.matmul %0, %1, %cst {dimension_numbers = #tpu.dot_dimension_numbers<[1], [0], [0], [1], [0, 0, 1, 1], [], []>} : vector<2x256xbf16>, vector<256x448xbf16>, vector<2x448xf32> -> vector<2x448xf32>
    %4 = vector.broadcast %2 : vector<1x448xf32> to vector<2x448xf32>
    %5 = arith.addf %3, %4 : vector<2x448xf32>
    %cst_5 = arith.constant 0.000000e+00 : f32
    %6 = vector.broadcast %cst_5 : f32 to vector<2x448xf32>
    %7 = arith.maximumf %5, %6 : vector<2x448xf32>
    %8 = arith.truncf %7 : vector<2x448xf32> to vector<2x448xbf16>
    %c0_6 = arith.constant 0 : index
    %c0_7 = arith.constant 0 : index
    %9 = vector.load %arg4[%c0_6, %c0_7] : memref<448x112xbf16, #tpu.memory_space<vmem>>, vector<448x112xbf16>
    %c0_8 = arith.constant 0 : index
    %c0_9 = arith.constant 0 : index
    %10 = vector.load %arg5[%c0_8, %c0_9] : memref<1x112xf32, #tpu.memory_space<vmem>>, vector<1x112xf32>
    %cst_10 = arith.constant dense<0.000000e+00> : vector<2x112xf32>
    %11 = tpu.matmul %8, %9, %cst_10 {dimension_numbers = #tpu.dot_dimension_numbers<[1], [0], [0], [1], [0, 0, 1, 1], [], []>} : vector<2x448xbf16>, vector<448x112xbf16>, vector<2x112xf32> -> vector<2x112xf32>
    %12 = vector.broadcast %10 : vector<1x112xf32> to vector<2x112xf32>
    %13 = arith.addf %11, %12 : vector<2x112xf32>
    %cst_11 = arith.constant 0.000000e+00 : f32
    %14 = vector.broadcast %cst_11 : f32 to vector<2x112xf32>
    %15 = arith.maximumf %13, %14 : vector<2x112xf32>
    %16 = arith.truncf %15 : vector<2x112xf32> to vector<2x112xbf16>
    %c0_12 = arith.constant 0 : index
    %c0_13 = arith.constant 0 : index
    %17 = vector.load %arg6[%c0_12, %c0_13] : memref<112x28xbf16, #tpu.memory_space<vmem>>, vector<112x28xbf16>
    %c0_14 = arith.constant 0 : index
    %c0_15 = arith.constant 0 : index
    %18 = vector.load %arg7[%c0_14, %c0_15] : memref<1x28xf32, #tpu.memory_space<vmem>>, vector<1x28xf32>
    %cst_16 = arith.constant dense<0.000000e+00> : vector<2x28xf32>
    %19 = tpu.matmul %16, %17, %cst_16 {dimension_numbers = #tpu.dot_dimension_numbers<[1], [0], [0], [1], [0, 0, 1, 1], [], []>} : vector<2x112xbf16>, vector<112x28xbf16>, vector<2x28xf32> -> vector<2x28xf32>
    %20 = vector.broadcast %18 : vector<1x28xf32> to vector<2x28xf32>
    %21 = arith.addf %19, %20 : vector<2x28xf32>
    %cst_17 = arith.constant 0.000000e+00 : f32
    %22 = vector.broadcast %cst_17 : f32 to vector<2x28xf32>
    %23 = arith.maximumf %21, %22 : vector<2x28xf32>
    %24 = arith.truncf %23 : vector<2x28xf32> to vector<2x28xbf16>
    %c0_18 = arith.constant 0 : index
    %c0_19 = arith.constant 0 : index
    %25 = vector.load %arg8[%c0_18, %c0_19] : memref<28x32xbf16, #tpu.memory_space<vmem>>, vector<28x32xbf16>
    %c0_20 = arith.constant 0 : index
    %c0_21 = arith.constant 0 : index
    %26 = vector.load %arg9[%c0_20, %c0_21] : memref<1x32xf32, #tpu.memory_space<vmem>>, vector<1x32xf32>
    %cst_22 = arith.constant dense<0.000000e+00> : vector<2x32xf32>
    %27 = tpu.matmul %24, %25, %cst_22 {dimension_numbers = #tpu.dot_dimension_numbers<[1], [0], [0], [1], [0, 0, 1, 1], [], []>} : vector<2x28xbf16>, vector<28x32xbf16>, vector<2x32xf32> -> vector<2x32xf32>
    %28 = vector.broadcast %26 : vector<1x32xf32> to vector<2x32xf32>
    %29 = arith.addf %27, %28 : vector<2x32xf32>
    %cst_23 = arith.constant 0.000000e+00 : f32
    %30 = vector.broadcast %cst_23 : f32 to vector<2x32xf32>
    %31 = arith.maximumf %29, %30 : vector<2x32xf32>
    %32 = arith.truncf %31 : vector<2x32xf32> to vector<2x32xbf16>
    %c0_24 = arith.constant 0 : index
    %c0_25 = arith.constant 0 : index
    %33 = vector.load %arg10[%c0_24, %c0_25] : memref<32x32xbf16, #tpu.memory_space<vmem>>, vector<32x32xbf16>
    %c0_26 = arith.constant 0 : index
    %c0_27 = arith.constant 0 : index
    %34 = vector.load %arg11[%c0_26, %c0_27] : memref<1x32xf32, #tpu.memory_space<vmem>>, vector<1x32xf32>
    %cst_28 = arith.constant dense<0.000000e+00> : vector<2x32xf32>
    %35 = tpu.matmul %32, %33, %cst_28 {dimension_numbers = #tpu.dot_dimension_numbers<[1], [0], [0], [1], [0, 0, 1, 1], [], []>} : vector<2x32xbf16>, vector<32x32xbf16>, vector<2x32xf32> -> vector<2x32xf32>
    %36 = vector.broadcast %34 : vector<1x32xf32> to vector<2x32xf32>
    %37 = arith.addf %35, %36 : vector<2x32xf32>
    %cst_29 = arith.constant 0.000000e+00 : f32
    %38 = vector.broadcast %cst_29 : f32 to vector<2x32xf32>
    %39 = arith.maximumf %37, %38 : vector<2x32xf32>
    %40 = arith.truncf %39 : vector<2x32xf32> to vector<2x32xbf16>
    %c0_30 = arith.constant 0 : index
    %c0_31 = arith.constant 0 : index
    %41 = vector.load %arg12[%c0_30, %c0_31] : memref<32x8xbf16, #tpu.memory_space<vmem>>, vector<32x8xbf16>
    %cst_32 = arith.constant dense<0.000000e+00> : vector<2x8xf32>
    %42 = tpu.matmul %40, %41, %cst_32 {dimension_numbers = #tpu.dot_dimension_numbers<[1], [0], [0], [1], [0, 0, 1, 1], [], []>} : vector<2x32xbf16>, vector<32x8xbf16>, vector<2x8xf32> -> vector<2x8xf32>
    %c0_33 = arith.constant 0 : index
    %c0_34 = arith.constant 0 : index
    %43 = vector.load %arg13[%c0_33, %c0_34] : memref<1x8xf32, #tpu.memory_space<vmem>>, vector<1x8xf32>
    %44 = vector.broadcast %43 : vector<1x8xf32> to vector<2x8xf32>
    %45 = arith.addf %42, %44 : vector<2x8xf32>
    %c0_35 = arith.constant 0 : index
    %c0_36 = arith.constant 0 : index
    %46 = vector.load %arg14[%c0_35, %c0_36] : memref<2x8xf32, #tpu.memory_space<vmem>>, vector<2x8xf32>
    tpu.vector_store %arg14[%c0_35, %c0_36], %45 {strides = array<i32>} : memref<2x8xf32, #tpu.memory_space<vmem>>, vector<2x8xf32>,
    return
  }
  func.func @transform_0(%arg0: i32) -> (i32, i32) {
    %c0_i32 = arith.constant 0 : i32
    %c0_i32_0 = arith.constant 0 : i32
    %c0_i32_1 = arith.constant 0 : i32
    return %c0_i32, %c0_i32_0 : i32, i32
  }
  func.func @transform_1(%arg0: i32) -> (i32, i32) {
    %c0_i32 = arith.constant 0 : i32
    %c0_i32_0 = arith.constant 0 : i32
    %c0_i32_1 = arith.constant 0 : i32
    return %c0_i32, %c0_i32_0 : i32, i32
  }
  func.func @transform_2(%arg0: i32) -> (i32, i32) {
    %c0_i32 = arith.constant 0 : i32
    %c0_i32_0 = arith.constant 0 : i32
    %c0_i32_1 = arith.constant 0 : i32
    return %c0_i32, %c0_i32_0 : i32, i32
  }
  func.func @transform_3(%arg0: i32) -> (i32, i32) {
    %c0_i32 = arith.constant 0 : i32
    %c0_i32_0 = arith.constant 0 : i32
    %c0_i32_1 = arith.constant 0 : i32
    return %c0_i32, %c0_i32_0 : i32, i32
  }
  func.func @transform_4(%arg0: i32) -> (i32, i32) {
    %c0_i32 = arith.constant 0 : i32
    %c0_i32_0 = arith.constant 0 : i32
    %c0_i32_1 = arith.constant 0 : i32
    return %c0_i32, %c0_i32_0 : i32, i32
  }
  func.func @transform_5(%arg0: i32) -> (i32, i32) {
    %c0_i32 = arith.constant 0 : i32
    %c0_i32_0 = arith.constant 0 : i32
    %c0_i32_1 = arith.constant 0 : i32
    return %c0_i32, %c0_i32_0 : i32, i32
  }
  func.func @transform_6(%arg0: i32) -> (i32, i32) {
    %c0_i32 = arith.constant 0 : i32
    %c0_i32_0 = arith.constant 0 : i32
    %c0_i32_1 = arith.constant 0 : i32
    return %c0_i32, %c0_i32_0 : i32, i32
  }
  func.func @transform_7(%arg0: i32) -> (i32, i32) {
    %c0_i32 = arith.constant 0 : i32
    %c0_i32_0 = arith.constant 0 : i32
    %c0_i32_1 = arith.constant 0 : i32
    return %c0_i32, %c0_i32_0 : i32, i32
  }
  func.func @transform_8(%arg0: i32) -> (i32, i32) {
    %c0_i32 = arith.constant 0 : i32
    %c0_i32_0 = arith.constant 0 : i32
    %c0_i32_1 = arith.constant 0 : i32
    return %c0_i32, %c0_i32_0 : i32, i32
  }
  func.func @transform_9(%arg0: i32) -> (i32, i32) {
    %c0_i32 = arith.constant 0 : i32
    %c0_i32_0 = arith.constant 0 : i32
    %c0_i32_1 = arith.constant 0 : i32
    return %c0_i32, %c0_i32_0 : i32, i32
  }
  func.func @transform_10(%arg0: i32) -> (i32, i32) {
    %c0_i32 = arith.constant 0 : i32
    %c0_i32_0 = arith.constant 0 : i32
    %c0_i32_1 = arith.constant 0 : i32
    return %c0_i32, %c0_i32_0 : i32, i32
  }
  func.func @transform_11(%arg0: i32) -> (i32, i32) {
    %c0_i32 = arith.constant 0 : i32
    %c0_i32_0 = arith.constant 0 : i32
    %c0_i32_1 = arith.constant 0 : i32
    return %c0_i32, %c0_i32_0 : i32, i32
  }
  func.func @transform_12(%arg0: i32) -> (i32, i32) {
    %c0_i32 = arith.constant 0 : i32
    %c0_i32_0 = arith.constant 0 : i32
    %c0_i32_1 = arith.constant 0 : i32
    return %c0_i32, %c0_i32_0 : i32, i32
  }
  func.func @transform_13(%arg0: i32) -> (i32, i32) {
    %c0_i32 = arith.constant 0 : i32
    %c0_i32_0 = arith.constant 0 : i32
    %c0_i32_1 = arith.constant 0 : i32
    return %c0_i32, %c0_i32_0 : i32, i32
  }
}

module attributes {stable_mosaic.version = 11 : i64} {
  func.func @_sample_enc_dec_kernel(%arg0: i32, %arg1: memref<2x256xf32, #tpu.memory_space<vmem>>, %arg2: memref<2x256xf32, #tpu.memory_space<vmem>>, %arg3: memref<16x256xf32, #tpu.memory_space<vmem>>, %arg4: memref<2x32xf32, #tpu.memory_space<vmem>>, %arg5: memref<256x448xbf16, #tpu.memory_space<vmem>>, %arg6: memref<1x448xf32, #tpu.memory_space<vmem>>, %arg7: memref<448x112xbf16, #tpu.memory_space<vmem>>, %arg8: memref<1x112xf32, #tpu.memory_space<vmem>>, %arg9: memref<112x28xbf16, #tpu.memory_space<vmem>>, %arg10: memref<1x28xf32, #tpu.memory_space<vmem>>, %arg11: memref<28x160xbf16, #tpu.memory_space<vmem>>, %arg12: memref<1x160xf32, #tpu.memory_space<vmem>>, %arg13: memref<1x32xf32, #tpu.memory_space<vmem>>, %arg14: memref<1x32xf32, #tpu.memory_space<vmem>>, %arg15: memref<32x64xbf16, #tpu.memory_space<vmem>>, %arg16: memref<1x64xf32, #tpu.memory_space<vmem>>, %arg17: memref<64x256xbf16, #tpu.memory_space<vmem>>, %arg18: memref<1x256xf32, #tpu.memory_space<vmem>>, %arg19: memref<2x256xf32, #tpu.memory_space<vmem>>) attributes {dimension_semantics = [#tpu.dimension_semantics<arbitrary>], iteration_bounds = array<i64: 1>, scalar_prefetch = 0 : i64, scratch_operands = 0 : i64, tpu.core_type = #tpu.core_type<tc>, window_params = [{pipeline_mode = #tpu.pipeline_mode<synchronous>, transform_indices = @transform_0, window_bounds = array<i64: 2, 256>}, {pipeline_mode = #tpu.pipeline_mode<synchronous>, transform_indices = @transform_1, window_bounds = array<i64: 2, 256>}, {pipeline_mode = #tpu.pipeline_mode<synchronous>, transform_indices = @transform_2, window_bounds = array<i64: 16, 256>}, {pipeline_mode = #tpu.pipeline_mode<synchronous>, transform_indices = @transform_3, window_bounds = array<i64: 2, 32>}, {pipeline_mode = #tpu.pipeline_mode<synchronous>, transform_indices = @transform_4, window_bounds = array<i64: 256, 448>}, {pipeline_mode = #tpu.pipeline_mode<synchronous>, transform_indices = @transform_5, window_bounds = array<i64: 1, 448>}, {pipeline_mode = #tpu.pipeline_mode<synchronous>, transform_indices = @transform_6, window_bounds = array<i64: 448, 112>}, {pipeline_mode = #tpu.pipeline_mode<synchronous>, transform_indices = @transform_7, window_bounds = array<i64: 1, 112>}, {pipeline_mode = #tpu.pipeline_mode<synchronous>, transform_indices = @transform_8, window_bounds = array<i64: 112, 28>}, {pipeline_mode = #tpu.pipeline_mode<synchronous>, transform_indices = @transform_9, window_bounds = array<i64: 1, 28>}, {pipeline_mode = #tpu.pipeline_mode<synchronous>, transform_indices = @transform_10, window_bounds = array<i64: 28, 160>}, {pipeline_mode = #tpu.pipeline_mode<synchronous>, transform_indices = @transform_11, window_bounds = array<i64: 1, 160>}, {pipeline_mode = #tpu.pipeline_mode<synchronous>, transform_indices = @transform_12, window_bounds = array<i64: 1, 32>}, {pipeline_mode = #tpu.pipeline_mode<synchronous>, transform_indices = @transform_13, window_bounds = array<i64: 1, 32>}, {pipeline_mode = #tpu.pipeline_mode<synchronous>, transform_indices = @transform_14, window_bounds = array<i64: 32, 64>}, {pipeline_mode = #tpu.pipeline_mode<synchronous>, transform_indices = @transform_15, window_bounds = array<i64: 1, 64>}, {pipeline_mode = #tpu.pipeline_mode<synchronous>, transform_indices = @transform_16, window_bounds = array<i64: 64, 256>}, {pipeline_mode = #tpu.pipeline_mode<synchronous>, transform_indices = @transform_17, window_bounds = array<i64: 1, 256>}, {pipeline_mode = #tpu.pipeline_mode<synchronous>, transform_indices = @transform_18, window_bounds = array<i64: 2, 256>}]} {
    %c0 = arith.constant 0 : index
    %c0_0 = arith.constant 0 : index
    %0 = vector.load %arg1[%c0, %c0_0] : memref<2x256xf32, #tpu.memory_space<vmem>>, vector<2x256xf32>
    %cst = arith.constant 1.000000e+00 : f32
    %1 = vector.broadcast %cst : f32 to vector<2x256xf32>
    %2 = arith.addf %0, %1 : vector<2x256xf32>
    %cst_1 = arith.constant 1.600000e+01 : f32
    %3 = vector.broadcast %cst_1 : f32 to vector<2x256xf32>
    %4 = arith.mulf %2, %3 : vector<2x256xf32>
    %cst_2 = arith.constant 1.000000e+00 : f32
    %5 = vector.broadcast %cst_2 : f32 to vector<2x256xf32>
    %6 = arith.subf %4, %5 : vector<2x256xf32>
    %cst_3 = arith.constant 5.000000e-01 : f32
    %7 = vector.broadcast %cst_3 : f32 to vector<2x256xf32>
    %8 = arith.mulf %6, %7 : vector<2x256xf32>
    %cst_4 = arith.constant 5.000000e-01 : f32
    %9 = vector.broadcast %cst_4 : f32 to vector<2x256xf32>
    %10 = arith.addf %8, %9 : vector<2x256xf32>
    %11 = math.absf %10 : vector<2x256xf32>
    %cst_5 = arith.constant 3.125000e-02 : f32
    %12 = vector.broadcast %cst_5 : f32 to vector<2x256xf32>
    %13 = arith.mulf %11, %12 : vector<2x256xf32>
    %14 = arith.fptosi %13 : vector<2x256xf32> to vector<2x256xi32>
    %15 = arith.sitofp %14 : vector<2x256xi32> to vector<2x256xf32>
    %cst_6 = arith.constant 3.200000e+01 : f32
    %16 = vector.broadcast %cst_6 : f32 to vector<2x256xf32>
    %17 = arith.mulf %16, %15 : vector<2x256xf32>
    %18 = arith.subf %11, %17 : vector<2x256xf32>
    %cst_7 = arith.constant 1.600000e+01 : f32
    %19 = vector.broadcast %cst_7 : f32 to vector<2x256xf32>
    %20 = arith.cmpf oge, %18, %19 : vector<2x256xf32>
    %cst_8 = arith.constant 3.200000e+01 : f32
    %21 = vector.broadcast %cst_8 : f32 to vector<2x256xf32>
    %22 = arith.subf %21, %18 : vector<2x256xf32>
    %23 = arith.select %20, %22, %18 : vector<2x256xi1>, vector<2x256xf32>
    %cst_9 = arith.constant 5.000000e-01 : f32
    %24 = vector.broadcast %cst_9 : f32 to vector<2x256xf32>
    %25 = arith.subf %23, %24 : vector<2x256xf32>
    %cst_10 = arith.constant 0.000000e+00 : f32
    %cst_11 = arith.constant 1.500000e+01 : f32
    %26 = vector.broadcast %cst_10 : f32 to vector<2x256xf32>
    %27 = arith.maximumf %26, %25 : vector<2x256xf32>
    %28 = vector.broadcast %cst_11 : f32 to vector<2x256xf32>
    %29 = arith.minimumf %28, %27 : vector<2x256xf32>
    %c0_12 = arith.constant 0 : index
    %c0_13 = arith.constant 0 : index
    %30 = vector.load %arg2[%c0_12, %c0_13] : memref<2x256xf32, #tpu.memory_space<vmem>>, vector<2x256xf32>
    %cst_14 = arith.constant 1.000000e+00 : f32
    %31 = vector.broadcast %cst_14 : f32 to vector<2x256xf32>
    %32 = arith.addf %30, %31 : vector<2x256xf32>
    %cst_15 = arith.constant 1.600000e+01 : f32
    %33 = vector.broadcast %cst_15 : f32 to vector<2x256xf32>
    %34 = arith.mulf %32, %33 : vector<2x256xf32>
    %cst_16 = arith.constant 1.000000e+00 : f32
    %35 = vector.broadcast %cst_16 : f32 to vector<2x256xf32>
    %36 = arith.subf %34, %35 : vector<2x256xf32>
    %cst_17 = arith.constant 5.000000e-01 : f32
    %37 = vector.broadcast %cst_17 : f32 to vector<2x256xf32>
    %38 = arith.mulf %36, %37 : vector<2x256xf32>
    %cst_18 = arith.constant 5.000000e-01 : f32
    %39 = vector.broadcast %cst_18 : f32 to vector<2x256xf32>
    %40 = arith.addf %38, %39 : vector<2x256xf32>
    %41 = math.absf %40 : vector<2x256xf32>
    %cst_19 = arith.constant 3.125000e-02 : f32
    %42 = vector.broadcast %cst_19 : f32 to vector<2x256xf32>
    %43 = arith.mulf %41, %42 : vector<2x256xf32>
    %44 = arith.fptosi %43 : vector<2x256xf32> to vector<2x256xi32>
    %45 = arith.sitofp %44 : vector<2x256xi32> to vector<2x256xf32>
    %cst_20 = arith.constant 3.200000e+01 : f32
    %46 = vector.broadcast %cst_20 : f32 to vector<2x256xf32>
    %47 = arith.mulf %46, %45 : vector<2x256xf32>
    %48 = arith.subf %41, %47 : vector<2x256xf32>
    %cst_21 = arith.constant 1.600000e+01 : f32
    %49 = vector.broadcast %cst_21 : f32 to vector<2x256xf32>
    %50 = arith.cmpf oge, %48, %49 : vector<2x256xf32>
    %cst_22 = arith.constant 3.200000e+01 : f32
    %51 = vector.broadcast %cst_22 : f32 to vector<2x256xf32>
    %52 = arith.subf %51, %48 : vector<2x256xf32>
    %53 = arith.select %50, %52, %48 : vector<2x256xi1>, vector<2x256xf32>
    %cst_23 = arith.constant 5.000000e-01 : f32
    %54 = vector.broadcast %cst_23 : f32 to vector<2x256xf32>
    %55 = arith.subf %53, %54 : vector<2x256xf32>
    %cst_24 = arith.constant 0.000000e+00 : f32
    %cst_25 = arith.constant 1.500000e+01 : f32
    %56 = vector.broadcast %cst_24 : f32 to vector<2x256xf32>
    %57 = arith.maximumf %56, %55 : vector<2x256xf32>
    %58 = vector.broadcast %cst_25 : f32 to vector<2x256xf32>
    %59 = arith.minimumf %58, %57 : vector<2x256xf32>
    %60 = arith.fptosi %29 : vector<2x256xf32> to vector<2x256xi32>
    %61 = arith.sitofp %60 : vector<2x256xi32> to vector<2x256xf32>
    %62 = arith.fptosi %59 : vector<2x256xf32> to vector<2x256xi32>
    %63 = arith.sitofp %62 : vector<2x256xi32> to vector<2x256xf32>
    %64 = arith.fptosi %61 : vector<2x256xf32> to vector<2x256xi32>
    %65 = arith.fptosi %63 : vector<2x256xf32> to vector<2x256xi32>
    %66 = arith.subf %29, %61 : vector<2x256xf32>
    %67 = arith.subf %59, %63 : vector<2x256xf32>
    %cst_26 = arith.constant 1.000000e+00 : f32
    %68 = vector.broadcast %cst_26 : f32 to vector<2x256xf32>
    %69 = arith.subf %68, %66 : vector<2x256xf32>
    %cst_27 = arith.constant 1.000000e+00 : f32
    %70 = vector.broadcast %cst_27 : f32 to vector<2x256xf32>
    %71 = arith.subf %70, %67 : vector<2x256xf32>
    %c1_i32 = arith.constant 1 : i32
    %72 = vector.broadcast %c1_i32 : i32 to vector<2x256xi32>
    %73 = arith.addi %64, %72 : vector<2x256xi32>
    %c15_i32 = arith.constant 15 : i32
    %74 = vector.broadcast %c15_i32 : i32 to vector<2x256xi32>
    %75 = arith.minsi %73, %74 : vector<2x256xi32>
    %c1_i32_28 = arith.constant 1 : i32
    %76 = vector.broadcast %c1_i32_28 : i32 to vector<2x256xi32>
    %77 = arith.addi %65, %76 : vector<2x256xi32>
    %c15_i32_29 = arith.constant 15 : i32
    %78 = vector.broadcast %c15_i32_29 : i32 to vector<2x256xi32>
    %79 = arith.minsi %77, %78 : vector<2x256xi32>
    %c16_i32 = arith.constant 16 : i32
    %80 = vector.broadcast %c16_i32 : i32 to vector<2x256xi32>
    %81 = arith.muli %65, %80 : vector<2x256xi32>
    %82 = arith.addi %81, %64 : vector<2x256xi32>
    %83 = arith.mulf %71, %69 : vector<2x256xf32>
    %c16_i32_30 = arith.constant 16 : i32
    %84 = vector.broadcast %c16_i32_30 : i32 to vector<2x256xi32>
    %85 = arith.muli %65, %84 : vector<2x256xi32>
    %86 = arith.addi %85, %75 : vector<2x256xi32>
    %87 = arith.mulf %71, %66 : vector<2x256xf32>
    %c16_i32_31 = arith.constant 16 : i32
    %88 = vector.broadcast %c16_i32_31 : i32 to vector<2x256xi32>
    %89 = arith.muli %79, %88 : vector<2x256xi32>
    %90 = arith.addi %89, %64 : vector<2x256xi32>
    %91 = arith.mulf %67, %69 : vector<2x256xf32>
    %c16_i32_32 = arith.constant 16 : i32
    %92 = vector.broadcast %c16_i32_32 : i32 to vector<2x256xi32>
    %93 = arith.muli %79, %92 : vector<2x256xi32>
    %94 = arith.addi %93, %75 : vector<2x256xi32>
    %95 = arith.mulf %67, %66 : vector<2x256xf32>
    %96 = tpu.iota {dimensions = array<i32: 0>} : vector<256x256xi32>
    %97 = vector.extract_strided_slice %82 {offsets = [0, 0], sizes = [1, 256], strides = [1, 1]} : vector<2x256xi32> to vector<1x256xi32>
    %98 = vector.broadcast %97 : vector<1x256xi32> to vector<256x256xi32>
    %99 = arith.cmpi eq, %98, %96 : vector<256x256xi32>
    %100 = vector.extract_strided_slice %83 {offsets = [0, 0], sizes = [1, 256], strides = [1, 1]} : vector<2x256xf32> to vector<1x256xf32>
    %cst_33 = arith.constant 0.000000e+00 : f32
    %101 = vector.shape_cast %100 : vector<1x256xf32> to vector<1x256xf32>
    %102 = vector.broadcast %101 : vector<1x256xf32> to vector<256x256xf32>
    %103 = vector.broadcast %cst_33 : f32 to vector<256x256xf32>
    %104 = arith.select %99, %102, %103 : vector<256x256xi1>, vector<256x256xf32>
    %105 = vector.extract_strided_slice %86 {offsets = [0, 0], sizes = [1, 256], strides = [1, 1]} : vector<2x256xi32> to vector<1x256xi32>
    %106 = vector.broadcast %105 : vector<1x256xi32> to vector<256x256xi32>
    %107 = arith.cmpi eq, %106, %96 : vector<256x256xi32>
    %108 = vector.extract_strided_slice %87 {offsets = [0, 0], sizes = [1, 256], strides = [1, 1]} : vector<2x256xf32> to vector<1x256xf32>
    %cst_34 = arith.constant 0.000000e+00 : f32
    %109 = vector.shape_cast %108 : vector<1x256xf32> to vector<1x256xf32>
    %110 = vector.broadcast %109 : vector<1x256xf32> to vector<256x256xf32>
    %111 = vector.broadcast %cst_34 : f32 to vector<256x256xf32>
    %112 = arith.select %107, %110, %111 : vector<256x256xi1>, vector<256x256xf32>
    %113 = arith.addf %104, %112 : vector<256x256xf32>
    %114 = vector.extract_strided_slice %90 {offsets = [0, 0], sizes = [1, 256], strides = [1, 1]} : vector<2x256xi32> to vector<1x256xi32>
    %115 = vector.broadcast %114 : vector<1x256xi32> to vector<256x256xi32>
    %116 = arith.cmpi eq, %115, %96 : vector<256x256xi32>
    %117 = vector.extract_strided_slice %91 {offsets = [0, 0], sizes = [1, 256], strides = [1, 1]} : vector<2x256xf32> to vector<1x256xf32>
    %cst_35 = arith.constant 0.000000e+00 : f32
    %118 = vector.shape_cast %117 : vector<1x256xf32> to vector<1x256xf32>
    %119 = vector.broadcast %118 : vector<1x256xf32> to vector<256x256xf32>
    %120 = vector.broadcast %cst_35 : f32 to vector<256x256xf32>
    %121 = arith.select %116, %119, %120 : vector<256x256xi1>, vector<256x256xf32>
    %122 = arith.addf %113, %121 : vector<256x256xf32>
    %123 = vector.extract_strided_slice %94 {offsets = [0, 0], sizes = [1, 256], strides = [1, 1]} : vector<2x256xi32> to vector<1x256xi32>
    %124 = vector.broadcast %123 : vector<1x256xi32> to vector<256x256xi32>
    %125 = arith.cmpi eq, %124, %96 : vector<256x256xi32>
    %126 = vector.extract_strided_slice %95 {offsets = [0, 0], sizes = [1, 256], strides = [1, 1]} : vector<2x256xf32> to vector<1x256xf32>
    %cst_36 = arith.constant 0.000000e+00 : f32
    %127 = vector.shape_cast %126 : vector<1x256xf32> to vector<1x256xf32>
    %128 = vector.broadcast %127 : vector<1x256xf32> to vector<256x256xf32>
    %129 = vector.broadcast %cst_36 : f32 to vector<256x256xf32>
    %130 = arith.select %125, %128, %129 : vector<256x256xi1>, vector<256x256xf32>
    %131 = arith.addf %122, %130 : vector<256x256xf32>
    %c0_37 = arith.constant 0 : index
    %c0_38 = arith.constant 0 : index
    %132 = vector.load %arg3[%c0_37, %c0_38] : memref<16x256xf32, #tpu.memory_space<vmem>>, vector<8x256xf32>
    %cst_39 = arith.constant dense<0.000000e+00> : vector<8x256xf32>
    %133 = tpu.matmul %132, %131, %cst_39 {dimension_numbers = #tpu.dot_dimension_numbers<[1], [0], [0], [1], [0, 0, 1, 1], [], []>} : vector<8x256xf32>, vector<256x256xf32>, vector<8x256xf32> -> vector<8x256xf32>
    %134 = vector.extract_strided_slice %133 {offsets = [0, 0], sizes = [1, 256], strides = [1, 1]} : vector<8x256xf32> to vector<1x256xf32>
    %135 = vector.extract_strided_slice %82 {offsets = [1, 0], sizes = [1, 256], strides = [1, 1]} : vector<2x256xi32> to vector<1x256xi32>
    %136 = vector.broadcast %135 : vector<1x256xi32> to vector<256x256xi32>
    %137 = arith.cmpi eq, %136, %96 : vector<256x256xi32>
    %138 = vector.extract_strided_slice %83 {offsets = [1, 0], sizes = [1, 256], strides = [1, 1]} : vector<2x256xf32> to vector<1x256xf32>
    %cst_40 = arith.constant 0.000000e+00 : f32
    %139 = vector.shape_cast %138 : vector<1x256xf32> to vector<1x256xf32>
    %140 = vector.broadcast %139 : vector<1x256xf32> to vector<256x256xf32>
    %141 = vector.broadcast %cst_40 : f32 to vector<256x256xf32>
    %142 = arith.select %137, %140, %141 : vector<256x256xi1>, vector<256x256xf32>
    %143 = vector.extract_strided_slice %86 {offsets = [1, 0], sizes = [1, 256], strides = [1, 1]} : vector<2x256xi32> to vector<1x256xi32>
    %144 = vector.broadcast %143 : vector<1x256xi32> to vector<256x256xi32>
    %145 = arith.cmpi eq, %144, %96 : vector<256x256xi32>
    %146 = vector.extract_strided_slice %87 {offsets = [1, 0], sizes = [1, 256], strides = [1, 1]} : vector<2x256xf32> to vector<1x256xf32>
    %cst_41 = arith.constant 0.000000e+00 : f32
    %147 = vector.shape_cast %146 : vector<1x256xf32> to vector<1x256xf32>
    %148 = vector.broadcast %147 : vector<1x256xf32> to vector<256x256xf32>
    %149 = vector.broadcast %cst_41 : f32 to vector<256x256xf32>
    %150 = arith.select %145, %148, %149 : vector<256x256xi1>, vector<256x256xf32>
    %151 = arith.addf %142, %150 : vector<256x256xf32>
    %152 = vector.extract_strided_slice %90 {offsets = [1, 0], sizes = [1, 256], strides = [1, 1]} : vector<2x256xi32> to vector<1x256xi32>
    %153 = vector.broadcast %152 : vector<1x256xi32> to vector<256x256xi32>
    %154 = arith.cmpi eq, %153, %96 : vector<256x256xi32>
    %155 = vector.extract_strided_slice %91 {offsets = [1, 0], sizes = [1, 256], strides = [1, 1]} : vector<2x256xf32> to vector<1x256xf32>
    %cst_42 = arith.constant 0.000000e+00 : f32
    %156 = vector.shape_cast %155 : vector<1x256xf32> to vector<1x256xf32>
    %157 = vector.broadcast %156 : vector<1x256xf32> to vector<256x256xf32>
    %158 = vector.broadcast %cst_42 : f32 to vector<256x256xf32>
    %159 = arith.select %154, %157, %158 : vector<256x256xi1>, vector<256x256xf32>
    %160 = arith.addf %151, %159 : vector<256x256xf32>
    %161 = vector.extract_strided_slice %94 {offsets = [1, 0], sizes = [1, 256], strides = [1, 1]} : vector<2x256xi32> to vector<1x256xi32>
    %162 = vector.broadcast %161 : vector<1x256xi32> to vector<256x256xi32>
    %163 = arith.cmpi eq, %162, %96 : vector<256x256xi32>
    %164 = vector.extract_strided_slice %95 {offsets = [1, 0], sizes = [1, 256], strides = [1, 1]} : vector<2x256xf32> to vector<1x256xf32>
    %cst_43 = arith.constant 0.000000e+00 : f32
    %165 = vector.shape_cast %164 : vector<1x256xf32> to vector<1x256xf32>
    %166 = vector.broadcast %165 : vector<1x256xf32> to vector<256x256xf32>
    %167 = vector.broadcast %cst_43 : f32 to vector<256x256xf32>
    %168 = arith.select %163, %166, %167 : vector<256x256xi1>, vector<256x256xf32>
    %169 = arith.addf %160, %168 : vector<256x256xf32>
    %c8 = arith.constant 8 : index
    %c0_44 = arith.constant 0 : index
    %170 = vector.load %arg3[%c8, %c0_44] : memref<16x256xf32, #tpu.memory_space<vmem>>, vector<8x256xf32>
    %cst_45 = arith.constant dense<0.000000e+00> : vector<8x256xf32>
    %171 = tpu.matmul %170, %169, %cst_45 {dimension_numbers = #tpu.dot_dimension_numbers<[1], [0], [0], [1], [0, 0, 1, 1], [], []>} : vector<8x256xf32>, vector<256x256xf32>, vector<8x256xf32> -> vector<8x256xf32>
    %172 = vector.extract_strided_slice %171 {offsets = [0, 0], sizes = [1, 256], strides = [1, 1]} : vector<8x256xf32> to vector<1x256xf32>
    %173 = tpu.concatenate %134, %172 in 0 : vector<1x256xf32>, vector<1x256xf32> -> vector<2x256xf32>
    %174 = arith.truncf %173 : vector<2x256xf32> to vector<2x256xbf16>
    %c0_46 = arith.constant 0 : index
    %c0_47 = arith.constant 0 : index
    %175 = vector.load %arg5[%c0_46, %c0_47] : memref<256x448xbf16, #tpu.memory_space<vmem>>, vector<256x448xbf16>
    %c0_48 = arith.constant 0 : index
    %c0_49 = arith.constant 0 : index
    %176 = vector.load %arg6[%c0_48, %c0_49] : memref<1x448xf32, #tpu.memory_space<vmem>>, vector<1x448xf32>
    %cst_50 = arith.constant dense<0.000000e+00> : vector<2x448xf32>
    %177 = tpu.matmul %174, %175, %cst_50 {dimension_numbers = #tpu.dot_dimension_numbers<[1], [0], [0], [1], [0, 0, 1, 1], [], []>} : vector<2x256xbf16>, vector<256x448xbf16>, vector<2x448xf32> -> vector<2x448xf32>
    %178 = vector.broadcast %176 : vector<1x448xf32> to vector<2x448xf32>
    %179 = arith.addf %177, %178 : vector<2x448xf32>
    %cst_51 = arith.constant 0.000000e+00 : f32
    %180 = vector.broadcast %cst_51 : f32 to vector<2x448xf32>
    %181 = arith.maximumf %179, %180 : vector<2x448xf32>
    %182 = arith.truncf %181 : vector<2x448xf32> to vector<2x448xbf16>
    %c0_52 = arith.constant 0 : index
    %c0_53 = arith.constant 0 : index
    %183 = vector.load %arg7[%c0_52, %c0_53] : memref<448x112xbf16, #tpu.memory_space<vmem>>, vector<448x112xbf16>
    %c0_54 = arith.constant 0 : index
    %c0_55 = arith.constant 0 : index
    %184 = vector.load %arg8[%c0_54, %c0_55] : memref<1x112xf32, #tpu.memory_space<vmem>>, vector<1x112xf32>
    %cst_56 = arith.constant dense<0.000000e+00> : vector<2x112xf32>
    %185 = tpu.matmul %182, %183, %cst_56 {dimension_numbers = #tpu.dot_dimension_numbers<[1], [0], [0], [1], [0, 0, 1, 1], [], []>} : vector<2x448xbf16>, vector<448x112xbf16>, vector<2x112xf32> -> vector<2x112xf32>
    %186 = vector.broadcast %184 : vector<1x112xf32> to vector<2x112xf32>
    %187 = arith.addf %185, %186 : vector<2x112xf32>
    %cst_57 = arith.constant 0.000000e+00 : f32
    %188 = vector.broadcast %cst_57 : f32 to vector<2x112xf32>
    %189 = arith.maximumf %187, %188 : vector<2x112xf32>
    %190 = arith.truncf %189 : vector<2x112xf32> to vector<2x112xbf16>
    %c0_58 = arith.constant 0 : index
    %c0_59 = arith.constant 0 : index
    %191 = vector.load %arg9[%c0_58, %c0_59] : memref<112x28xbf16, #tpu.memory_space<vmem>>, vector<112x28xbf16>
    %c0_60 = arith.constant 0 : index
    %c0_61 = arith.constant 0 : index
    %192 = vector.load %arg10[%c0_60, %c0_61] : memref<1x28xf32, #tpu.memory_space<vmem>>, vector<1x28xf32>
    %cst_62 = arith.constant dense<0.000000e+00> : vector<2x28xf32>
    %193 = tpu.matmul %190, %191, %cst_62 {dimension_numbers = #tpu.dot_dimension_numbers<[1], [0], [0], [1], [0, 0, 1, 1], [], []>} : vector<2x112xbf16>, vector<112x28xbf16>, vector<2x28xf32> -> vector<2x28xf32>
    %194 = vector.broadcast %192 : vector<1x28xf32> to vector<2x28xf32>
    %195 = arith.addf %193, %194 : vector<2x28xf32>
    %cst_63 = arith.constant 0.000000e+00 : f32
    %196 = vector.broadcast %cst_63 : f32 to vector<2x28xf32>
    %197 = arith.maximumf %195, %196 : vector<2x28xf32>
    %198 = arith.truncf %197 : vector<2x28xf32> to vector<2x28xbf16>
    %c0_64 = arith.constant 0 : index
    %c0_65 = arith.constant 0 : index
    %199 = vector.load %arg11[%c0_64, %c0_65] : memref<28x160xbf16, #tpu.memory_space<vmem>>, vector<28x160xbf16>
    %cst_66 = arith.constant dense<0.000000e+00> : vector<2x160xf32>
    %200 = tpu.matmul %198, %199, %cst_66 {dimension_numbers = #tpu.dot_dimension_numbers<[1], [0], [0], [1], [0, 0, 1, 1], [], []>} : vector<2x28xbf16>, vector<28x160xbf16>, vector<2x160xf32> -> vector<2x160xf32>
    %c0_67 = arith.constant 0 : index
    %c0_68 = arith.constant 0 : index
    %201 = vector.load %arg12[%c0_67, %c0_68] : memref<1x160xf32, #tpu.memory_space<vmem>>, vector<1x160xf32>
    %202 = vector.broadcast %201 : vector<1x160xf32> to vector<2x160xf32>
    %203 = arith.addf %200, %202 : vector<2x160xf32>
    %204 = vector.extract_strided_slice %203 {offsets = [0, 0], sizes = [2, 32], strides = [1, 1]} : vector<2x160xf32> to vector<2x32xf32>
    %205 = vector.extract_strided_slice %203 {offsets = [0, 128], sizes = [2, 32], strides = [1, 1]} : vector<2x160xf32> to vector<2x32xf32>
    %c0_69 = arith.constant 0 : index
    %c0_70 = arith.constant 0 : index
    %206 = vector.load %arg4[%c0_69, %c0_70] : memref<2x32xf32, #tpu.memory_space<vmem>>, vector<2x32xf32>
    %cst_71 = arith.constant 5.000000e-01 : f32
    %207 = vector.broadcast %cst_71 : f32 to vector<2x32xf32>
    %208 = arith.mulf %207, %205 : vector<2x32xf32>
    %209 = math.exp %208 : vector<2x32xf32>
    %210 = arith.mulf %206, %209 : vector<2x32xf32>
    %211 = arith.addf %204, %210 : vector<2x32xf32>
    %c0_72 = arith.constant 0 : index
    %c0_73 = arith.constant 0 : index
    %212 = vector.load %arg13[%c0_72, %c0_73] : memref<1x32xf32, #tpu.memory_space<vmem>>, vector<1x32xf32>
    %213 = vector.broadcast %212 : vector<1x32xf32> to vector<2x32xf32>
    %214 = arith.maximumf %211, %213 : vector<2x32xf32>
    %c0_74 = arith.constant 0 : index
    %c0_75 = arith.constant 0 : index
    %215 = vector.load %arg14[%c0_74, %c0_75] : memref<1x32xf32, #tpu.memory_space<vmem>>, vector<1x32xf32>
    %216 = vector.broadcast %215 : vector<1x32xf32> to vector<2x32xf32>
    %217 = arith.minimumf %214, %216 : vector<2x32xf32>
    %218 = arith.truncf %217 : vector<2x32xf32> to vector<2x32xbf16>
    %c0_76 = arith.constant 0 : index
    %c0_77 = arith.constant 0 : index
    %219 = vector.load %arg15[%c0_76, %c0_77] : memref<32x64xbf16, #tpu.memory_space<vmem>>, vector<32x64xbf16>
    %c0_78 = arith.constant 0 : index
    %c0_79 = arith.constant 0 : index
    %220 = vector.load %arg16[%c0_78, %c0_79] : memref<1x64xf32, #tpu.memory_space<vmem>>, vector<1x64xf32>
    %cst_80 = arith.constant dense<0.000000e+00> : vector<2x64xf32>
    %221 = tpu.matmul %218, %219, %cst_80 {dimension_numbers = #tpu.dot_dimension_numbers<[1], [0], [0], [1], [0, 0, 1, 1], [], []>} : vector<2x32xbf16>, vector<32x64xbf16>, vector<2x64xf32> -> vector<2x64xf32>
    %222 = vector.broadcast %220 : vector<1x64xf32> to vector<2x64xf32>
    %223 = arith.addf %221, %222 : vector<2x64xf32>
    %cst_81 = arith.constant 0.000000e+00 : f32
    %224 = vector.broadcast %cst_81 : f32 to vector<2x64xf32>
    %225 = arith.maximumf %223, %224 : vector<2x64xf32>
    %226 = arith.truncf %225 : vector<2x64xf32> to vector<2x64xbf16>
    %c0_82 = arith.constant 0 : index
    %c0_83 = arith.constant 0 : index
    %227 = vector.load %arg17[%c0_82, %c0_83] : memref<64x256xbf16, #tpu.memory_space<vmem>>, vector<64x256xbf16>
    %cst_84 = arith.constant dense<0.000000e+00> : vector<2x256xf32>
    %228 = tpu.matmul %226, %227, %cst_84 {dimension_numbers = #tpu.dot_dimension_numbers<[1], [0], [0], [1], [0, 0, 1, 1], [], []>} : vector<2x64xbf16>, vector<64x256xbf16>, vector<2x256xf32> -> vector<2x256xf32>
    %c0_85 = arith.constant 0 : index
    %c0_86 = arith.constant 0 : index
    %229 = vector.load %arg18[%c0_85, %c0_86] : memref<1x256xf32, #tpu.memory_space<vmem>>, vector<1x256xf32>
    %230 = vector.broadcast %229 : vector<1x256xf32> to vector<2x256xf32>
    %231 = arith.addf %228, %230 : vector<2x256xf32>
    %cst_87 = arith.constant 0.000000e+00 : f32
    %232 = vector.broadcast %cst_87 : f32 to vector<2x256xf32>
    %233 = arith.subf %232, %231 : vector<2x256xf32>
    %234 = math.exp %233 : vector<2x256xf32>
    %cst_88 = arith.constant 1.000000e+00 : f32
    %235 = vector.broadcast %cst_88 : f32 to vector<2x256xf32>
    %236 = arith.addf %235, %234 : vector<2x256xf32>
    %cst_89 = arith.constant 1.000000e+00 : f32
    %237 = vector.broadcast %cst_89 : f32 to vector<2x256xf32>
    %238 = arith.divf %237, %236 : vector<2x256xf32>
    %c0_90 = arith.constant 0 : index
    %c0_91 = arith.constant 0 : index
    %239 = vector.load %arg19[%c0_90, %c0_91] : memref<2x256xf32, #tpu.memory_space<vmem>>, vector<2x256xf32>
    tpu.vector_store %arg19[%c0_90, %c0_91], %238 {strides = array<i32>} : memref<2x256xf32, #tpu.memory_space<vmem>>, vector<2x256xf32>,
    return
  }
  func.func @transform_0(%arg0: i32) -> (i32, i32) {
    %c0_i32 = arith.constant 0 : i32
    %c0_i32_0 = arith.constant 0 : i32
    %c0_i32_1 = arith.constant 0 : i32
    return %c0_i32, %c0_i32_0 : i32, i32
  }
  func.func @transform_1(%arg0: i32) -> (i32, i32) {
    %c0_i32 = arith.constant 0 : i32
    %c0_i32_0 = arith.constant 0 : i32
    %c0_i32_1 = arith.constant 0 : i32
    return %c0_i32, %c0_i32_0 : i32, i32
  }
  func.func @transform_2(%arg0: i32) -> (i32, i32) {
    %c0_i32 = arith.constant 0 : i32
    %c0_i32_0 = arith.constant 0 : i32
    %c0_i32_1 = arith.constant 0 : i32
    return %c0_i32, %c0_i32_0 : i32, i32
  }
  func.func @transform_3(%arg0: i32) -> (i32, i32) {
    %c0_i32 = arith.constant 0 : i32
    %c0_i32_0 = arith.constant 0 : i32
    %c0_i32_1 = arith.constant 0 : i32
    return %c0_i32, %c0_i32_0 : i32, i32
  }
  func.func @transform_4(%arg0: i32) -> (i32, i32) {
    %c0_i32 = arith.constant 0 : i32
    %c0_i32_0 = arith.constant 0 : i32
    %c0_i32_1 = arith.constant 0 : i32
    return %c0_i32, %c0_i32_0 : i32, i32
  }
  func.func @transform_5(%arg0: i32) -> (i32, i32) {
    %c0_i32 = arith.constant 0 : i32
    %c0_i32_0 = arith.constant 0 : i32
    %c0_i32_1 = arith.constant 0 : i32
    return %c0_i32, %c0_i32_0 : i32, i32
  }
  func.func @transform_6(%arg0: i32) -> (i32, i32) {
    %c0_i32 = arith.constant 0 : i32
    %c0_i32_0 = arith.constant 0 : i32
    %c0_i32_1 = arith.constant 0 : i32
    return %c0_i32, %c0_i32_0 : i32, i32
  }
  func.func @transform_7(%arg0: i32) -> (i32, i32) {
    %c0_i32 = arith.constant 0 : i32
    %c0_i32_0 = arith.constant 0 : i32
    %c0_i32_1 = arith.constant 0 : i32
    return %c0_i32, %c0_i32_0 : i32, i32
  }
  func.func @transform_8(%arg0: i32) -> (i32, i32) {
    %c0_i32 = arith.constant 0 : i32
    %c0_i32_0 = arith.constant 0 : i32
    %c0_i32_1 = arith.constant 0 : i32
    return %c0_i32, %c0_i32_0 : i32, i32
  }
  func.func @transform_9(%arg0: i32) -> (i32, i32) {
    %c0_i32 = arith.constant 0 : i32
    %c0_i32_0 = arith.constant 0 : i32
    %c0_i32_1 = arith.constant 0 : i32
    return %c0_i32, %c0_i32_0 : i32, i32
  }
  func.func @transform_10(%arg0: i32) -> (i32, i32) {
    %c0_i32 = arith.constant 0 : i32
    %c0_i32_0 = arith.constant 0 : i32
    %c0_i32_1 = arith.constant 0 : i32
    return %c0_i32, %c0_i32_0 : i32, i32
  }
  func.func @transform_11(%arg0: i32) -> (i32, i32) {
    %c0_i32 = arith.constant 0 : i32
    %c0_i32_0 = arith.constant 0 : i32
    %c0_i32_1 = arith.constant 0 : i32
    return %c0_i32, %c0_i32_0 : i32, i32
  }
  func.func @transform_12(%arg0: i32) -> (i32, i32) {
    %c0_i32 = arith.constant 0 : i32
    %c0_i32_0 = arith.constant 0 : i32
    %c0_i32_1 = arith.constant 0 : i32
    return %c0_i32, %c0_i32_0 : i32, i32
  }
  func.func @transform_13(%arg0: i32) -> (i32, i32) {
    %c0_i32 = arith.constant 0 : i32
    %c0_i32_0 = arith.constant 0 : i32
    %c0_i32_1 = arith.constant 0 : i32
    return %c0_i32, %c0_i32_0 : i32, i32
  }
  func.func @transform_14(%arg0: i32) -> (i32, i32) {
    %c0_i32 = arith.constant 0 : i32
    %c0_i32_0 = arith.constant 0 : i32
    %c0_i32_1 = arith.constant 0 : i32
    return %c0_i32, %c0_i32_0 : i32, i32
  }
  func.func @transform_15(%arg0: i32) -> (i32, i32) {
    %c0_i32 = arith.constant 0 : i32
    %c0_i32_0 = arith.constant 0 : i32
    %c0_i32_1 = arith.constant 0 : i32
    return %c0_i32, %c0_i32_0 : i32, i32
  }
  func.func @transform_16(%arg0: i32) -> (i32, i32) {
    %c0_i32 = arith.constant 0 : i32
    %c0_i32_0 = arith.constant 0 : i32
    %c0_i32_1 = arith.constant 0 : i32
    return %c0_i32, %c0_i32_0 : i32, i32
  }
  func.func @transform_17(%arg0: i32) -> (i32, i32) {
    %c0_i32 = arith.constant 0 : i32
    %c0_i32_0 = arith.constant 0 : i32
    %c0_i32_1 = arith.constant 0 : i32
    return %c0_i32, %c0_i32_0 : i32, i32
  }
  func.func @transform_18(%arg0: i32) -> (i32, i32) {
    %c0_i32 = arith.constant 0 : i32
    %c0_i32_0 = arith.constant 0 : i32
    %c0_i32_1 = arith.constant 0 : i32
    return %c0_i32, %c0_i32_0 : i32, i32
  }
}

</mosaic_0001>

<llo_original>
// kernel: vae_forward.2
$region0: #{vae_forward.2}
  #allocation0 [shape = 'u32[]', space=smem, size = 0x4, offset = 0x4, fixed_abs, tag = 'smem constant byte address 0x4 - core index']
  #allocation1 [shape = 'u32[144,128]{1,0:T(1,128)}', space=vmem, size = 0x12000, scoped, tag = 'internal scratch']
  %s0 = inlined_call_operand.vmem [shape: bf16[2,256], index: 0, kind: input, shape index: {}]
  %s1 = inlined_call_operand.vmem [shape: bf16[256,448], index: 1, kind: input, shape index: {}]
  %s2 = inlined_call_operand.vmem [shape: f32[1,448], index: 2, kind: input, shape index: {}]
  %s3 = inlined_call_operand.vmem [shape: bf16[448,112], index: 3, kind: input, shape index: {}]
  %s4 = inlined_call_operand.vmem [shape: f32[1,112], index: 4, kind: input, shape index: {}]
  %s5 = inlined_call_operand.vmem [shape: bf16[112,28], index: 5, kind: input, shape index: {}]
  %s6 = inlined_call_operand.vmem [shape: f32[1,28], index: 6, kind: input, shape index: {}]
  %s7 = inlined_call_operand.vmem [shape: bf16[28,32], index: 7, kind: input, shape index: {}]
  %s8 = inlined_call_operand.vmem [shape: f32[1,32], index: 8, kind: input, shape index: {}]
  %s9 = inlined_call_operand.vmem [shape: bf16[32,32], index: 9, kind: input, shape index: {}]
  %s10 = inlined_call_operand.vmem [shape: f32[1,32], index: 10, kind: input, shape index: {}]
  %s11 = inlined_call_operand.vmem [shape: bf16[32,8], index: 11, kind: input, shape index: {}]
  %s12 = inlined_call_operand.vmem [shape: f32[1,8], index: 12, kind: input, shape index: {}]
  %s13 = inlined_call_operand.vmem [shape: f32[2,8], index: 13, kind: output, shape index: {}]
  %s14 = sld [smem:[#allocation0]]
  $region62: #{vae_forward.2} parent=0
    _
  %s16 = ssub.s32 1, %s14
  %s17 = scalar_select 0, %s16, %s14
  // Predicated region
  $region2: #{vae_forward.2} parent=0 // pred_check
    _
  $region3: #{vae_forward.2} parent=0 // pred_check_branch
    %19 = sbr.rel (0) target = $region5
  $region4: #{vae_forward.2} parent=0 // pred_region
    _
  $region5: #{vae_forward.2} parent=0 // pred_fallthru
    _
  // Predicated region
  $region6: #{vae_forward.2} parent=0 // pred_check
    _
  $region7: #{vae_forward.2} parent=0 // pred_check_branch
    %21 = sbr.rel (0) target = $region9
  $region8: #{vae_forward.2} parent=0 // pred_region
    _
  $region9: #{vae_forward.2} parent=0 // pred_fallthru
    _
  // Predicated region
  $region10: #{vae_forward.2} parent=0 // pred_check
    _
  $region11: #{vae_forward.2} parent=0 // pred_check_branch
    %23 = sbr.rel (0) target = $region13
  $region12: #{vae_forward.2} parent=0 // pred_region
    _
  $region13: #{vae_forward.2} parent=0 // pred_fallthru
    _
  // Predicated region
  $region14: #{vae_forward.2} parent=0 // pred_check
    _
  $region15: #{vae_forward.2} parent=0 // pred_check_branch
    %25 = sbr.rel (0) target = $region17
  $region16: #{vae_forward.2} parent=0 // pred_region
    _
  $region17: #{vae_forward.2} parent=0 // pred_fallthru
    _
  // Predicated region
  $region18: #{vae_forward.2} parent=0 // pred_check
    _
  $region19: #{vae_forward.2} parent=0 // pred_check_branch
    %27 = sbr.rel (0) target = $region21
  $region20: #{vae_forward.2} parent=0 // pred_region
    _
  $region21: #{vae_forward.2} parent=0 // pred_fallthru
    _
  // Predicated region
  $region22: #{vae_forward.2} parent=0 // pred_check
    _
  $region23: #{vae_forward.2} parent=0 // pred_check_branch
    %29 = sbr.rel (0) target = $region25
  $region24: #{vae_forward.2} parent=0 // pred_region
    _
  $region25: #{vae_forward.2} parent=0 // pred_fallthru
    _
  // Predicated region
  $region26: #{vae_forward.2} parent=0 // pred_check
    _
  $region27: #{vae_forward.2} parent=0 // pred_check_branch
    %31 = sbr.rel (0) target = $region29
  $region28: #{vae_forward.2} parent=0 // pred_region
    _
  $region29: #{vae_forward.2} parent=0 // pred_fallthru
    _
  // Predicated region
  $region30: #{vae_forward.2} parent=0 // pred_check
    _
  $region31: #{vae_forward.2} parent=0 // pred_check_branch
    %33 = sbr.rel (0) target = $region33
  $region32: #{vae_forward.2} parent=0 // pred_region
    _
  $region33: #{vae_forward.2} parent=0 // pred_fallthru
    _
  // Predicated region
  $region34: #{vae_forward.2} parent=0 // pred_check
    _
  $region35: #{vae_forward.2} parent=0 // pred_check_branch
    %35 = sbr.rel (0) target = $region37
  $region36: #{vae_forward.2} parent=0 // pred_region
    _
  $region37: #{vae_forward.2} parent=0 // pred_fallthru
    _
  // Predicated region
  $region38: #{vae_forward.2} parent=0 // pred_check
    _
  $region39: #{vae_forward.2} parent=0 // pred_check_branch
    %37 = sbr.rel (0) target = $region41
  $region40: #{vae_forward.2} parent=0 // pred_region
    _
  $region41: #{vae_forward.2} parent=0 // pred_fallthru
    _
  // Predicated region
  $region42: #{vae_forward.2} parent=0 // pred_check
    _
  $region43: #{vae_forward.2} parent=0 // pred_check_branch
    %39 = sbr.rel (0) target = $region45
  $region44: #{vae_forward.2} parent=0 // pred_region
    _
  $region45: #{vae_forward.2} parent=0 // pred_fallthru
    _
  // Predicated region
  $region46: #{vae_forward.2} parent=0 // pred_check
    _
  $region47: #{vae_forward.2} parent=0 // pred_check_branch
    %41 = sbr.rel (0) target = $region49
  $region48: #{vae_forward.2} parent=0 // pred_region
    _
  $region49: #{vae_forward.2} parent=0 // pred_fallthru
    _
  // Predicated region
  $region50: #{vae_forward.2} parent=0 // pred_check
    _
  $region51: #{vae_forward.2} parent=0 // pred_check_branch
    %43 = sbr.rel (0) target = $region53
  $region52: #{vae_forward.2} parent=0 // pred_region
    _
  $region53: #{vae_forward.2} parent=0 // pred_fallthru
    _
  %v45 = vld [vmem:[%s0] sm:$0x3]
  %v46 = vld [vmem:[%s1] sm:$0xff]
  %v47 = vld [vmem:[%s1 + $0x8] sm:$0xff]
  %v48 = vld [vmem:[%s1 + $0x10] sm:$0xff]
  %v49 = vld [vmem:[%s1 + $0x18] sm:$0xff]
  %v50 = vld [vmem:[%s1 + $0x20] sm:$0xff]
  %v51 = vld [vmem:[%s1 + $0x28] sm:$0xff]
  %v52 = vld [vmem:[%s1 + $0x30] sm:$0xff]
  %v53 = vld [vmem:[%s1 + $0x38] sm:$0xff]
  %v54 = vld [vmem:[%s1 + $0x40] sm:$0xff]
  %v55 = vld [vmem:[%s1 + $0x48] sm:$0xff]
  %v56 = vld [vmem:[%s1 + $0x50] sm:$0xff]
  %v57 = vld [vmem:[%s1 + $0x58] sm:$0xff]
  %v58 = vld [vmem:[%s1 + $0x60] sm:$0xff]
  %v59 = vld [vmem:[%s1 + $0x68] sm:$0xff]
  %v60 = vld [vmem:[%s1 + $0x70] sm:$0xff]
  %v61 = vld [vmem:[%s1 + $0x78] sm:$0xff]
  %v62 = vld [vmem:[%s1 + $0x80] sm:$0xff]
  %v63 = vld [vmem:[%s1 + $0x88] sm:$0xff]
  %v64 = vld [vmem:[%s1 + $0x90] sm:$0xff]
  %v65 = vld [vmem:[%s1 + $0x98] sm:$0xff]
  %v66 = vld [vmem:[%s1 + $0xa0] sm:$0xff]
  %v67 = vld [vmem:[%s1 + $0xa8] sm:$0xff]
  %v68 = vld [vmem:[%s1 + $0xb0] sm:$0xff]
  %v69 = vld [vmem:[%s1 + $0xb8] sm:$0xff]
  %v70 = vld [vmem:[%s1 + $0xc0] sm:$0xff]
  %v71 = vld [vmem:[%s1 + $0xc8] sm:$0xff]
  %v72 = vld [vmem:[%s1 + $0xd0] sm:$0xff]
  %v73 = vld [vmem:[%s1 + $0xd8] sm:$0xff]
  %v74 = vld [vmem:[%s1 + $0xe0] sm:$0xff]
  %v75 = vld [vmem:[%s1 + $0xe8] sm:$0xff]
  %v76 = vld [vmem:[%s1 + $0xf0] sm:$0xff]
  %v77 = vld [vmem:[%s1 + $0xf8] sm:$0xff]
  %v78 = vld [vmem:[%s1 + $0x100] sm:$0xff]
  %v79 = vld [vmem:[%s1 + $0x108] sm:$0xff]
  %v80 = vld [vmem:[%s1 + $0x110] sm:$0xff]
  %v81 = vld [vmem:[%s1 + $0x118] sm:$0xff]
  %v82 = vld [vmem:[%s1 + $0x120] sm:$0xff]
  %v83 = vld [vmem:[%s1 + $0x128] sm:$0xff]
  %v84 = vld [vmem:[%s1 + $0x130] sm:$0xff]
  %v85 = vld [vmem:[%s1 + $0x138] sm:$0xff]
  %v86 = vld [vmem:[%s1 + $0x140] sm:$0xff]
  %v87 = vld [vmem:[%s1 + $0x148] sm:$0xff]
  %v88 = vld [vmem:[%s1 + $0x150] sm:$0xff]
  %v89 = vld [vmem:[%s1 + $0x158] sm:$0xff]
  %v90 = vld [vmem:[%s1 + $0x160] sm:$0xff]
  %v91 = vld [vmem:[%s1 + $0x168] sm:$0xff]
  %v92 = vld [vmem:[%s1 + $0x170] sm:$0xff]
  %v93 = vld [vmem:[%s1 + $0x178] sm:$0xff]
  %v94 = vld [vmem:[%s1 + $0x180] sm:$0xff]
  %v95 = vld [vmem:[%s1 + $0x188] sm:$0xff]
  %v96 = vld [vmem:[%s1 + $0x190] sm:$0xff]
  %v97 = vld [vmem:[%s1 + $0x198] sm:$0xff]
  %v98 = vld [vmem:[%s1 + $0x1a0] sm:$0xff]
  %v99 = vld [vmem:[%s1 + $0x1a8] sm:$0xff]
  %v100 = vld [vmem:[%s1 + $0x1b0] sm:$0xff]
  %v101 = vld [vmem:[%s1 + $0x1b8] sm:$0xff]
  %v102 = vld [vmem:[%s1 + $0x1c0] sm:$0xff]
  %v103 = vld [vmem:[%s1 + $0x1c8] sm:$0xff]
  %v104 = vld [vmem:[%s1 + $0x1d0] sm:$0xff]
  %v105 = vld [vmem:[%s1 + $0x1d8] sm:$0xff]
  %v106 = vld [vmem:[%s1 + $0x1e0] sm:$0xff]
  %v107 = vld [vmem:[%s1 + $0x1e8] sm:$0xff]
  %v108 = vld [vmem:[%s1 + $0x1f0] sm:$0xff]
  %v109 = vld [vmem:[%s1 + $0x1f8] sm:$0xff]
  %v110 = vld [vmem:[%s2] sm:$0xf]
  %v112 = vlaneseq
  %v113 = vshrl.u32 %v112, 7
  %v114 = vsub.s32 0, %v113
  %v115 = vrot.slane %v110, %v114
  %v116 = vlaneseq
  %v117 = vshrl.u32 %v116, 7
  %v118 = vsub.s32 1, %v117
  %v119 = vrot.slane %v110, %v118
  %v120 = vlaneseq
  %v121 = vshrl.u32 %v120, 7
  %v122 = vsub.s32 2, %v121
  %v123 = vrot.slane %v110, %v122
  %v124 = vlaneseq
  %v125 = vshrl.u32 %v124, 7
  %v126 = vsub.s32 3, %v125
  %v127 = vrot.slane %v110, %v126
  %v134 = vunpack.c.l.s4 1966171168
  %v135 = vunpack.c.0.s8 %v134
  %v136 = vlaneseq
  %v137 = vshrl.u32 %v136, 7
  %v138 = vsub.s32 %v135, %v137
  %v139 = vrot.slane %v45, %v138
  %v140 = vcombine.high %v139, %v139
  %v142 = vunpack.c.l.s4 1966171168
  %v143 = vunpack.c.0.s8 %v142
  %v144 = vlaneseq
  %v145 = vshrl.u32 %v144, 7
  %v146 = vsub.s32 %v143, %v145
  %v147 = vrot.slane %v139, %v146
  %v149 = vunpack.c.l.s4 1966171168
  %v150 = vunpack.c.0.s8 %v149
  %v151 = vlaneseq
  %v152 = vshrl.u32 %v151, 7
  %v153 = vsub.s32 %v150, %v152
  %v154 = vrot.slane %v140, %v153
  %v221 = vunpack.c.l.b16 %v46
  %v222 = vunpack.c.h.b16 %v46
  %v223 = vunpack.c.l.b16 %v47
  %v224 = vunpack.c.h.b16 %v47
  %v225 = vunpack.c.l.b16 %v48
  %v226 = vunpack.c.h.b16 %v48
  %v227 = vunpack.c.l.b16 %v49
  %v228 = vunpack.c.h.b16 %v49
  %v229 = vunpack.c.l.b16 %v50
  %v230 = vunpack.c.h.b16 %v50
  %v231 = vunpack.c.l.b16 %v51
  %v232 = vunpack.c.h.b16 %v51
  %v233 = vunpack.c.l.b16 %v52
  %v234 = vunpack.c.h.b16 %v52
  %v235 = vunpack.c.l.b16 %v53
  %v236 = vunpack.c.h.b16 %v53
  %v237 = vunpack.c.l.b16 %v54
  %v238 = vunpack.c.h.b16 %v54
  %v239 = vunpack.c.l.b16 %v55
  %v240 = vunpack.c.h.b16 %v55
  %v241 = vunpack.c.l.b16 %v56
  %v242 = vunpack.c.h.b16 %v56
  %v243 = vunpack.c.l.b16 %v57
  %v244 = vunpack.c.h.b16 %v57
  %v245 = vunpack.c.l.b16 %v58
  %v246 = vunpack.c.h.b16 %v58
  %v247 = vunpack.c.l.b16 %v59
  %v248 = vunpack.c.h.b16 %v59
  %v249 = vunpack.c.l.b16 %v60
  %v250 = vunpack.c.h.b16 %v60
  %v251 = vunpack.c.l.b16 %v61
  %v252 = vunpack.c.h.b16 %v61
  %v253 = vunpack.c.l.b16 %v62
  %v254 = vunpack.c.h.b16 %v62
  %v255 = vunpack.c.l.b16 %v63
  %v256 = vunpack.c.h.b16 %v63
  %v257 = vunpack.c.l.b16 %v64
  %v258 = vunpack.c.h.b16 %v64
  %v259 = vunpack.c.l.b16 %v65
  %v260 = vunpack.c.h.b16 %v65
  %v261 = vunpack.c.l.b16 %v66
  %v262 = vunpack.c.h.b16 %v66
  %v263 = vunpack.c.l.b16 %v67
  %v264 = vunpack.c.h.b16 %v67
  %v265 = vunpack.c.l.b16 %v68
  %v266 = vunpack.c.h.b16 %v68
  %v267 = vunpack.c.l.b16 %v69
  %v268 = vunpack.c.h.b16 %v69
  %v269 = vunpack.c.l.b16 %v70
  %v270 = vunpack.c.h.b16 %v70
  %v271 = vunpack.c.l.b16 %v71
  %v272 = vunpack.c.h.b16 %v71
  %v273 = vunpack.c.l.b16 %v72
  %v274 = vunpack.c.h.b16 %v72
  %v275 = vunpack.c.l.b16 %v73
  %v276 = vunpack.c.h.b16 %v73
  %v277 = vunpack.c.l.b16 %v74
  %v278 = vunpack.c.h.b16 %v74
  %v279 = vunpack.c.l.b16 %v75
  %v280 = vunpack.c.h.b16 %v75
  %v281 = vunpack.c.l.b16 %v76
  %v282 = vunpack.c.h.b16 %v76
  %v283 = vunpack.c.l.b16 %v77
  %v284 = vunpack.c.h.b16 %v77
  %v285 = vunpack.c.l.b16 %v78
  %v286 = vunpack.c.h.b16 %v78
  %v287 = vunpack.c.l.b16 %v79
  %v288 = vunpack.c.h.b16 %v79
  %v289 = vunpack.c.l.b16 %v80
  %v290 = vunpack.c.h.b16 %v80
  %v291 = vunpack.c.l.b16 %v81
  %v292 = vunpack.c.h.b16 %v81
  %v293 = vunpack.c.l.b16 %v82
  %v294 = vunpack.c.h.b16 %v82
  %v295 = vunpack.c.l.b16 %v83
  %v296 = vunpack.c.h.b16 %v83
  %v297 = vunpack.c.l.b16 %v84
  %v298 = vunpack.c.h.b16 %v84
  %v299 = vunpack.c.l.b16 %v85
  %v300 = vunpack.c.h.b16 %v85
  %v301 = vunpack.c.l.b16 %v86
  %v302 = vunpack.c.h.b16 %v86
  %v303 = vunpack.c.l.b16 %v87
  %v304 = vunpack.c.h.b16 %v87
  %v305 = vunpack.c.l.b16 %v88
  %v306 = vunpack.c.h.b16 %v88
  %v307 = vunpack.c.l.b16 %v89
  %v308 = vunpack.c.h.b16 %v89
  %v309 = vunpack.c.l.b16 %v90
  %v310 = vunpack.c.h.b16 %v90
  %v311 = vunpack.c.l.b16 %v91
  %v312 = vunpack.c.h.b16 %v91
  %v313 = vunpack.c.l.b16 %v92
  %v314 = vunpack.c.h.b16 %v92
  %v315 = vunpack.c.l.b16 %v93
  %v316 = vunpack.c.h.b16 %v93
  %v317 = vunpack.c.l.b16 %v94
  %v318 = vunpack.c.h.b16 %v94
  %v319 = vunpack.c.l.b16 %v95
  %v320 = vunpack.c.h.b16 %v95
  %v321 = vunpack.c.l.b16 %v96
  %v322 = vunpack.c.h.b16 %v96
  %v323 = vunpack.c.l.b16 %v97
  %v324 = vunpack.c.h.b16 %v97
  %v325 = vunpack.c.l.b16 %v98
  %v326 = vunpack.c.h.b16 %v98
  %v327 = vunpack.c.l.b16 %v99
  %v328 = vunpack.c.h.b16 %v99
  %v329 = vunpack.c.l.b16 %v100
  %v330 = vunpack.c.h.b16 %v100
  %v331 = vunpack.c.l.b16 %v101
  %v332 = vunpack.c.h.b16 %v101
  %v333 = vunpack.c.l.b16 %v102
  %v334 = vunpack.c.h.b16 %v102
  %v335 = vunpack.c.l.b16 %v103
  %v336 = vunpack.c.h.b16 %v103
  %v337 = vunpack.c.l.b16 %v104
  %v338 = vunpack.c.h.b16 %v104
  %v339 = vunpack.c.l.b16 %v105
  %v340 = vunpack.c.h.b16 %v105
  %v341 = vunpack.c.l.b16 %v106
  %v342 = vunpack.c.h.b16 %v106
  %v343 = vunpack.c.l.b16 %v107
  %v344 = vunpack.c.h.b16 %v107
  %v345 = vunpack.c.l.b16 %v108
  %v346 = vunpack.c.h.b16 %v108
  %v347 = vunpack.c.l.b16 %v109
  %v348 = vunpack.c.h.b16 %v109
  %v349 = vpack.c.b16 %v225, %v221
  %v350 = vpack.c.b16 %v226, %v222
  %v351 = vpack.c.b16 %v227, %v223
  %v352 = vpack.c.b16 %v228, %v224
  %v353 = vpack.c.b16 %v233, %v229
  %v354 = vpack.c.b16 %v234, %v230
  %v355 = vpack.c.b16 %v235, %v231
  %v356 = vpack.c.b16 %v236, %v232
  %v357 = vpack.c.b16 %v241, %v237
  %v358 = vpack.c.b16 %v242, %v238
  %v359 = vpack.c.b16 %v243, %v239
  %v360 = vpack.c.b16 %v244, %v240
  %v361 = vpack.c.b16 %v249, %v245
  %v362 = vpack.c.b16 %v250, %v246
  %v363 = vpack.c.b16 %v251, %v247
  %v364 = vpack.c.b16 %v252, %v248
  %v365 = vpack.c.b16 %v257, %v253
  %v366 = vpack.c.b16 %v258, %v254
  %v367 = vpack.c.b16 %v259, %v255
  %v368 = vpack.c.b16 %v260, %v256
  %v369 = vpack.c.b16 %v265, %v261
  %v370 = vpack.c.b16 %v266, %v262
  %v371 = vpack.c.b16 %v267, %v263
  %v372 = vpack.c.b16 %v268, %v264
  %v373 = vpack.c.b16 %v273, %v269
  %v374 = vpack.c.b16 %v274, %v270
  %v375 = vpack.c.b16 %v275, %v271
  %v376 = vpack.c.b16 %v276, %v272
  %v377 = vpack.c.b16 %v281, %v277
  %v378 = vpack.c.b16 %v282, %v278
  %v379 = vpack.c.b16 %v283, %v279
  %v380 = vpack.c.b16 %v284, %v280
  %v381 = vpack.c.b16 %v289, %v285
  %v382 = vpack.c.b16 %v290, %v286
  %v383 = vpack.c.b16 %v291, %v287
  %v384 = vpack.c.b16 %v292, %v288
  %v385 = vpack.c.b16 %v297, %v293
  %v386 = vpack.c.b16 %v298, %v294
  %v387 = vpack.c.b16 %v299, %v295
  %v388 = vpack.c.b16 %v300, %v296
  %v389 = vpack.c.b16 %v305, %v301
  %v390 = vpack.c.b16 %v306, %v302
  %v391 = vpack.c.b16 %v307, %v303
  %v392 = vpack.c.b16 %v308, %v304
  %v393 = vpack.c.b16 %v313, %v309
  %v394 = vpack.c.b16 %v314, %v310
  %v395 = vpack.c.b16 %v315, %v311
  %v396 = vpack.c.b16 %v316, %v312
  %v397 = vpack.c.b16 %v321, %v317
  %v398 = vpack.c.b16 %v322, %v318
  %v399 = vpack.c.b16 %v323, %v319
  %v400 = vpack.c.b16 %v324, %v320
  %v401 = vpack.c.b16 %v329, %v325
  %v402 = vpack.c.b16 %v330, %v326
  %v403 = vpack.c.b16 %v331, %v327
  %v404 = vpack.c.b16 %v332, %v328
  %v405 = vpack.c.b16 %v337, %v333
  %v406 = vpack.c.b16 %v338, %v334
  %v407 = vpack.c.b16 %v339, %v335
  %v408 = vpack.c.b16 %v340, %v336
  %v409 = vpack.c.b16 %v345, %v341
  %v410 = vpack.c.b16 %v346, %v342
  %v411 = vpack.c.b16 %v347, %v343
  %v412 = vpack.c.b16 %v348, %v344
  %477 = vmatprep.subr.bf16.mxu0 %v350
  %478 = vmatpush1.bf16.msra.mxu0 %v349
  %479 = vmatprep.subr.bf16.mxu0 %v354
  %480 = vmatpush1.bf16.msra.mxu0 %v353
  %481 = vmatprep.subr.bf16.mxu0 %v358
  %482 = vmatpush1.bf16.msra.mxu0 %v357
  %483 = vmatprep.subr.bf16.mxu0 %v362
  %484 = vmatpush1.bf16.msra.mxu0 %v361
  %485 = vmatprep.subr.bf16.mxu0 %v366
  %486 = vmatpush1.bf16.msra.mxu0 %v365
  %487 = vmatprep.subr.bf16.mxu0 %v370
  %488 = vmatpush1.bf16.msra.mxu0 %v369
  %489 = vmatprep.subr.bf16.mxu0 %v374
  %490 = vmatpush1.bf16.msra.mxu0 %v373
  %491 = vmatprep.subr.bf16.mxu0 %v378
  %492 = vmatpush1.bf16.msra.mxu0 %v377
  %493 = vmatprep.subr.bf16.mxu0 %v382
  %494 = vmatpush1.bf16.msra.mxu0 %v381
  %495 = vmatprep.subr.bf16.mxu0 %v386
  %496 = vmatpush1.bf16.msra.mxu0 %v385
  %497 = vmatprep.subr.bf16.mxu0 %v390
  %498 = vmatpush1.bf16.msra.mxu0 %v389
  %499 = vmatprep.subr.bf16.mxu0 %v394
  %500 = vmatpush1.bf16.msra.mxu0 %v393
  %501 = vmatprep.subr.bf16.mxu0 %v398
  %502 = vmatpush1.bf16.msra.mxu0 %v397
  %503 = vmatprep.subr.bf16.mxu0 %v402
  %504 = vmatpush1.bf16.msra.mxu0 %v401
  %505 = vmatprep.subr.bf16.mxu0 %v406
  %506 = vmatpush1.bf16.msra.mxu0 %v405
  %507 = vmatprep.subr.bf16.mxu0 %v410
  %508 = vmatpush1.bf16.msra.mxu0 %v409
  %509 = vmatprep.mubr.bf16.mxu0 %v154
  %510 = vmatmul.mubr.bf16.gmra.mrb[0].mxu0 %v147
  %v511 = vpop.f32.mrb[0].mxu0
  %v512 = vadd.f32 %v115, %v511
  %v513 = vpop.f32.mrb[0].mxu0
  %v514 = vadd.f32 %v119, %v513
  %v515 = vpop.f32.mrb[0].mxu0
  %v516 = vpop.f32.mrb[0].mxu0
  %517 = vdwg.mxu0
  %518 = vmatprep.subr.bf16.mxu0 %v352
  %519 = vmatpush1.bf16.msra.mxu0 %v351
  %520 = vmatprep.subr.bf16.mxu0 %v356
  %521 = vmatpush1.bf16.msra.mxu0 %v355
  %522 = vmatprep.subr.bf16.mxu0 %v360
  %523 = vmatpush1.bf16.msra.mxu0 %v359
  %524 = vmatprep.subr.bf16.mxu0 %v364
  %525 = vmatpush1.bf16.msra.mxu0 %v363
  %526 = vmatprep.subr.bf16.mxu0 %v368
  %527 = vmatpush1.bf16.msra.mxu0 %v367
  %528 = vmatprep.subr.bf16.mxu0 %v372
  %529 = vmatpush1.bf16.msra.mxu0 %v371
  %530 = vmatprep.subr.bf16.mxu0 %v376
  %531 = vmatpush1.bf16.msra.mxu0 %v375
  %532 = vmatprep.subr.bf16.mxu0 %v380
  %533 = vmatpush1.bf16.msra.mxu0 %v379
  %534 = vmatprep.subr.bf16.mxu0 %v384
  %535 = vmatpush1.bf16.msra.mxu0 %v383
  %536 = vmatprep.subr.bf16.mxu0 %v388
  %537 = vmatpush1.bf16.msra.mxu0 %v387
  %538 = vmatprep.subr.bf16.mxu0 %v392
  %539 = vmatpush1.bf16.msra.mxu0 %v391
  %540 = vmatprep.subr.bf16.mxu0 %v396
  %541 = vmatpush1.bf16.msra.mxu0 %v395
  %542 = vmatprep.subr.bf16.mxu0 %v400
  %543 = vmatpush1.bf16.msra.mxu0 %v399
  %544 = vmatprep.subr.bf16.mxu0 %v404
  %545 = vmatpush1.bf16.msra.mxu0 %v403
  %546 = vmatprep.subr.bf16.mxu0 %v408
  %547 = vmatpush1.bf16.msra.mxu0 %v407
  %548 = vmatprep.subr.bf16.mxu0 %v412
  %549 = vmatpush1.bf16.msra.mxu0 %v411
  %550 = vmatprep.mubr.bf16.mxu0 %v154
  %551 = vmatmul.mubr.bf16.gmra.mrb[0].mxu0 %v147
  %v552 = vpop.f32.mrb[0].mxu0
  %v553 = vadd.f32 %v123, %v552
  %v554 = vpop.f32.mrb[0].mxu0
  %v555 = vadd.f32 %v127, %v554
  %v556 = vpop.f32.mrb[0].mxu0
  %v557 = vpop.f32.mrb[0].mxu0
  %558 = vdwg.mxu0
  %v559 = vmax.f32 %v512, 0.0
  %v560 = vmax.f32 %v514, 0.0
  %v561 = vmax.f32 %v553, 0.0
  %v562 = vmax.f32 %v555, 0.0
  %v563 = vpack.c.bf16 %v559, %v559
  %v564 = vpack.c.bf16 %v560, %v560
  %v565 = vpack.c.bf16 %v561, %v561
  %v566 = vpack.c.bf16 %v562, %v562
  %v567 = vld [vmem:[%s3] sm:$0xf]
  %v568 = vld [vmem:[%s3 + $0x4] sm:$0xf]
  %v569 = vld [vmem:[%s3 + $0x8] sm:$0xf]
  %v570 = vld [vmem:[%s3 + $0xc] sm:$0xf]
  %v571 = vld [vmem:[%s3 + $0x10] sm:$0xf]
  %v572 = vld [vmem:[%s3 + $0x14] sm:$0xf]
  %v573 = vld [vmem:[%s3 + $0x18] sm:$0xf]
  %v574 = vld [vmem:[%s3 + $0x1c] sm:$0xf]
  %v575 = vld [vmem:[%s3 + $0x20] sm:$0xf]
  %v576 = vld [vmem:[%s3 + $0x24] sm:$0xf]
  %v577 = vld [vmem:[%s3 + $0x28] sm:$0xf]
  %v578 = vld [vmem:[%s3 + $0x2c] sm:$0xf]
  %v579 = vld [vmem:[%s3 + $0x30] sm:$0xf]
  %v580 = vld [vmem:[%s3 + $0x34] sm:$0xf]
  %v581 = vld [vmem:[%s3 + $0x38] sm:$0xf]
  %v582 = vld [vmem:[%s3 + $0x3c] sm:$0xf]
  %v583 = vld [vmem:[%s3 + $0x40] sm:$0xf]
  %v584 = vld [vmem:[%s3 + $0x44] sm:$0xf]
  %v585 = vld [vmem:[%s3 + $0x48] sm:$0xf]
  %v586 = vld [vmem:[%s3 + $0x4c] sm:$0xf]
  %v587 = vld [vmem:[%s3 + $0x50] sm:$0xf]
  %v588 = vld [vmem:[%s3 + $0x54] sm:$0xf]
  %v589 = vld [vmem:[%s3 + $0x58] sm:$0xf]
  %v590 = vld [vmem:[%s3 + $0x5c] sm:$0xf]
  %v591 = vld [vmem:[%s3 + $0x60] sm:$0xf]
  %v592 = vld [vmem:[%s3 + $0x64] sm:$0xf]
  %v593 = vld [vmem:[%s3 + $0x68] sm:$0xf]
  %v594 = vld [vmem:[%s3 + $0x6c] sm:$0xf]
  %v595 = vld [vmem:[%s3 + $0x70] sm:$0xf]
  %v596 = vld [vmem:[%s3 + $0x74] sm:$0xf]
  %v597 = vld [vmem:[%s3 + $0x78] sm:$0xf]
  %v598 = vld [vmem:[%s3 + $0x7c] sm:$0xf]
  %v599 = vld [vmem:[%s3 + $0x80] sm:$0xf]
  %v600 = vld [vmem:[%s3 + $0x84] sm:$0xf]
  %v601 = vld [vmem:[%s3 + $0x88] sm:$0xf]
  %v602 = vld [vmem:[%s3 + $0x8c] sm:$0xf]
  %v603 = vld [vmem:[%s3 + $0x90] sm:$0xf]
  %v604 = vld [vmem:[%s3 + $0x94] sm:$0xf]
  %v605 = vld [vmem:[%s3 + $0x98] sm:$0xf]
  %v606 = vld [vmem:[%s3 + $0x9c] sm:$0xf]
  %v607 = vld [vmem:[%s3 + $0xa0] sm:$0xf]
  %v608 = vld [vmem:[%s3 + $0xa4] sm:$0xf]
  %v609 = vld [vmem:[%s3 + $0xa8] sm:$0xf]
  %v610 = vld [vmem:[%s3 + $0xac] sm:$0xf]
  %v611 = vld [vmem:[%s3 + $0xb0] sm:$0xf]
  %v612 = vld [vmem:[%s3 + $0xb4] sm:$0xf]
  %v613 = vld [vmem:[%s3 + $0xb8] sm:$0xf]
  %v614 = vld [vmem:[%s3 + $0xbc] sm:$0xf]
  %v615 = vld [vmem:[%s3 + $0xc0] sm:$0xf]
  %v616 = vld [vmem:[%s3 + $0xc4] sm:$0xf]
  %v617 = vld [vmem:[%s3 + $0xc8] sm:$0xf]
  %v618 = vld [vmem:[%s3 + $0xcc] sm:$0xf]
  %v619 = vld [vmem:[%s3 + $0xd0] sm:$0xf]
  %v620 = vld [vmem:[%s3 + $0xd4] sm:$0xf]
  %v621 = vld [vmem:[%s3 + $0xd8] sm:$0xf]
  %v622 = vld [vmem:[%s3 + $0xdc] sm:$0xf]
  %v623 = vld [vmem:[%s4] sm:$0x1]
  %v625 = vlaneseq
  %v626 = vshrl.u32 %v625, 7
  %v627 = vsub.s32 0, %v626
  %v628 = vrot.slane %v623, %v627
  %v686 = vunpack.c.l.b16 %v567
  %v687 = vunpack.c.l.b16 %v568
  %v688 = vunpack.c.l.b16 %v569
  %v689 = vunpack.c.l.b16 %v570
  %v690 = vunpack.c.l.b16 %v571
  %v691 = vunpack.c.l.b16 %v572
  %v692 = vunpack.c.l.b16 %v573
  %v693 = vunpack.c.l.b16 %v574
  %v694 = vunpack.c.l.b16 %v575
  %v695 = vunpack.c.l.b16 %v576
  %v696 = vunpack.c.l.b16 %v577
  %v697 = vunpack.c.l.b16 %v578
  %v698 = vunpack.c.l.b16 %v579
  %v699 = vunpack.c.l.b16 %v580
  %v700 = vunpack.c.l.b16 %v581
  %v701 = vunpack.c.l.b16 %v582
  %v702 = vunpack.c.l.b16 %v583
  %v703 = vunpack.c.l.b16 %v584
  %v704 = vunpack.c.l.b16 %v585
  %v705 = vunpack.c.l.b16 %v586
  %v706 = vunpack.c.l.b16 %v587
  %v707 = vunpack.c.l.b16 %v588
  %v708 = vunpack.c.l.b16 %v589
  %v709 = vunpack.c.l.b16 %v590
  %v710 = vunpack.c.l.b16 %v591
  %v711 = vunpack.c.l.b16 %v592
  %v712 = vunpack.c.l.b16 %v593
  %v713 = vunpack.c.l.b16 %v594
  %v714 = vunpack.c.l.b16 %v595
  %v715 = vunpack.c.l.b16 %v596
  %v716 = vunpack.c.l.b16 %v597
  %v717 = vunpack.c.l.b16 %v598
  %v718 = vunpack.c.l.b16 %v599
  %v719 = vunpack.c.l.b16 %v600
  %v720 = vunpack.c.l.b16 %v601
  %v721 = vunpack.c.l.b16 %v602
  %v722 = vunpack.c.l.b16 %v603
  %v723 = vunpack.c.l.b16 %v604
  %v724 = vunpack.c.l.b16 %v605
  %v725 = vunpack.c.l.b16 %v606
  %v726 = vunpack.c.l.b16 %v607
  %v727 = vunpack.c.l.b16 %v608
  %v728 = vunpack.c.l.b16 %v609
  %v729 = vunpack.c.l.b16 %v610
  %v730 = vunpack.c.l.b16 %v611
  %v731 = vunpack.c.l.b16 %v612
  %v732 = vunpack.c.l.b16 %v613
  %v733 = vunpack.c.l.b16 %v614
  %v734 = vunpack.c.l.b16 %v615
  %v735 = vunpack.c.l.b16 %v616
  %v736 = vunpack.c.l.b16 %v617
  %v737 = vunpack.c.l.b16 %v618
  %v738 = vunpack.c.l.b16 %v619
  %v739 = vunpack.c.l.b16 %v620
  %v740 = vunpack.c.l.b16 %v621
  %v741 = vunpack.c.l.b16 %v622
  %v742 = vpack.c.b16 %v687, %v686
  %v743 = vpack.c.b16 %v689, %v688
  %v744 = vpack.c.b16 %v691, %v690
  %v745 = vpack.c.b16 %v693, %v692
  %v746 = vpack.c.b16 %v695, %v694
  %v747 = vpack.c.b16 %v697, %v696
  %v748 = vpack.c.b16 %v699, %v698
  %v749 = vpack.c.b16 %v701, %v700
  %v750 = vpack.c.b16 %v703, %v702
  %v751 = vpack.c.b16 %v705, %v704
  %v752 = vpack.c.b16 %v707, %v706
  %v753 = vpack.c.b16 %v709, %v708
  %v754 = vpack.c.b16 %v711, %v710
  %v755 = vpack.c.b16 %v713, %v712
  %v756 = vpack.c.b16 %v715, %v714
  %v757 = vpack.c.b16 %v717, %v716
  %v758 = vpack.c.b16 %v719, %v718
  %v759 = vpack.c.b16 %v721, %v720
  %v760 = vpack.c.b16 %v723, %v722
  %v761 = vpack.c.b16 %v725, %v724
  %v762 = vpack.c.b16 %v727, %v726
  %v763 = vpack.c.b16 %v729, %v728
  %v764 = vpack.c.b16 %v731, %v730
  %v765 = vpack.c.b16 %v733, %v732
  %v766 = vpack.c.b16 %v735, %v734
  %v767 = vpack.c.b16 %v737, %v736
  %v768 = vpack.c.b16 %v739, %v738
  %v769 = vpack.c.b16 %v741, %v740
  %vm798 = vcmask 523264
  %v800 = vsel %vm798, %v566, 0
  %802 = vmatprep.subr.bf16.mxu0 0
  %803 = vmatpush1.bf16.msra.mxu0 %v742
  %804 = vmatprep.subr.bf16.mxu0 0
  %805 = vmatpush1.bf16.msra.mxu0 %v743
  %806 = vmatprep.subr.bf16.mxu0 0
  %807 = vmatpush1.bf16.msra.mxu0 %v744
  %808 = vmatprep.subr.bf16.mxu0 0
  %809 = vmatpush1.bf16.msra.mxu0 %v745
  %810 = vmatprep.subr.bf16.mxu0 0
  %811 = vmatpush1.bf16.msra.mxu0 %v746
  %812 = vmatprep.subr.bf16.mxu0 0
  %813 = vmatpush1.bf16.msra.mxu0 %v747
  %814 = vmatprep.subr.bf16.mxu0 0
  %815 = vmatpush1.bf16.msra.mxu0 %v748
  %816 = vmatprep.subr.bf16.mxu0 0
  %817 = vmatpush1.bf16.msra.mxu0 %v749
  %818 = vmatprep.subr.bf16.mxu0 0
  %819 = vmatpush1.bf16.msra.mxu0 %v750
  %820 = vmatprep.subr.bf16.mxu0 0
  %821 = vmatpush1.bf16.msra.mxu0 %v751
  %822 = vmatprep.subr.bf16.mxu0 0
  %823 = vmatpush1.bf16.msra.mxu0 %v752
  %824 = vmatprep.subr.bf16.mxu0 0
  %825 = vmatpush1.bf16.msra.mxu0 %v753
  %826 = vmatprep.subr.bf16.mxu0 0
  %827 = vmatpush1.bf16.msra.mxu0 %v754
  %828 = vmatprep.subr.bf16.mxu0 0
  %829 = vmatpush1.bf16.msra.mxu0 %v755
  %830 = vmatprep.subr.bf16.mxu0 0
  %831 = vmatpush1.bf16.msra.mxu0 %v756
  %832 = vmatprep.subr.bf16.mxu0 0
  %833 = vmatpush1.bf16.msra.mxu0 %v757
  %834 = vmatprep.mubr.bf16.mxu0 %v564
  %835 = vmatmul.mubr.bf16.gmra.mrb[0].mxu0 %v563
  %v836 = vpop.f32.mrb[0].mxu0
  %v837 = vadd.f32 %v628, %v836
  %v838 = vpop.f32.mrb[0].mxu0
  %v839 = vpop.f32.mrb[0].mxu0
  %v840 = vpop.f32.mrb[0].mxu0
  %841 = vdwg.mxu0
  %842 = vmatprep.subr.bf16.mxu0 0
  %843 = vmatpush1.bf16.msra.mxu0 %v758
  %844 = vmatprep.subr.bf16.mxu0 0
  %845 = vmatpush1.bf16.msra.mxu0 %v759
  %846 = vmatprep.subr.bf16.mxu0 0
  %847 = vmatpush1.bf16.msra.mxu0 %v760
  %848 = vmatprep.subr.bf16.mxu0 0
  %849 = vmatpush1.bf16.msra.mxu0 %v761
  %850 = vmatprep.subr.bf16.mxu0 0
  %851 = vmatpush1.bf16.msra.mxu0 %v762
  %852 = vmatprep.subr.bf16.mxu0 0
  %853 = vmatpush1.bf16.msra.mxu0 %v763
  %854 = vmatprep.subr.bf16.mxu0 0
  %855 = vmatpush1.bf16.msra.mxu0 %v764
  %856 = vmatprep.subr.bf16.mxu0 0
  %857 = vmatpush1.bf16.msra.mxu0 %v765
  %858 = vmatprep.subr.bf16.mxu0 0
  %859 = vmatpush1.bf16.msra.mxu0 %v766
  %860 = vmatprep.subr.bf16.mxu0 0
  %861 = vmatpush1.bf16.msra.mxu0 %v767
  %862 = vmatprep.subr.bf16.mxu0 0
  %863 = vmatpush1.bf16.msra.mxu0 %v768
  %864 = vmatprep.subr.bf16.mxu0 0
  %865 = vmatpush1.bf16.msra.mxu0 %v769
  %866 = vmatprep.subr.bf16.mxu0 0
  %867 = vmatpush1.bf16.msra.mxu0 0
  %868 = vmatprep.subr.bf16.mxu0 0
  %869 = vmatpush1.bf16.msra.mxu0 0
  %870 = vmatprep.subr.bf16.mxu0 0
  %871 = vmatpush1.bf16.msra.mxu0 0
  %872 = vmatprep.subr.bf16.mxu0 0
  %873 = vmatpush1.bf16.msra.mxu0 0
  %874 = vmatprep.mubr.bf16.mxu0 %v800
  %875 = vmatmul.mubr.bf16.gmra.mrb[0].mxu0 %v565
  %v876 = vpop.f32.mrb[0].mxu0
  %v877 = vadd.f32 %v837, %v876
  %v878 = vpop.f32.mrb[0].mxu0
  %v879 = vpop.f32.mrb[0].mxu0
  %v880 = vpop.f32.mrb[0].mxu0
  %881 = vdwg.mxu0
  %v882 = vmax.f32 %v877, 0.0
  %v883 = vpack.c.bf16 %v882, %v882
  %v884 = vld [vmem:[%s5] sm:$0xf]
  %v885 = vld [vmem:[%s5 + $0x4] sm:$0xf]
  %v886 = vld [vmem:[%s5 + $0x8] sm:$0xf]
  %v887 = vld [vmem:[%s5 + $0xc] sm:$0xf]
  %v888 = vld [vmem:[%s5 + $0x10] sm:$0xf]
  %v889 = vld [vmem:[%s5 + $0x14] sm:$0xf]
  %v890 = vld [vmem:[%s5 + $0x18] sm:$0xf]
  %v891 = vld [vmem:[%s5 + $0x1c] sm:$0xf]
  %v892 = vld [vmem:[%s5 + $0x20] sm:$0xf]
  %v893 = vld [vmem:[%s5 + $0x24] sm:$0xf]
  %v894 = vld [vmem:[%s5 + $0x28] sm:$0xf]
  %v895 = vld [vmem:[%s5 + $0x2c] sm:$0xf]
  %v896 = vld [vmem:[%s5 + $0x30] sm:$0xf]
  %v897 = vld [vmem:[%s5 + $0x34] sm:$0xf]
  %v898 = vld [vmem:[%s6] sm:$0x1]
  %v900 = vlaneseq
  %v901 = vshrl.u32 %v900, 7
  %v902 = vsub.s32 0, %v901
  %v903 = vrot.slane %v898, %v902
  %v919 = vunpack.c.l.b16 %v884
  %v920 = vunpack.c.l.b16 %v885
  %v921 = vunpack.c.l.b16 %v886
  %v922 = vunpack.c.l.b16 %v887
  %v923 = vunpack.c.l.b16 %v888
  %v924 = vunpack.c.l.b16 %v889
  %v925 = vunpack.c.l.b16 %v890
  %v926 = vunpack.c.l.b16 %v891
  %v927 = vunpack.c.l.b16 %v892
  %v928 = vunpack.c.l.b16 %v893
  %v929 = vunpack.c.l.b16 %v894
  %v930 = vunpack.c.l.b16 %v895
  %v931 = vunpack.c.l.b16 %v896
  %v932 = vunpack.c.l.b16 %v897
  %v933 = vpack.c.b16 %v920, %v919
  %v934 = vpack.c.b16 %v922, %v921
  %v935 = vpack.c.b16 %v924, %v923
  %v936 = vpack.c.b16 %v926, %v925
  %v937 = vpack.c.b16 %v928, %v927
  %v938 = vpack.c.b16 %v930, %v929
  %v939 = vpack.c.b16 %v932, %v931
  %vm947 = vcmask 916480
  %v949 = vsel %vm947, %v883, 0
  %951 = vmatprep.subr.bf16.mxu0 0
  %952 = vmatpush1.bf16.msra.mxu0 %v933
  %953 = vmatprep.subr.bf16.mxu0 0
  %954 = vmatpush1.bf16.msra.mxu0 %v934
  %955 = vmatprep.subr.bf16.mxu0 0
  %956 = vmatpush1.bf16.msra.mxu0 %v935
  %957 = vmatprep.subr.bf16.mxu0 0
  %958 = vmatpush1.bf16.msra.mxu0 %v936
  %959 = vmatprep.subr.bf16.mxu0 0
  %960 = vmatpush1.bf16.msra.mxu0 %v937
  %961 = vmatprep.subr.bf16.mxu0 0
  %962 = vmatpush1.bf16.msra.mxu0 %v938
  %963 = vmatprep.subr.bf16.mxu0 0
  %964 = vmatpush1.bf16.msra.mxu0 %v939
  %965 = vmatprep.subr.bf16.mxu0 0
  %966 = vmatpush1.bf16.msra.mxu0 0
  %967 = vmatprep.subr.bf16.mxu0 0
  %968 = vmatpush1.bf16.msra.mxu0 0
  %969 = vmatprep.subr.bf16.mxu0 0
  %970 = vmatpush1.bf16.msra.mxu0 0
  %971 = vmatprep.subr.bf16.mxu0 0
  %972 = vmatpush1.bf16.msra.mxu0 0
  %973 = vmatprep.subr.bf16.mxu0 0
  %974 = vmatpush1.bf16.msra.mxu0 0
  %975 = vmatprep.subr.bf16.mxu0 0
  %976 = vmatpush1.bf16.msra.mxu0 0
  %977 = vmatprep.subr.bf16.mxu0 0
  %978 = vmatpush1.bf16.msra.mxu0 0
  %979 = vmatprep.subr.bf16.mxu0 0
  %980 = vmatpush1.bf16.msra.mxu0 0
  %981 = vmatprep.subr.bf16.mxu0 0
  %982 = vmatpush1.bf16.msra.mxu0 0
  %983 = vmatprep.mubr.bf16.mxu0 0
  %984 = vmatmul.mubr.bf16.gmra.mrb[0].mxu0 %v949
  %v985 = vpop.f32.mrb[0].mxu0
  %v986 = vadd.f32 %v903, %v985
  %v987 = vpop.f32.mrb[0].mxu0
  %v988 = vpop.f32.mrb[0].mxu0
  %v989 = vpop.f32.mrb[0].mxu0
  %990 = vdwg.mxu0
  %v991 = vmax.f32 %v986, 0.0
  %v992 = vpack.c.bf16 %v991, %v991
  %v993 = vld [vmem:[%s7] sm:$0xf]
  %v994 = vld [vmem:[%s7 + $0x4] sm:$0xf]
  %v995 = vld [vmem:[%s7 + $0x8] sm:$0xf]
  %v996 = vld [vmem:[%s7 + $0xc] sm:$0x3]
  %v997 = vld [vmem:[%s8] sm:$0x1]
  %v999 = vlaneseq
  %v1000 = vshrl.u32 %v999, 7
  %v1001 = vsub.s32 0, %v1000
  %v1002 = vrot.slane %v997, %v1001
  %v1008 = vunpack.c.l.b16 %v993
  %v1009 = vunpack.c.l.b16 %v994
  %v1010 = vunpack.c.l.b16 %v995
  %v1011 = vunpack.c.l.b16 %v996
  %v1012 = vpack.c.b16 %v1009, %v1008
  %v1013 = vpack.c.b16 %v1011, %v1010
  %vm1015 = vcmask 228352
  %v1017 = vsel %vm1015, %v992, 0
  %vm1019 = vcmask 1045504
  %v1021 = vsel %vm1019, %v1013, 0
  %1023 = vmatprep.subr.bf16.mxu0 0
  %1024 = vmatpush1.bf16.msra.mxu0 %v1012
  %1025 = vmatprep.subr.bf16.mxu0 0
  %1026 = vmatpush1.bf16.msra.mxu0 %v1021
  %1027 = vmatprep.subr.bf16.mxu0 0
  %1028 = vmatpush1.bf16.msra.mxu0 0
  %1029 = vmatprep.subr.bf16.mxu0 0
  %1030 = vmatpush1.bf16.msra.mxu0 0
  %1031 = vmatprep.subr.bf16.mxu0 0
  %1032 = vmatpush1.bf16.msra.mxu0 0
  %1033 = vmatprep.subr.bf16.mxu0 0
  %1034 = vmatpush1.bf16.msra.mxu0 0
  %1035 = vmatprep.subr.bf16.mxu0 0
  %1036 = vmatpush1.bf16.msra.mxu0 0
  %1037 = vmatprep.subr.bf16.mxu0 0
  %1038 = vmatpush1.bf16.msra.mxu0 0
  %1039 = vmatprep.subr.bf16.mxu0 0
  %1040 = vmatpush1.bf16.msra.mxu0 0
  %1041 = vmatprep.subr.bf16.mxu0 0
  %1042 = vmatpush1.bf16.msra.mxu0 0
  %1043 = vmatprep.subr.bf16.mxu0 0
  %1044 = vmatpush1.bf16.msra.mxu0 0
  %1045 = vmatprep.subr.bf16.mxu0 0
  %1046 = vmatpush1.bf16.msra.mxu0 0
  %1047 = vmatprep.subr.bf16.mxu0 0
  %1048 = vmatpush1.bf16.msra.mxu0 0
  %1049 = vmatprep.subr.bf16.mxu0 0
  %1050 = vmatpush1.bf16.msra.mxu0 0
  %1051 = vmatprep.subr.bf16.mxu0 0
  %1052 = vmatpush1.bf16.msra.mxu0 0
  %1053 = vmatprep.subr.bf16.mxu0 0
  %1054 = vmatpush1.bf16.msra.mxu0 0
  %1055 = vmatprep.mubr.bf16.mxu0 0
  %1056 = vmatmul.mubr.bf16.gmra.mrb[0].mxu0 %v1017
  %v1057 = vpop.f32.mrb[0].mxu0
  %v1058 = vadd.f32 %v1002, %v1057
  %v1059 = vpop.f32.mrb[0].mxu0
  %v1060 = vpop.f32.mrb[0].mxu0
  %v1061 = vpop.f32.mrb[0].mxu0
  %1062 = vdwg.mxu0
  %v1063 = vmax.f32 %v1058, 0.0
  %v1064 = vpack.c.bf16 %v1063, %v1063
  %v1065 = vld [vmem:[%s9] sm:$0xf]
  %v1066 = vld [vmem:[%s9 + $0x4] sm:$0xf]
  %v1067 = vld [vmem:[%s9 + $0x8] sm:$0xf]
  %v1068 = vld [vmem:[%s9 + $0xc] sm:$0xf]
  %v1069 = vld [vmem:[%s10] sm:$0x1]
  %v1071 = vlaneseq
  %v1072 = vshrl.u32 %v1071, 7
  %v1073 = vsub.s32 0, %v1072
  %v1074 = vrot.slane %v1069, %v1073
  %v1080 = vunpack.c.l.b16 %v1065
  %v1081 = vunpack.c.l.b16 %v1066
  %v1082 = vunpack.c.l.b16 %v1067
  %v1083 = vunpack.c.l.b16 %v1068
  %v1084 = vpack.c.b16 %v1081, %v1080
  %v1085 = vpack.c.b16 %v1083, %v1082
  %vm1088 = vcmask 261120
  %v1090 = vsel %vm1088, %v1064, 0
  %1092 = vmatprep.subr.bf16.mxu0 0
  %1093 = vmatpush1.bf16.msra.mxu0 %v1084
  %1094 = vmatprep.subr.bf16.mxu0 0
  %1095 = vmatpush1.bf16.msra.mxu0 %v1085
  %1096 = vmatprep.subr.bf16.mxu0 0
  %1097 = vmatpush1.bf16.msra.mxu0 0
  %1098 = vmatprep.subr.bf16.mxu0 0
  %1099 = vmatpush1.bf16.msra.mxu0 0
  %1100 = vmatprep.subr.bf16.mxu0 0
  %1101 = vmatpush1.bf16.msra.mxu0 0
  %1102 = vmatprep.subr.bf16.mxu0 0
  %1103 = vmatpush1.bf16.msra.mxu0 0
  %1104 = vmatprep.subr.bf16.mxu0 0
  %1105 = vmatpush1.bf16.msra.mxu0 0
  %1106 = vmatprep.subr.bf16.mxu0 0
  %1107 = vmatpush1.bf16.msra.mxu0 0
  %1108 = vmatprep.subr.bf16.mxu0 0
  %1109 = vmatpush1.bf16.msra.mxu0 0
  %1110 = vmatprep.subr.bf16.mxu0 0
  %1111 = vmatpush1.bf16.msra.mxu0 0
  %1112 = vmatprep.subr.bf16.mxu0 0
  %1113 = vmatpush1.bf16.msra.mxu0 0
  %1114 = vmatprep.subr.bf16.mxu0 0
  %1115 = vmatpush1.bf16.msra.mxu0 0
  %1116 = vmatprep.subr.bf16.mxu0 0
  %1117 = vmatpush1.bf16.msra.mxu0 0
  %1118 = vmatprep.subr.bf16.mxu0 0
  %1119 = vmatpush1.bf16.msra.mxu0 0
  %1120 = vmatprep.subr.bf16.mxu0 0
  %1121 = vmatpush1.bf16.msra.mxu0 0
  %1122 = vmatprep.subr.bf16.mxu0 0
  %1123 = vmatpush1.bf16.msra.mxu0 0
  %1124 = vmatprep.mubr.bf16.mxu0 0
  %1125 = vmatmul.mubr.bf16.gmra.mrb[0].mxu0 %v1090
  %v1126 = vpop.f32.mrb[0].mxu0
  %v1127 = vadd.f32 %v1074, %v1126
  %v1128 = vpop.f32.mrb[0].mxu0
  %v1129 = vpop.f32.mrb[0].mxu0
  %v1130 = vpop.f32.mrb[0].mxu0
  %1131 = vdwg.mxu0
  %v1132 = vmax.f32 %v1127, 0.0
  %v1133 = vpack.c.bf16 %v1132, %v1132
  %v1134 = vld [vmem:[%s11] sm:$0xf]
  %v1135 = vld [vmem:[%s11 + $0x4] sm:$0xf]
  %v1136 = vld [vmem:[%s11 + $0x8] sm:$0xf]
  %v1137 = vld [vmem:[%s11 + $0xc] sm:$0xf]
  %v1138 = vld [vmem:[%s12] sm:$0x1]
  %v1140 = vlaneseq
  %v1141 = vshrl.u32 %v1140, 7
  %v1142 = vsub.s32 0, %v1141
  %v1143 = vrot.slane %v1138, %v1142
  %v1149 = vunpack.c.l.b16 %v1134
  %v1150 = vunpack.c.l.b16 %v1135
  %v1151 = vunpack.c.l.b16 %v1136
  %v1152 = vunpack.c.l.b16 %v1137
  %v1153 = vpack.c.b16 %v1150, %v1149
  %v1154 = vpack.c.b16 %v1152, %v1151
  %v1158 = vsel %vm1088, %v1133, 0
  %1160 = vmatprep.subr.bf16.mxu0 0
  %1161 = vmatpush1.bf16.msra.mxu0 %v1153
  %1162 = vmatprep.subr.bf16.mxu0 0
  %1163 = vmatpush1.bf16.msra.mxu0 %v1154
  %1164 = vmatprep.subr.bf16.mxu0 0
  %1165 = vmatpush1.bf16.msra.mxu0 0
  %1166 = vmatprep.subr.bf16.mxu0 0
  %1167 = vmatpush1.bf16.msra.mxu0 0
  %1168 = vmatprep.subr.bf16.mxu0 0
  %1169 = vmatpush1.bf16.msra.mxu0 0
  %1170 = vmatprep.subr.bf16.mxu0 0
  %1171 = vmatpush1.bf16.msra.mxu0 0
  %1172 = vmatprep.subr.bf16.mxu0 0
  %1173 = vmatpush1.bf16.msra.mxu0 0
  %1174 = vmatprep.subr.bf16.mxu0 0
  %1175 = vmatpush1.bf16.msra.mxu0 0
  %1176 = vmatprep.subr.bf16.mxu0 0
  %1177 = vmatpush1.bf16.msra.mxu0 0
  %1178 = vmatprep.subr.bf16.mxu0 0
  %1179 = vmatpush1.bf16.msra.mxu0 0
  %1180 = vmatprep.subr.bf16.mxu0 0
  %1181 = vmatpush1.bf16.msra.mxu0 0
  %1182 = vmatprep.subr.bf16.mxu0 0
  %1183 = vmatpush1.bf16.msra.mxu0 0
  %1184 = vmatprep.subr.bf16.mxu0 0
  %1185 = vmatpush1.bf16.msra.mxu0 0
  %1186 = vmatprep.subr.bf16.mxu0 0
  %1187 = vmatpush1.bf16.msra.mxu0 0
  %1188 = vmatprep.subr.bf16.mxu0 0
  %1189 = vmatpush1.bf16.msra.mxu0 0
  %1190 = vmatprep.subr.bf16.mxu0 0
  %1191 = vmatpush1.bf16.msra.mxu0 0
  %1192 = vmatprep.mubr.bf16.mxu0 0
  %1193 = vmatmul.mubr.bf16.gmra.mrb[0].mxu0 %v1158
  %v1194 = vpop.f32.mrb[0].mxu0
  %v1195 = vadd.f32 %v1143, %v1194
  %v1196 = vpop.f32.mrb[0].mxu0
  %v1197 = vpop.f32.mrb[0].mxu0
  %v1198 = vpop.f32.mrb[0].mxu0
  %1199 = vdwg.mxu0
  %vm1200 = vcmask 58368
  %1201 = vst.msk [vmem:[%s13] sm:$0x3] %vm1200, %v1195
  // Predicated region
  $region54: #{vae_forward.2} parent=0 // pred_check
    _
  $region55: #{vae_forward.2} parent=0 // pred_check_branch
    %1203 = sbr.rel (0) target = $region57
  $region56: #{vae_forward.2} parent=0 // pred_region
    _
  $region57: #{vae_forward.2} parent=0 // pred_fallthru
    _
  // Predicated region
  $region58: #{vae_forward.2} parent=0 // pred_check
    _
  $region59: #{vae_forward.2} parent=0 // pred_check_branch
    %1205 = sbr.rel (0) target = $region61
  $region60: #{vae_forward.2} parent=0 // pred_region
    _
  $region61: #{vae_forward.2} parent=0 // pred_fallthru
    _

// kernel: vae_forward.3
$region0: #{vae_forward.3}
  #allocation0 [shape = 'u32[]', space=smem, size = 0x4, offset = 0x4, fixed_abs, tag = 'smem constant byte address 0x4 - core index']
  #allocation1 [shape = 'u32[144,128]{1,0:T(1,128)}', space=vmem, size = 0x12000, scoped, tag = 'internal scratch']
  %s0 = inlined_call_operand.vmem [shape: f32[2,256], index: 0, kind: input, shape index: {}]
  %s1 = inlined_call_operand.vmem [shape: f32[2,256], index: 1, kind: input, shape index: {}]
  %s2 = inlined_call_operand.vmem [shape: f32[16,256], index: 2, kind: input, shape index: {}]
  %s3 = inlined_call_operand.vmem [shape: f32[2,32], index: 3, kind: input, shape index: {}]
  %s4 = inlined_call_operand.vmem [shape: bf16[256,448], index: 4, kind: input, shape index: {}]
  %s5 = inlined_call_operand.vmem [shape: f32[1,448], index: 5, kind: input, shape index: {}]
  %s6 = inlined_call_operand.vmem [shape: bf16[448,112], index: 6, kind: input, shape index: {}]
  %s7 = inlined_call_operand.vmem [shape: f32[1,112], index: 7, kind: input, shape index: {}]
  %s8 = inlined_call_operand.vmem [shape: bf16[112,28], index: 8, kind: input, shape index: {}]
  %s9 = inlined_call_operand.vmem [shape: f32[1,28], index: 9, kind: input, shape index: {}]
  %s10 = inlined_call_operand.vmem [shape: bf16[28,160], index: 10, kind: input, shape index: {}]
  %s11 = inlined_call_operand.vmem [shape: f32[1,160], index: 11, kind: input, shape index: {}]
  %s12 = inlined_call_operand.vmem [shape: f32[1,32], index: 12, kind: input, shape index: {}]
  %s13 = inlined_call_operand.vmem [shape: f32[1,32], index: 13, kind: input, shape index: {}]
  %s14 = inlined_call_operand.vmem [shape: bf16[32,64], index: 14, kind: input, shape index: {}]
  %s15 = inlined_call_operand.vmem [shape: f32[1,64], index: 15, kind: input, shape index: {}]
  %s16 = inlined_call_operand.vmem [shape: bf16[64,256], index: 16, kind: input, shape index: {}]
  %s17 = inlined_call_operand.vmem [shape: f32[1,256], index: 17, kind: input, shape index: {}]
  %s18 = inlined_call_operand.vmem [shape: f32[2,256], index: 18, kind: output, shape index: {}]
  %s19 = sld [smem:[#allocation0]]
  $region82: #{vae_forward.3} parent=0
    _
  %s21 = ssub.s32 1, %s19
  %s22 = scalar_select 0, %s21, %s19
  // Predicated region
  $region2: #{vae_forward.3} parent=0 // pred_check
    _
  $region3: #{vae_forward.3} parent=0 // pred_check_branch
    %24 = sbr.rel (0) target = $region5
  $region4: #{vae_forward.3} parent=0 // pred_region
    _
  $region5: #{vae_forward.3} parent=0 // pred_fallthru
    _
  // Predicated region
  $region6: #{vae_forward.3} parent=0 // pred_check
    _
  $region7: #{vae_forward.3} parent=0 // pred_check_branch
    %26 = sbr.rel (0) target = $region9
  $region8: #{vae_forward.3} parent=0 // pred_region
    _
  $region9: #{vae_forward.3} parent=0 // pred_fallthru
    _
  // Predicated region
  $region10: #{vae_forward.3} parent=0 // pred_check
    _
  $region11: #{vae_forward.3} parent=0 // pred_check_branch
    %28 = sbr.rel (0) target = $region13
  $region12: #{vae_forward.3} parent=0 // pred_region
    _
  $region13: #{vae_forward.3} parent=0 // pred_fallthru
    _
  // Predicated region
  $region14: #{vae_forward.3} parent=0 // pred_check
    _
  $region15: #{vae_forward.3} parent=0 // pred_check_branch
    %30 = sbr.rel (0) target = $region17
  $region16: #{vae_forward.3} parent=0 // pred_region
    _
  $region17: #{vae_forward.3} parent=0 // pred_fallthru
    _
  // Predicated region
  $region18: #{vae_forward.3} parent=0 // pred_check
    _
  $region19: #{vae_forward.3} parent=0 // pred_check_branch
    %32 = sbr.rel (0) target = $region21
  $region20: #{vae_forward.3} parent=0 // pred_region
    _
  $region21: #{vae_forward.3} parent=0 // pred_fallthru
    _
  // Predicated region
  $region22: #{vae_forward.3} parent=0 // pred_check
    _
  $region23: #{vae_forward.3} parent=0 // pred_check_branch
    %34 = sbr.rel (0) target = $region25
  $region24: #{vae_forward.3} parent=0 // pred_region
    _
  $region25: #{vae_forward.3} parent=0 // pred_fallthru
    _
  // Predicated region
  $region26: #{vae_forward.3} parent=0 // pred_check
    _
  $region27: #{vae_forward.3} parent=0 // pred_check_branch
    %36 = sbr.rel (0) target = $region29
  $region28: #{vae_forward.3} parent=0 // pred_region
    _
  $region29: #{vae_forward.3} parent=0 // pred_fallthru
    _
  // Predicated region
  $region30: #{vae_forward.3} parent=0 // pred_check
    _
  $region31: #{vae_forward.3} parent=0 // pred_check_branch
    %38 = sbr.rel (0) target = $region33
  $region32: #{vae_forward.3} parent=0 // pred_region
    _
  $region33: #{vae_forward.3} parent=0 // pred_fallthru
    _
  // Predicated region
  $region34: #{vae_forward.3} parent=0 // pred_check
    _
  $region35: #{vae_forward.3} parent=0 // pred_check_branch
    %40 = sbr.rel (0) target = $region37
  $region36: #{vae_forward.3} parent=0 // pred_region
    _
  $region37: #{vae_forward.3} parent=0 // pred_fallthru
    _
  // Predicated region
  $region38: #{vae_forward.3} parent=0 // pred_check
    _
  $region39: #{vae_forward.3} parent=0 // pred_check_branch
    %42 = sbr.rel (0) target = $region41
  $region40: #{vae_forward.3} parent=0 // pred_region
    _
  $region41: #{vae_forward.3} parent=0 // pred_fallthru
    _
  // Predicated region
  $region42: #{vae_forward.3} parent=0 // pred_check
    _
  $region43: #{vae_forward.3} parent=0 // pred_check_branch
    %44 = sbr.rel (0) target = $region45
  $region44: #{vae_forward.3} parent=0 // pred_region
    _
  $region45: #{vae_forward.3} parent=0 // pred_fallthru
    _
  // Predicated region
  $region46: #{vae_forward.3} parent=0 // pred_check
    _
  $region47: #{vae_forward.3} parent=0 // pred_check_branch
    %46 = sbr.rel (0) target = $region49
  $region48: #{vae_forward.3} parent=0 // pred_region
    _
  $region49: #{vae_forward.3} parent=0 // pred_fallthru
    _
  // Predicated region
  $region50: #{vae_forward.3} parent=0 // pred_check
    _
  $region51: #{vae_forward.3} parent=0 // pred_check_branch
    %48 = sbr.rel (0) target = $region53
  $region52: #{vae_forward.3} parent=0 // pred_region
    _
  $region53: #{vae_forward.3} parent=0 // pred_fallthru
    _
  // Predicated region
  $region54: #{vae_forward.3} parent=0 // pred_check
    _
  $region55: #{vae_forward.3} parent=0 // pred_check_branch
    %50 = sbr.rel (0) target = $region57
  $region56: #{vae_forward.3} parent=0 // pred_region
    _
  $region57: #{vae_forward.3} parent=0 // pred_fallthru
    _
  // Predicated region
  $region58: #{vae_forward.3} parent=0 // pred_check
    _
  $region59: #{vae_forward.3} parent=0 // pred_check_branch
    %52 = sbr.rel (0) target = $region61
  $region60: #{vae_forward.3} parent=0 // pred_region
    _
  $region61: #{vae_forward.3} parent=0 // pred_fallthru
    _
  // Predicated region
  $region62: #{vae_forward.3} parent=0 // pred_check
    _
  $region63: #{vae_forward.3} parent=0 // pred_check_branch
    %54 = sbr.rel (0) target = $region65
  $region64: #{vae_forward.3} parent=0 // pred_region
    _
  $region65: #{vae_forward.3} parent=0 // pred_fallthru
    _
  // Predicated region
  $region66: #{vae_forward.3} parent=0 // pred_check
    _
  $region67: #{vae_forward.3} parent=0 // pred_check_branch
    %56 = sbr.rel (0) target = $region69
  $region68: #{vae_forward.3} parent=0 // pred_region
    _
  $region69: #{vae_forward.3} parent=0 // pred_fallthru
    _
  // Predicated region
  $region70: #{vae_forward.3} parent=0 // pred_check
    _
  $region71: #{vae_forward.3} parent=0 // pred_check_branch
    %58 = sbr.rel (0) target = $region73
  $region72: #{vae_forward.3} parent=0 // pred_region
    _
  $region73: #{vae_forward.3} parent=0 // pred_fallthru
    _
  %v60 = vld [vmem:[%s0] sm:$0xf]
  %v61 = vadd.f32 %v60, 1.0
  %v62 = vmul.f32 %v61, 16.0
  %v63 = vsub.f32 %v62, 1.0
  %v64 = vmul.f32 %v63, 0.5
  %v65 = vadd.f32 %v64, 0.5
  %v66 = vand.u32 2147483647, %v65
  %v67 = vmul.f32 %v66, 0.03125
  %v68 = vcvt.f32.s32.to.zero.pseudo %v67
  %v69 = vcvt.s32.f32 %v68
  %v70 = vmul.f32 %v69, 32.0
  %v71 = vsub.f32 %v66, %v70
  %vm72 = vcmp.ge.f32.partialorder %v71, 16.0
  %v73 = vsub.f32 32.0, %v71
  %v74 = vsel %vm72, %v73, %v71
  %v75 = vsub.f32 %v74, 0.5
  %v76 = vmax.f32 %v75, 0.0
  %v77 = vmin.f32 %v76, 15.0
  %v78 = vld [vmem:[%s1] sm:$0xf]
  %v79 = vadd.f32 %v78, 1.0
  %v80 = vmul.f32 %v79, 16.0
  %v81 = vsub.f32 %v80, 1.0
  %v82 = vmul.f32 %v81, 0.5
  %v83 = vadd.f32 %v82, 0.5
  %v84 = vand.u32 2147483647, %v83
  %v85 = vmul.f32 %v84, 0.03125
  %v86 = vcvt.f32.s32.to.zero.pseudo %v85
  %v87 = vcvt.s32.f32 %v86
  %v88 = vmul.f32 %v87, 32.0
  %v89 = vsub.f32 %v84, %v88
  %vm90 = vcmp.ge.f32.partialorder %v89, 16.0
  %v91 = vsub.f32 32.0, %v89
  %v92 = vsel %vm90, %v91, %v89
  %v93 = vsub.f32 %v92, 0.5
  %v94 = vmax.f32 %v93, 0.0
  %v95 = vmin.f32 %v94, 15.0
  %v96 = vcvt.f32.s32.to.zero.pseudo %v77
  %v97 = vcvt.s32.f32 %v96
  %v98 = vcvt.f32.s32.to.zero.pseudo %v95
  %v99 = vcvt.s32.f32 %v98
  %v100 = vcvt.f32.s32.to.zero.pseudo %v97
  %v101 = vcvt.f32.s32.to.zero.pseudo %v99
  %v102 = vsub.f32 %v77, %v97
  %v103 = vsub.f32 %v95, %v99
  %v104 = vsub.f32 1.0, %v102
  %v105 = vsub.f32 1.0, %v103
  %v106 = vadd.s32 %v100, 1
  %vm107 = vcmp.lt.s32.totalorder %v106, 15
  %v108 = vsel %vm107, %v106, 15
  %v109 = vadd.s32 %v101, 1
  %vm110 = vcmp.lt.s32.totalorder %v109, 15
  %v111 = vsel %vm110, %v109, 15
  %v112 = vmul.u32 %v101, 16
  %v113 = vadd.s32 %v112, %v100
  %v114 = vmul.f32 %v105, %v104
  %v115 = vadd.s32 %v112, %v108
  %v116 = vmul.f32 %v105, %v102
  %v117 = vmul.u32 %v111, 16
  %v118 = vadd.s32 %v117, %v100
  %v119 = vmul.f32 %v103, %v104
  %v120 = vadd.s32 %v117, %v108
  %v121 = vmul.f32 %v103, %v102
  %v122 = vlaneseq
  %v123 = vshrl.u32 %v122, 7
  %v124 = vadd.s32 %v123, 8
  %v125 = vadd.s32 %v123, 16
  %v126 = vadd.s32 %v123, 24
  %v127 = vadd.s32 %v123, 32
  %v128 = vadd.s32 %v123, 40
  %v129 = vadd.s32 %v123, 48
  %v130 = vadd.s32 %v123, 56
  %v131 = vadd.s32 %v123, 64
  %v132 = vadd.s32 %v123, 72
  %v133 = vadd.s32 %v123, 80
  %v134 = vadd.s32 %v123, 88
  %v135 = vadd.s32 %v123, 96
  %v136 = vadd.s32 %v123, 104
  %v137 = vadd.s32 %v123, 112
  %v138 = vadd.s32 %v123, 120
  %v139 = vadd.s32 %v123, 128
  %v140 = vadd.s32 %v123, 136
  %v141 = vadd.s32 %v123, 144
  %v142 = vadd.s32 %v123, 152
  %v143 = vadd.s32 %v123, 160
  %v144 = vadd.s32 %v123, 168
  %v145 = vadd.s32 %v123, 176
  %v146 = vadd.s32 %v123, 184
  %v147 = vadd.s32 %v123, 192
  %v148 = vadd.s32 %v123, 200
  %v149 = vadd.s32 %v123, 208
  %v150 = vadd.s32 %v123, 216
  %v151 = vadd.s32 %v123, 224
  %v152 = vadd.s32 %v123, 232
  %v153 = vadd.s32 %v123, 240
  %v154 = vadd.s32 %v123, 248
  %v155 = vlaneseq
  %v156 = vshrl.u32 %v155, 7
  %v157 = vsub.s32 0, %v156
  %v158 = vrot.slane %v113, %v157
  %v159 = vlaneseq
  %v160 = vshrl.u32 %v159, 7
  %v161 = vsub.s32 2, %v160
  %v162 = vrot.slane %v113, %v161
  %v163 = vlaneseq
  %v164 = vshrl.u32 %v163, 7
  %v165 = vsub.s32 0, %v164
  %v166 = vrot.slane %v158, %v165
  %v167 = vlaneseq
  %v168 = vshrl.u32 %v167, 7
  %v169 = vsub.s32 0, %v168
  %v170 = vrot.slane %v162, %v169
  %vm171 = vcmp.eq.s32.totalorder %v166, %v123
  %vm172 = vcmp.eq.s32.totalorder %v170, %v123
  %vm173 = vcmp.eq.s32.totalorder %v166, %v124
  %vm174 = vcmp.eq.s32.totalorder %v170, %v124
  %vm175 = vcmp.eq.s32.totalorder %v166, %v125
  %vm176 = vcmp.eq.s32.totalorder %v170, %v125
  %vm177 = vcmp.eq.s32.totalorder %v166, %v126
  %vm178 = vcmp.eq.s32.totalorder %v170, %v126
  %vm179 = vcmp.eq.s32.totalorder %v166, %v127
  %vm180 = vcmp.eq.s32.totalorder %v170, %v127
  %vm181 = vcmp.eq.s32.totalorder %v166, %v128
  %vm182 = vcmp.eq.s32.totalorder %v170, %v128
  %vm183 = vcmp.eq.s32.totalorder %v166, %v129
  %vm184 = vcmp.eq.s32.totalorder %v170, %v129
  %vm185 = vcmp.eq.s32.totalorder %v166, %v130
  %vm186 = vcmp.eq.s32.totalorder %v170, %v130
  %vm187 = vcmp.eq.s32.totalorder %v166, %v131
  %vm188 = vcmp.eq.s32.totalorder %v170, %v131
  %vm189 = vcmp.eq.s32.totalorder %v166, %v132
  %vm190 = vcmp.eq.s32.totalorder %v170, %v132
  %vm191 = vcmp.eq.s32.totalorder %v166, %v133
  %vm192 = vcmp.eq.s32.totalorder %v170, %v133
  %vm193 = vcmp.eq.s32.totalorder %v166, %v134
  %vm194 = vcmp.eq.s32.totalorder %v170, %v134
  %vm195 = vcmp.eq.s32.totalorder %v166, %v135
  %vm196 = vcmp.eq.s32.totalorder %v170, %v135
  %vm197 = vcmp.eq.s32.totalorder %v166, %v136
  %vm198 = vcmp.eq.s32.totalorder %v170, %v136
  %vm199 = vcmp.eq.s32.totalorder %v166, %v137
  %vm200 = vcmp.eq.s32.totalorder %v170, %v137
  %vm201 = vcmp.eq.s32.totalorder %v166, %v138
  %vm202 = vcmp.eq.s32.totalorder %v170, %v138
  %vm203 = vcmp.eq.s32.totalorder %v166, %v139
  %vm204 = vcmp.eq.s32.totalorder %v170, %v139
  %vm205 = vcmp.eq.s32.totalorder %v166, %v140
  %vm206 = vcmp.eq.s32.totalorder %v170, %v140
  %vm207 = vcmp.eq.s32.totalorder %v166, %v141
  %vm208 = vcmp.eq.s32.totalorder %v170, %v141
  %vm209 = vcmp.eq.s32.totalorder %v166, %v142
  %vm210 = vcmp.eq.s32.totalorder %v170, %v142
  %vm211 = vcmp.eq.s32.totalorder %v166, %v143
  %vm212 = vcmp.eq.s32.totalorder %v170, %v143
  %vm213 = vcmp.eq.s32.totalorder %v166, %v144
  %vm214 = vcmp.eq.s32.totalorder %v170, %v144
  %vm215 = vcmp.eq.s32.totalorder %v166, %v145
  %vm216 = vcmp.eq.s32.totalorder %v170, %v145
  %vm217 = vcmp.eq.s32.totalorder %v166, %v146
  %vm218 = vcmp.eq.s32.totalorder %v170, %v146
  %vm219 = vcmp.eq.s32.totalorder %v166, %v147
  %vm220 = vcmp.eq.s32.totalorder %v170, %v147
  %vm221 = vcmp.eq.s32.totalorder %v166, %v148
  %vm222 = vcmp.eq.s32.totalorder %v170, %v148
  %vm223 = vcmp.eq.s32.totalorder %v166, %v149
  %vm224 = vcmp.eq.s32.totalorder %v170, %v149
  %vm225 = vcmp.eq.s32.totalorder %v166, %v150
  %vm226 = vcmp.eq.s32.totalorder %v170, %v150
  %vm227 = vcmp.eq.s32.totalorder %v166, %v151
  %vm228 = vcmp.eq.s32.totalorder %v170, %v151
  %vm229 = vcmp.eq.s32.totalorder %v166, %v152
  %vm230 = vcmp.eq.s32.totalorder %v170, %v152
  %vm231 = vcmp.eq.s32.totalorder %v166, %v153
  %vm232 = vcmp.eq.s32.totalorder %v170, %v153
  %vm233 = vcmp.eq.s32.totalorder %v166, %v154
  %vm234 = vcmp.eq.s32.totalorder %v170, %v154
  %v236 = vlaneseq
  %v237 = vshrl.u32 %v236, 7
  %v238 = vsub.s32 0, %v237
  %v239 = vrot.slane %v114, %v238
  %v240 = vlaneseq
  %v241 = vshrl.u32 %v240, 7
  %v242 = vsub.s32 2, %v241
  %v243 = vrot.slane %v114, %v242
  %v246 = vlaneseq
  %v247 = vshrl.u32 %v246, 7
  %v248 = vsub.s32 0, %v247
  %v249 = vrot.slane %v239, %v248
  %v250 = vlaneseq
  %v251 = vshrl.u32 %v250, 7
  %v252 = vsub.s32 0, %v251
  %v253 = vrot.slane %v243, %v252
  %v254 = vsel %vm171, %v249, 0.0
  %v255 = vsel %vm172, %v253, 0.0
  %v256 = vsel %vm173, %v249, 0.0
  %v257 = vsel %vm174, %v253, 0.0
  %v258 = vsel %vm175, %v249, 0.0
  %v259 = vsel %vm176, %v253, 0.0
  %v260 = vsel %vm177, %v249, 0.0
  %v261 = vsel %vm178, %v253, 0.0
  %v262 = vsel %vm179, %v249, 0.0
  %v263 = vsel %vm180, %v253, 0.0
  %v264 = vsel %vm181, %v249, 0.0
  %v265 = vsel %vm182, %v253, 0.0
  %v266 = vsel %vm183, %v249, 0.0
  %v267 = vsel %vm184, %v253, 0.0
  %v268 = vsel %vm185, %v249, 0.0
  %v269 = vsel %vm186, %v253, 0.0
  %v270 = vsel %vm187, %v249, 0.0
  %v271 = vsel %vm188, %v253, 0.0
  %v272 = vsel %vm189, %v249, 0.0
  %v273 = vsel %vm190, %v253, 0.0
  %v274 = vsel %vm191, %v249, 0.0
  %v275 = vsel %vm192, %v253, 0.0
  %v276 = vsel %vm193, %v249, 0.0
  %v277 = vsel %vm194, %v253, 0.0
  %v278 = vsel %vm195, %v249, 0.0
  %v279 = vsel %vm196, %v253, 0.0
  %v280 = vsel %vm197, %v249, 0.0
  %v281 = vsel %vm198, %v253, 0.0
  %v282 = vsel %vm199, %v249, 0.0
  %v283 = vsel %vm200, %v253, 0.0
  %v284 = vsel %vm201, %v249, 0.0
  %v285 = vsel %vm202, %v253, 0.0
  %v286 = vsel %vm203, %v249, 0.0
  %v287 = vsel %vm204, %v253, 0.0
  %v288 = vsel %vm205, %v249, 0.0
  %v289 = vsel %vm206, %v253, 0.0
  %v290 = vsel %vm207, %v249, 0.0
  %v291 = vsel %vm208, %v253, 0.0
  %v292 = vsel %vm209, %v249, 0.0
  %v293 = vsel %vm210, %v253, 0.0
  %v294 = vsel %vm211, %v249, 0.0
  %v295 = vsel %vm212, %v253, 0.0
  %v296 = vsel %vm213, %v249, 0.0
  %v297 = vsel %vm214, %v253, 0.0
  %v298 = vsel %vm215, %v249, 0.0
  %v299 = vsel %vm216, %v253, 0.0
  %v300 = vsel %vm217, %v249, 0.0
  %v301 = vsel %vm218, %v253, 0.0
  %v302 = vsel %vm219, %v249, 0.0
  %v303 = vsel %vm220, %v253, 0.0
  %v304 = vsel %vm221, %v249, 0.0
  %v305 = vsel %vm222, %v253, 0.0
  %v306 = vsel %vm223, %v249, 0.0
  %v307 = vsel %vm224, %v253, 0.0
  %v308 = vsel %vm225, %v249, 0.0
  %v309 = vsel %vm226, %v253, 0.0
  %v310 = vsel %vm227, %v249, 0.0
  %v311 = vsel %vm228, %v253, 0.0
  %v312 = vsel %vm229, %v249, 0.0
  %v313 = vsel %vm230, %v253, 0.0
  %v314 = vsel %vm231, %v249, 0.0
  %v315 = vsel %vm232, %v253, 0.0
  %v316 = vsel %vm233, %v249, 0.0
  %v317 = vsel %vm234, %v253, 0.0
  %v318 = vlaneseq
  %v319 = vshrl.u32 %v318, 7
  %v320 = vsub.s32 0, %v319
  %v321 = vrot.slane %v115, %v320
  %v322 = vlaneseq
  %v323 = vshrl.u32 %v322, 7
  %v324 = vsub.s32 2, %v323
  %v325 = vrot.slane %v115, %v324
  %v326 = vlaneseq
  %v327 = vshrl.u32 %v326, 7
  %v328 = vsub.s32 0, %v327
  %v329 = vrot.slane %v321, %v328
  %v330 = vlaneseq
  %v331 = vshrl.u32 %v330, 7
  %v332 = vsub.s32 0, %v331
  %v333 = vrot.slane %v325, %v332
  %vm334 = vcmp.eq.s32.totalorder %v329, %v123
  %vm335 = vcmp.eq.s32.totalorder %v333, %v123
  %vm336 = vcmp.eq.s32.totalorder %v329, %v124
  %vm337 = vcmp.eq.s32.totalorder %v333, %v124
  %vm338 = vcmp.eq.s32.totalorder %v329, %v125
  %vm339 = vcmp.eq.s32.totalorder %v333, %v125
  %vm340 = vcmp.eq.s32.totalorder %v329, %v126
  %vm341 = vcmp.eq.s32.totalorder %v333, %v126
  %vm342 = vcmp.eq.s32.totalorder %v329, %v127
  %vm343 = vcmp.eq.s32.totalorder %v333, %v127
  %vm344 = vcmp.eq.s32.totalorder %v329, %v128
  %vm345 = vcmp.eq.s32.totalorder %v333, %v128
  %vm346 = vcmp.eq.s32.totalorder %v329, %v129
  %vm347 = vcmp.eq.s32.totalorder %v333, %v129
  %vm348 = vcmp.eq.s32.totalorder %v329, %v130
  %vm349 = vcmp.eq.s32.totalorder %v333, %v130
  %vm350 = vcmp.eq.s32.totalorder %v329, %v131
  %vm351 = vcmp.eq.s32.totalorder %v333, %v131
  %vm352 = vcmp.eq.s32.totalorder %v329, %v132
  %vm353 = vcmp.eq.s32.totalorder %v333, %v132
  %vm354 = vcmp.eq.s32.totalorder %v329, %v133
  %vm355 = vcmp.eq.s32.totalorder %v333, %v133
  %vm356 = vcmp.eq.s32.totalorder %v329, %v134
  %vm357 = vcmp.eq.s32.totalorder %v333, %v134
  %vm358 = vcmp.eq.s32.totalorder %v329, %v135
  %vm359 = vcmp.eq.s32.totalorder %v333, %v135
  %vm360 = vcmp.eq.s32.totalorder %v329, %v136
  %vm361 = vcmp.eq.s32.totalorder %v333, %v136
  %vm362 = vcmp.eq.s32.totalorder %v329, %v137
  %vm363 = vcmp.eq.s32.totalorder %v333, %v137
  %vm364 = vcmp.eq.s32.totalorder %v329, %v138
  %vm365 = vcmp.eq.s32.totalorder %v333, %v138
  %vm366 = vcmp.eq.s32.totalorder %v329, %v139
  %vm367 = vcmp.eq.s32.totalorder %v333, %v139
  %vm368 = vcmp.eq.s32.totalorder %v329, %v140
  %vm369 = vcmp.eq.s32.totalorder %v333, %v140
  %vm370 = vcmp.eq.s32.totalorder %v329, %v141
  %vm371 = vcmp.eq.s32.totalorder %v333, %v141
  %vm372 = vcmp.eq.s32.totalorder %v329, %v142
  %vm373 = vcmp.eq.s32.totalorder %v333, %v142
  %vm374 = vcmp.eq.s32.totalorder %v329, %v143
  %vm375 = vcmp.eq.s32.totalorder %v333, %v143
  %vm376 = vcmp.eq.s32.totalorder %v329, %v144
  %vm377 = vcmp.eq.s32.totalorder %v333, %v144
  %vm378 = vcmp.eq.s32.totalorder %v329, %v145
  %vm379 = vcmp.eq.s32.totalorder %v333, %v145
  %vm380 = vcmp.eq.s32.totalorder %v329, %v146
  %vm381 = vcmp.eq.s32.totalorder %v333, %v146
  %vm382 = vcmp.eq.s32.totalorder %v329, %v147
  %vm383 = vcmp.eq.s32.totalorder %v333, %v147
  %vm384 = vcmp.eq.s32.totalorder %v329, %v148
  %vm385 = vcmp.eq.s32.totalorder %v333, %v148
  %vm386 = vcmp.eq.s32.totalorder %v329, %v149
  %vm387 = vcmp.eq.s32.totalorder %v333, %v149
  %vm388 = vcmp.eq.s32.totalorder %v329, %v150
  %vm389 = vcmp.eq.s32.totalorder %v333, %v150
  %vm390 = vcmp.eq.s32.totalorder %v329, %v151
  %vm391 = vcmp.eq.s32.totalorder %v333, %v151
  %vm392 = vcmp.eq.s32.totalorder %v329, %v152
  %vm393 = vcmp.eq.s32.totalorder %v333, %v152
  %vm394 = vcmp.eq.s32.totalorder %v329, %v153
  %vm395 = vcmp.eq.s32.totalorder %v333, %v153
  %vm396 = vcmp.eq.s32.totalorder %v329, %v154
  %vm397 = vcmp.eq.s32.totalorder %v333, %v154
  %v399 = vlaneseq
  %v400 = vshrl.u32 %v399, 7
  %v401 = vsub.s32 0, %v400
  %v402 = vrot.slane %v116, %v401
  %v403 = vlaneseq
  %v404 = vshrl.u32 %v403, 7
  %v405 = vsub.s32 2, %v404
  %v406 = vrot.slane %v116, %v405
  %v409 = vlaneseq
  %v410 = vshrl.u32 %v409, 7
  %v411 = vsub.s32 0, %v410
  %v412 = vrot.slane %v402, %v411
  %v413 = vlaneseq
  %v414 = vshrl.u32 %v413, 7
  %v415 = vsub.s32 0, %v414
  %v416 = vrot.slane %v406, %v415
  %v417 = vsel %vm334, %v412, 0.0
  %v418 = vsel %vm335, %v416, 0.0
  %v419 = vsel %vm336, %v412, 0.0
  %v420 = vsel %vm337, %v416, 0.0
  %v421 = vsel %vm338, %v412, 0.0
  %v422 = vsel %vm339, %v416, 0.0
  %v423 = vsel %vm340, %v412, 0.0
  %v424 = vsel %vm341, %v416, 0.0
  %v425 = vsel %vm342, %v412, 0.0
  %v426 = vsel %vm343, %v416, 0.0
  %v427 = vsel %vm344, %v412, 0.0
  %v428 = vsel %vm345, %v416, 0.0
  %v429 = vsel %vm346, %v412, 0.0
  %v430 = vsel %vm347, %v416, 0.0
  %v431 = vsel %vm348, %v412, 0.0
  %v432 = vsel %vm349, %v416, 0.0
  %v433 = vsel %vm350, %v412, 0.0
  %v434 = vsel %vm351, %v416, 0.0
  %v435 = vsel %vm352, %v412, 0.0
  %v436 = vsel %vm353, %v416, 0.0
  %v437 = vsel %vm354, %v412, 0.0
  %v438 = vsel %vm355, %v416, 0.0
  %v439 = vsel %vm356, %v412, 0.0
  %v440 = vsel %vm357, %v416, 0.0
  %v441 = vsel %vm358, %v412, 0.0
  %v442 = vsel %vm359, %v416, 0.0
  %v443 = vsel %vm360, %v412, 0.0
  %v444 = vsel %vm361, %v416, 0.0
  %v445 = vsel %vm362, %v412, 0.0
  %v446 = vsel %vm363, %v416, 0.0
  %v447 = vsel %vm364, %v412, 0.0
  %v448 = vsel %vm365, %v416, 0.0
  %v449 = vsel %vm366, %v412, 0.0
  %v450 = vsel %vm367, %v416, 0.0
  %v451 = vsel %vm368, %v412, 0.0
  %v452 = vsel %vm369, %v416, 0.0
  %v453 = vsel %vm370, %v412, 0.0
  %v454 = vsel %vm371, %v416, 0.0
  %v455 = vsel %vm372, %v412, 0.0
  %v456 = vsel %vm373, %v416, 0.0
  %v457 = vsel %vm374, %v412, 0.0
  %v458 = vsel %vm375, %v416, 0.0
  %v459 = vsel %vm376, %v412, 0.0
  %v460 = vsel %vm377, %v416, 0.0
  %v461 = vsel %vm378, %v412, 0.0
  %v462 = vsel %vm379, %v416, 0.0
  %v463 = vsel %vm380, %v412, 0.0
  %v464 = vsel %vm381, %v416, 0.0
  %v465 = vsel %vm382, %v412, 0.0
  %v466 = vsel %vm383, %v416, 0.0
  %v467 = vsel %vm384, %v412, 0.0
  %v468 = vsel %vm385, %v416, 0.0
  %v469 = vsel %vm386, %v412, 0.0
  %v470 = vsel %vm387, %v416, 0.0
  %v471 = vsel %vm388, %v412, 0.0
  %v472 = vsel %vm389, %v416, 0.0
  %v473 = vsel %vm390, %v412, 0.0
  %v474 = vsel %vm391, %v416, 0.0
  %v475 = vsel %vm392, %v412, 0.0
  %v476 = vsel %vm393, %v416, 0.0
  %v477 = vsel %vm394, %v412, 0.0
  %v478 = vsel %vm395, %v416, 0.0
  %v479 = vsel %vm396, %v412, 0.0
  %v480 = vsel %vm397, %v416, 0.0
  %v481 = vadd.f32 %v254, %v417
  %v482 = vadd.f32 %v255, %v418
  %v483 = vadd.f32 %v256, %v419
  %v484 = vadd.f32 %v257, %v420
  %v485 = vadd.f32 %v258, %v421
  %v486 = vadd.f32 %v259, %v422
  %v487 = vadd.f32 %v260, %v423
  %v488 = vadd.f32 %v261, %v424
  %v489 = vadd.f32 %v262, %v425
  %v490 = vadd.f32 %v263, %v426
  %v491 = vadd.f32 %v264, %v427
  %v492 = vadd.f32 %v265, %v428
  %v493 = vadd.f32 %v266, %v429
  %v494 = vadd.f32 %v267, %v430
  %v495 = vadd.f32 %v268, %v431
  %v496 = vadd.f32 %v269, %v432
  %v497 = vadd.f32 %v270, %v433
  %v498 = vadd.f32 %v271, %v434
  %v499 = vadd.f32 %v272, %v435
  %v500 = vadd.f32 %v273, %v436
  %v501 = vadd.f32 %v274, %v437
  %v502 = vadd.f32 %v275, %v438
  %v503 = vadd.f32 %v276, %v439
  %v504 = vadd.f32 %v277, %v440
  %v505 = vadd.f32 %v278, %v441
  %v506 = vadd.f32 %v279, %v442
  %v507 = vadd.f32 %v280, %v443
  %v508 = vadd.f32 %v281, %v444
  %v509 = vadd.f32 %v282, %v445
  %v510 = vadd.f32 %v283, %v446
  %v511 = vadd.f32 %v284, %v447
  %v512 = vadd.f32 %v285, %v448
  %v513 = vadd.f32 %v286, %v449
  %v514 = vadd.f32 %v287, %v450
  %v515 = vadd.f32 %v288, %v451
  %v516 = vadd.f32 %v289, %v452
  %v517 = vadd.f32 %v290, %v453
  %v518 = vadd.f32 %v291, %v454
  %v519 = vadd.f32 %v292, %v455
  %v520 = vadd.f32 %v293, %v456
  %v521 = vadd.f32 %v294, %v457
  %v522 = vadd.f32 %v295, %v458
  %v523 = vadd.f32 %v296, %v459
  %v524 = vadd.f32 %v297, %v460
  %v525 = vadd.f32 %v298, %v461
  %v526 = vadd.f32 %v299, %v462
  %v527 = vadd.f32 %v300, %v463
  %v528 = vadd.f32 %v301, %v464
  %v529 = vadd.f32 %v302, %v465
  %v530 = vadd.f32 %v303, %v466
  %v531 = vadd.f32 %v304, %v467
  %v532 = vadd.f32 %v305, %v468
  %v533 = vadd.f32 %v306, %v469
  %v534 = vadd.f32 %v307, %v470
  %v535 = vadd.f32 %v308, %v471
  %v536 = vadd.f32 %v309, %v472
  %v537 = vadd.f32 %v310, %v473
  %v538 = vadd.f32 %v311, %v474
  %v539 = vadd.f32 %v312, %v475
  %v540 = vadd.f32 %v313, %v476
  %v541 = vadd.f32 %v314, %v477
  %v542 = vadd.f32 %v315, %v478
  %v543 = vadd.f32 %v316, %v479
  %v544 = vadd.f32 %v317, %v480
  %v545 = vlaneseq
  %v546 = vshrl.u32 %v545, 7
  %v547 = vsub.s32 0, %v546
  %v548 = vrot.slane %v118, %v547
  %v549 = vlaneseq
  %v550 = vshrl.u32 %v549, 7
  %v551 = vsub.s32 2, %v550
  %v552 = vrot.slane %v118, %v551
  %v553 = vlaneseq
  %v554 = vshrl.u32 %v553, 7
  %v555 = vsub.s32 0, %v554
  %v556 = vrot.slane %v548, %v555
  %v557 = vlaneseq
  %v558 = vshrl.u32 %v557, 7
  %v559 = vsub.s32 0, %v558
  %v560 = vrot.slane %v552, %v559
  %vm561 = vcmp.eq.s32.totalorder %v556, %v123
  %vm562 = vcmp.eq.s32.totalorder %v560, %v123
  %vm563 = vcmp.eq.s32.totalorder %v556, %v124
  %vm564 = vcmp.eq.s32.totalorder %v560, %v124
  %vm565 = vcmp.eq.s32.totalorder %v556, %v125
  %vm566 = vcmp.eq.s32.totalorder %v560, %v125
  %vm567 = vcmp.eq.s32.totalorder %v556, %v126
  %vm568 = vcmp.eq.s32.totalorder %v560, %v126
  %vm569 = vcmp.eq.s32.totalorder %v556, %v127
  %vm570 = vcmp.eq.s32.totalorder %v560, %v127
  %vm571 = vcmp.eq.s32.totalorder %v556, %v128
  %vm572 = vcmp.eq.s32.totalorder %v560, %v128
  %vm573 = vcmp.eq.s32.totalorder %v556, %v129
  %vm574 = vcmp.eq.s32.totalorder %v560, %v129
  %vm575 = vcmp.eq.s32.totalorder %v556, %v130
  %vm576 = vcmp.eq.s32.totalorder %v560, %v130
  %vm577 = vcmp.eq.s32.totalorder %v556, %v131
  %vm578 = vcmp.eq.s32.totalorder %v560, %v131
  %vm579 = vcmp.eq.s32.totalorder %v556, %v132
  %vm580 = vcmp.eq.s32.totalorder %v560, %v132
  %vm581 = vcmp.eq.s32.totalorder %v556, %v133
  %vm582 = vcmp.eq.s32.totalorder %v560, %v133
  %vm583 = vcmp.eq.s32.totalorder %v556, %v134
  %vm584 = vcmp.eq.s32.totalorder %v560, %v134
  %vm585 = vcmp.eq.s32.totalorder %v556, %v135
  %vm586 = vcmp.eq.s32.totalorder %v560, %v135
  %vm587 = vcmp.eq.s32.totalorder %v556, %v136
  %vm588 = vcmp.eq.s32.totalorder %v560, %v136
  %vm589 = vcmp.eq.s32.totalorder %v556, %v137
  %vm590 = vcmp.eq.s32.totalorder %v560, %v137
  %vm591 = vcmp.eq.s32.totalorder %v556, %v138
  %vm592 = vcmp.eq.s32.totalorder %v560, %v138
  %vm593 = vcmp.eq.s32.totalorder %v556, %v139
  %vm594 = vcmp.eq.s32.totalorder %v560, %v139
  %vm595 = vcmp.eq.s32.totalorder %v556, %v140
  %vm596 = vcmp.eq.s32.totalorder %v560, %v140
  %vm597 = vcmp.eq.s32.totalorder %v556, %v141
  %vm598 = vcmp.eq.s32.totalorder %v560, %v141
  %vm599 = vcmp.eq.s32.totalorder %v556, %v142
  %vm600 = vcmp.eq.s32.totalorder %v560, %v142
  %vm601 = vcmp.eq.s32.totalorder %v556, %v143
  %vm602 = vcmp.eq.s32.totalorder %v560, %v143
  %vm603 = vcmp.eq.s32.totalorder %v556, %v144
  %vm604 = vcmp.eq.s32.totalorder %v560, %v144
  %vm605 = vcmp.eq.s32.totalorder %v556, %v145
  %vm606 = vcmp.eq.s32.totalorder %v560, %v145
  %vm607 = vcmp.eq.s32.totalorder %v556, %v146
  %vm608 = vcmp.eq.s32.totalorder %v560, %v146
  %vm609 = vcmp.eq.s32.totalorder %v556, %v147
  %vm610 = vcmp.eq.s32.totalorder %v560, %v147
  %vm611 = vcmp.eq.s32.totalorder %v556, %v148
  %vm612 = vcmp.eq.s32.totalorder %v560, %v148
  %vm613 = vcmp.eq.s32.totalorder %v556, %v149
  %vm614 = vcmp.eq.s32.totalorder %v560, %v149
  %vm615 = vcmp.eq.s32.totalorder %v556, %v150
  %vm616 = vcmp.eq.s32.totalorder %v560, %v150
  %vm617 = vcmp.eq.s32.totalorder %v556, %v151
  %vm618 = vcmp.eq.s32.totalorder %v560, %v151
  %vm619 = vcmp.eq.s32.totalorder %v556, %v152
  %vm620 = vcmp.eq.s32.totalorder %v560, %v152
  %vm621 = vcmp.eq.s32.totalorder %v556, %v153
  %vm622 = vcmp.eq.s32.totalorder %v560, %v153
  %vm623 = vcmp.eq.s32.totalorder %v556, %v154
  %vm624 = vcmp.eq.s32.totalorder %v560, %v154
  %v626 = vlaneseq
  %v627 = vshrl.u32 %v626, 7
  %v628 = vsub.s32 0, %v627
  %v629 = vrot.slane %v119, %v628
  %v630 = vlaneseq
  %v631 = vshrl.u32 %v630, 7
  %v632 = vsub.s32 2, %v631
  %v633 = vrot.slane %v119, %v632
  %v636 = vlaneseq
  %v637 = vshrl.u32 %v636, 7
  %v638 = vsub.s32 0, %v637
  %v639 = vrot.slane %v629, %v638
  %v640 = vlaneseq
  %v641 = vshrl.u32 %v640, 7
  %v642 = vsub.s32 0, %v641
  %v643 = vrot.slane %v633, %v642
  %v644 = vsel %vm561, %v639, 0.0
  %v645 = vsel %vm562, %v643, 0.0
  %v646 = vsel %vm563, %v639, 0.0
  %v647 = vsel %vm564, %v643, 0.0
  %v648 = vsel %vm565, %v639, 0.0
  %v649 = vsel %vm566, %v643, 0.0
  %v650 = vsel %vm567, %v639, 0.0
  %v651 = vsel %vm568, %v643, 0.0
  %v652 = vsel %vm569, %v639, 0.0
  %v653 = vsel %vm570, %v643, 0.0
  %v654 = vsel %vm571, %v639, 0.0
  %v655 = vsel %vm572, %v643, 0.0
  %v656 = vsel %vm573, %v639, 0.0
  %v657 = vsel %vm574, %v643, 0.0
  %v658 = vsel %vm575, %v639, 0.0
  %v659 = vsel %vm576, %v643, 0.0
  %v660 = vsel %vm577, %v639, 0.0
  %v661 = vsel %vm578, %v643, 0.0
  %v662 = vsel %vm579, %v639, 0.0
  %v663 = vsel %vm580, %v643, 0.0
  %v664 = vsel %vm581, %v639, 0.0
  %v665 = vsel %vm582, %v643, 0.0
  %v666 = vsel %vm583, %v639, 0.0
  %v667 = vsel %vm584, %v643, 0.0
  %v668 = vsel %vm585, %v639, 0.0
  %v669 = vsel %vm586, %v643, 0.0
  %v670 = vsel %vm587, %v639, 0.0
  %v671 = vsel %vm588, %v643, 0.0
  %v672 = vsel %vm589, %v639, 0.0
  %v673 = vsel %vm590, %v643, 0.0
  %v674 = vsel %vm591, %v639, 0.0
  %v675 = vsel %vm592, %v643, 0.0
  %v676 = vsel %vm593, %v639, 0.0
  %v677 = vsel %vm594, %v643, 0.0
  %v678 = vsel %vm595, %v639, 0.0
  %v679 = vsel %vm596, %v643, 0.0
  %v680 = vsel %vm597, %v639, 0.0
  %v681 = vsel %vm598, %v643, 0.0
  %v682 = vsel %vm599, %v639, 0.0
  %v683 = vsel %vm600, %v643, 0.0
  %v684 = vsel %vm601, %v639, 0.0
  %v685 = vsel %vm602, %v643, 0.0
  %v686 = vsel %vm603, %v639, 0.0
  %v687 = vsel %vm604, %v643, 0.0
  %v688 = vsel %vm605, %v639, 0.0
  %v689 = vsel %vm606, %v643, 0.0
  %v690 = vsel %vm607, %v639, 0.0
  %v691 = vsel %vm608, %v643, 0.0
  %v692 = vsel %vm609, %v639, 0.0
  %v693 = vsel %vm610, %v643, 0.0
  %v694 = vsel %vm611, %v639, 0.0
  %v695 = vsel %vm612, %v643, 0.0
  %v696 = vsel %vm613, %v639, 0.0
  %v697 = vsel %vm614, %v643, 0.0
  %v698 = vsel %vm615, %v639, 0.0
  %v699 = vsel %vm616, %v643, 0.0
  %v700 = vsel %vm617, %v639, 0.0
  %v701 = vsel %vm618, %v643, 0.0
  %v702 = vsel %vm619, %v639, 0.0
  %v703 = vsel %vm620, %v643, 0.0
  %v704 = vsel %vm621, %v639, 0.0
  %v705 = vsel %vm622, %v643, 0.0
  %v706 = vsel %vm623, %v639, 0.0
  %v707 = vsel %vm624, %v643, 0.0
  %v708 = vadd.f32 %v481, %v644
  %v709 = vadd.f32 %v482, %v645
  %v710 = vadd.f32 %v483, %v646
  %v711 = vadd.f32 %v484, %v647
  %v712 = vadd.f32 %v485, %v648
  %v713 = vadd.f32 %v486, %v649
  %v714 = vadd.f32 %v487, %v650
  %v715 = vadd.f32 %v488, %v651
  %v716 = vadd.f32 %v489, %v652
  %v717 = vadd.f32 %v490, %v653
  %v718 = vadd.f32 %v491, %v654
  %v719 = vadd.f32 %v492, %v655
  %v720 = vadd.f32 %v493, %v656
  %v721 = vadd.f32 %v494, %v657
  %v722 = vadd.f32 %v495, %v658
  %v723 = vadd.f32 %v496, %v659
  %v724 = vadd.f32 %v497, %v660
  %v725 = vadd.f32 %v498, %v661
  %v726 = vadd.f32 %v499, %v662
  %v727 = vadd.f32 %v500, %v663
  %v728 = vadd.f32 %v501, %v664
  %v729 = vadd.f32 %v502, %v665
  %v730 = vadd.f32 %v503, %v666
  %v731 = vadd.f32 %v504, %v667
  %v732 = vadd.f32 %v505, %v668
  %v733 = vadd.f32 %v506, %v669
  %v734 = vadd.f32 %v507, %v670
  %v735 = vadd.f32 %v508, %v671
  %v736 = vadd.f32 %v509, %v672
  %v737 = vadd.f32 %v510, %v673
  %v738 = vadd.f32 %v511, %v674
  %v739 = vadd.f32 %v512, %v675
  %v740 = vadd.f32 %v513, %v676
  %v741 = vadd.f32 %v514, %v677
  %v742 = vadd.f32 %v515, %v678
  %v743 = vadd.f32 %v516, %v679
  %v744 = vadd.f32 %v517, %v680
  %v745 = vadd.f32 %v518, %v681
  %v746 = vadd.f32 %v519, %v682
  %v747 = vadd.f32 %v520, %v683
  %v748 = vadd.f32 %v521, %v684
  %v749 = vadd.f32 %v522, %v685
  %v750 = vadd.f32 %v523, %v686
  %v751 = vadd.f32 %v524, %v687
  %v752 = vadd.f32 %v525, %v688
  %v753 = vadd.f32 %v526, %v689
  %v754 = vadd.f32 %v527, %v690
  %v755 = vadd.f32 %v528, %v691
  %v756 = vadd.f32 %v529, %v692
  %v757 = vadd.f32 %v530, %v693
  %v758 = vadd.f32 %v531, %v694
  %v759 = vadd.f32 %v532, %v695
  %v760 = vadd.f32 %v533, %v696
  %v761 = vadd.f32 %v534, %v697
  %v762 = vadd.f32 %v535, %v698
  %v763 = vadd.f32 %v536, %v699
  %v764 = vadd.f32 %v537, %v700
  %v765 = vadd.f32 %v538, %v701
  %v766 = vadd.f32 %v539, %v702
  %v767 = vadd.f32 %v540, %v703
  %v768 = vadd.f32 %v541, %v704
  %v769 = vadd.f32 %v542, %v705
  %v770 = vadd.f32 %v543, %v706
  %v771 = vadd.f32 %v544, %v707
  %v772 = vlaneseq
  %v773 = vshrl.u32 %v772, 7
  %v774 = vsub.s32 0, %v773
  %v775 = vrot.slane %v120, %v774
  %v776 = vlaneseq
  %v777 = vshrl.u32 %v776, 7
  %v778 = vsub.s32 2, %v777
  %v779 = vrot.slane %v120, %v778
  %v780 = vlaneseq
  %v781 = vshrl.u32 %v780, 7
  %v782 = vsub.s32 0, %v781
  %v783 = vrot.slane %v775, %v782
  %v784 = vlaneseq
  %v785 = vshrl.u32 %v784, 7
  %v786 = vsub.s32 0, %v785
  %v787 = vrot.slane %v779, %v786
  %vm788 = vcmp.eq.s32.totalorder %v783, %v123
  %vm789 = vcmp.eq.s32.totalorder %v787, %v123
  %vm790 = vcmp.eq.s32.totalorder %v783, %v124
  %vm791 = vcmp.eq.s32.totalorder %v787, %v124
  %vm792 = vcmp.eq.s32.totalorder %v783, %v125
  %vm793 = vcmp.eq.s32.totalorder %v787, %v125
  %vm794 = vcmp.eq.s32.totalorder %v783, %v126
  %vm795 = vcmp.eq.s32.totalorder %v787, %v126
  %vm796 = vcmp.eq.s32.totalorder %v783, %v127
  %vm797 = vcmp.eq.s32.totalorder %v787, %v127
  %vm798 = vcmp.eq.s32.totalorder %v783, %v128
  %vm799 = vcmp.eq.s32.totalorder %v787, %v128
  %vm800 = vcmp.eq.s32.totalorder %v783, %v129
  %vm801 = vcmp.eq.s32.totalorder %v787, %v129
  %vm802 = vcmp.eq.s32.totalorder %v783, %v130
  %vm803 = vcmp.eq.s32.totalorder %v787, %v130
  %vm804 = vcmp.eq.s32.totalorder %v783, %v131
  %vm805 = vcmp.eq.s32.totalorder %v787, %v131
  %vm806 = vcmp.eq.s32.totalorder %v783, %v132
  %vm807 = vcmp.eq.s32.totalorder %v787, %v132
  %vm808 = vcmp.eq.s32.totalorder %v783, %v133
  %vm809 = vcmp.eq.s32.totalorder %v787, %v133
  %vm810 = vcmp.eq.s32.totalorder %v783, %v134
  %vm811 = vcmp.eq.s32.totalorder %v787, %v134
  %vm812 = vcmp.eq.s32.totalorder %v783, %v135
  %vm813 = vcmp.eq.s32.totalorder %v787, %v135
  %vm814 = vcmp.eq.s32.totalorder %v783, %v136
  %vm815 = vcmp.eq.s32.totalorder %v787, %v136
  %vm816 = vcmp.eq.s32.totalorder %v783, %v137
  %vm817 = vcmp.eq.s32.totalorder %v787, %v137
  %vm818 = vcmp.eq.s32.totalorder %v783, %v138
  %vm819 = vcmp.eq.s32.totalorder %v787, %v138
  %vm820 = vcmp.eq.s32.totalorder %v783, %v139
  %vm821 = vcmp.eq.s32.totalorder %v787, %v139
  %vm822 = vcmp.eq.s32.totalorder %v783, %v140
  %vm823 = vcmp.eq.s32.totalorder %v787, %v140
  %vm824 = vcmp.eq.s32.totalorder %v783, %v141
  %vm825 = vcmp.eq.s32.totalorder %v787, %v141
  %vm826 = vcmp.eq.s32.totalorder %v783, %v142
  %vm827 = vcmp.eq.s32.totalorder %v787, %v142
  %vm828 = vcmp.eq.s32.totalorder %v783, %v143
  %vm829 = vcmp.eq.s32.totalorder %v787, %v143
  %vm830 = vcmp.eq.s32.totalorder %v783, %v144
  %vm831 = vcmp.eq.s32.totalorder %v787, %v144
  %vm832 = vcmp.eq.s32.totalorder %v783, %v145
  %vm833 = vcmp.eq.s32.totalorder %v787, %v145
  %vm834 = vcmp.eq.s32.totalorder %v783, %v146
  %vm835 = vcmp.eq.s32.totalorder %v787, %v146
  %vm836 = vcmp.eq.s32.totalorder %v783, %v147
  %vm837 = vcmp.eq.s32.totalorder %v787, %v147
  %vm838 = vcmp.eq.s32.totalorder %v783, %v148
  %vm839 = vcmp.eq.s32.totalorder %v787, %v148
  %vm840 = vcmp.eq.s32.totalorder %v783, %v149
  %vm841 = vcmp.eq.s32.totalorder %v787, %v149
  %vm842 = vcmp.eq.s32.totalorder %v783, %v150
  %vm843 = vcmp.eq.s32.totalorder %v787, %v150
  %vm844 = vcmp.eq.s32.totalorder %v783, %v151
  %vm845 = vcmp.eq.s32.totalorder %v787, %v151
  %vm846 = vcmp.eq.s32.totalorder %v783, %v152
  %vm847 = vcmp.eq.s32.totalorder %v787, %v152
  %vm848 = vcmp.eq.s32.totalorder %v783, %v153
  %vm849 = vcmp.eq.s32.totalorder %v787, %v153
  %vm850 = vcmp.eq.s32.totalorder %v783, %v154
  %vm851 = vcmp.eq.s32.totalorder %v787, %v154
  %v853 = vlaneseq
  %v854 = vshrl.u32 %v853, 7
  %v855 = vsub.s32 0, %v854
  %v856 = vrot.slane %v121, %v855
  %v857 = vlaneseq
  %v858 = vshrl.u32 %v857, 7
  %v859 = vsub.s32 2, %v858
  %v860 = vrot.slane %v121, %v859
  %v863 = vlaneseq
  %v864 = vshrl.u32 %v863, 7
  %v865 = vsub.s32 0, %v864
  %v866 = vrot.slane %v856, %v865
  %v867 = vlaneseq
  %v868 = vshrl.u32 %v867, 7
  %v869 = vsub.s32 0, %v868
  %v870 = vrot.slane %v860, %v869
  %v871 = vsel %vm788, %v866, 0.0
  %v872 = vsel %vm789, %v870, 0.0
  %v873 = vsel %vm790, %v866, 0.0
  %v874 = vsel %vm791, %v870, 0.0
  %v875 = vsel %vm792, %v866, 0.0
  %v876 = vsel %vm793, %v870, 0.0
  %v877 = vsel %vm794, %v866, 0.0
  %v878 = vsel %vm795, %v870, 0.0
  %v879 = vsel %vm796, %v866, 0.0
  %v880 = vsel %vm797, %v870, 0.0
  %v881 = vsel %vm798, %v866, 0.0
  %v882 = vsel %vm799, %v870, 0.0
  %v883 = vsel %vm800, %v866, 0.0
  %v884 = vsel %vm801, %v870, 0.0
  %v885 = vsel %vm802, %v866, 0.0
  %v886 = vsel %vm803, %v870, 0.0
  %v887 = vsel %vm804, %v866, 0.0
  %v888 = vsel %vm805, %v870, 0.0
  %v889 = vsel %vm806, %v866, 0.0
  %v890 = vsel %vm807, %v870, 0.0
  %v891 = vsel %vm808, %v866, 0.0
  %v892 = vsel %vm809, %v870, 0.0
  %v893 = vsel %vm810, %v866, 0.0
  %v894 = vsel %vm811, %v870, 0.0
  %v895 = vsel %vm812, %v866, 0.0
  %v896 = vsel %vm813, %v870, 0.0
  %v897 = vsel %vm814, %v866, 0.0
  %v898 = vsel %vm815, %v870, 0.0
  %v899 = vsel %vm816, %v866, 0.0
  %v900 = vsel %vm817, %v870, 0.0
  %v901 = vsel %vm818, %v866, 0.0
  %v902 = vsel %vm819, %v870, 0.0
  %v903 = vsel %vm820, %v866, 0.0
  %v904 = vsel %vm821, %v870, 0.0
  %v905 = vsel %vm822, %v866, 0.0
  %v906 = vsel %vm823, %v870, 0.0
  %v907 = vsel %vm824, %v866, 0.0
  %v908 = vsel %vm825, %v870, 0.0
  %v909 = vsel %vm826, %v866, 0.0
  %v910 = vsel %vm827, %v870, 0.0
  %v911 = vsel %vm828, %v866, 0.0
  %v912 = vsel %vm829, %v870, 0.0
  %v913 = vsel %vm830, %v866, 0.0
  %v914 = vsel %vm831, %v870, 0.0
  %v915 = vsel %vm832, %v866, 0.0
  %v916 = vsel %vm833, %v870, 0.0
  %v917 = vsel %vm834, %v866, 0.0
  %v918 = vsel %vm835, %v870, 0.0
  %v919 = vsel %vm836, %v866, 0.0
  %v920 = vsel %vm837, %v870, 0.0
  %v921 = vsel %vm838, %v866, 0.0
  %v922 = vsel %vm839, %v870, 0.0
  %v923 = vsel %vm840, %v866, 0.0
  %v924 = vsel %vm841, %v870, 0.0
  %v925 = vsel %vm842, %v866, 0.0
  %v926 = vsel %vm843, %v870, 0.0
  %v927 = vsel %vm844, %v866, 0.0
  %v928 = vsel %vm845, %v870, 0.0
  %v929 = vsel %vm846, %v866, 0.0
  %v930 = vsel %vm847, %v870, 0.0
  %v931 = vsel %vm848, %v866, 0.0
  %v932 = vsel %vm849, %v870, 0.0
  %v933 = vsel %vm850, %v866, 0.0
  %v934 = vsel %vm851, %v870, 0.0
  %v935 = vadd.f32 %v708, %v871
  %v936 = vadd.f32 %v709, %v872
  %v937 = vadd.f32 %v710, %v873
  %v938 = vadd.f32 %v711, %v874
  %v939 = vadd.f32 %v712, %v875
  %v940 = vadd.f32 %v713, %v876
  %v941 = vadd.f32 %v714, %v877
  %v942 = vadd.f32 %v715, %v878
  %v943 = vadd.f32 %v716, %v879
  %v944 = vadd.f32 %v717, %v880
  %v945 = vadd.f32 %v718, %v881
  %v946 = vadd.f32 %v719, %v882
  %v947 = vadd.f32 %v720, %v883
  %v948 = vadd.f32 %v721, %v884
  %v949 = vadd.f32 %v722, %v885
  %v950 = vadd.f32 %v723, %v886
  %v951 = vadd.f32 %v724, %v887
  %v952 = vadd.f32 %v725, %v888
  %v953 = vadd.f32 %v726, %v889
  %v954 = vadd.f32 %v727, %v890
  %v955 = vadd.f32 %v728, %v891
  %v956 = vadd.f32 %v729, %v892
  %v957 = vadd.f32 %v730, %v893
  %v958 = vadd.f32 %v731, %v894
  %v959 = vadd.f32 %v732, %v895
  %v960 = vadd.f32 %v733, %v896
  %v961 = vadd.f32 %v734, %v897
  %v962 = vadd.f32 %v735, %v898
  %v963 = vadd.f32 %v736, %v899
  %v964 = vadd.f32 %v737, %v900
  %v965 = vadd.f32 %v738, %v901
  %v966 = vadd.f32 %v739, %v902
  %v967 = vadd.f32 %v740, %v903
  %v968 = vadd.f32 %v741, %v904
  %v969 = vadd.f32 %v742, %v905
  %v970 = vadd.f32 %v743, %v906
  %v971 = vadd.f32 %v744, %v907
  %v972 = vadd.f32 %v745, %v908
  %v973 = vadd.f32 %v746, %v909
  %v974 = vadd.f32 %v747, %v910
  %v975 = vadd.f32 %v748, %v911
  %v976 = vadd.f32 %v749, %v912
  %v977 = vadd.f32 %v750, %v913
  %v978 = vadd.f32 %v751, %v914
  %v979 = vadd.f32 %v752, %v915
  %v980 = vadd.f32 %v753, %v916
  %v981 = vadd.f32 %v754, %v917
  %v982 = vadd.f32 %v755, %v918
  %v983 = vadd.f32 %v756, %v919
  %v984 = vadd.f32 %v757, %v920
  %v985 = vadd.f32 %v758, %v921
  %v986 = vadd.f32 %v759, %v922
  %v987 = vadd.f32 %v760, %v923
  %v988 = vadd.f32 %v761, %v924
  %v989 = vadd.f32 %v762, %v925
  %v990 = vadd.f32 %v763, %v926
  %v991 = vadd.f32 %v764, %v927
  %v992 = vadd.f32 %v765, %v928
  %v993 = vadd.f32 %v766, %v929
  %v994 = vadd.f32 %v767, %v930
  %v995 = vadd.f32 %v768, %v931
  %v996 = vadd.f32 %v769, %v932
  %v997 = vadd.f32 %v770, %v933
  %v998 = vadd.f32 %v771, %v934
  %v999 = vld [vmem:[%s2] sm:$0xff]
  %v1000 = vld [vmem:[%s2 + $0x8] sm:$0xff]
  %1001 = vmatprep.subr.mxu0 %v936
  %1002 = vmatpush1.msra.mxu0 %v935
  %1003 = vmatprep.subr.mxu0 %v938
  %1004 = vmatpush1.msra.mxu0 %v937
  %1005 = vmatprep.subr.mxu0 %v940
  %1006 = vmatpush1.msra.mxu0 %v939
  %1007 = vmatprep.subr.mxu0 %v942
  %1008 = vmatpush1.msra.mxu0 %v941
  %1009 = vmatprep.subr.mxu0 %v944
  %1010 = vmatpush1.msra.mxu0 %v943
  %1011 = vmatprep.subr.mxu0 %v946
  %1012 = vmatpush1.msra.mxu0 %v945
  %1013 = vmatprep.subr.mxu0 %v948
  %1014 = vmatpush1.msra.mxu0 %v947
  %1015 = vmatprep.subr.mxu0 %v950
  %1016 = vmatpush1.msra.mxu0 %v949
  %1017 = vmatprep.subr.mxu0 %v952
  %1018 = vmatpush1.msra.mxu0 %v951
  %1019 = vmatprep.subr.mxu0 %v954
  %1020 = vmatpush1.msra.mxu0 %v953
  %1021 = vmatprep.subr.mxu0 %v956
  %1022 = vmatpush1.msra.mxu0 %v955
  %1023 = vmatprep.subr.mxu0 %v958
  %1024 = vmatpush1.msra.mxu0 %v957
  %1025 = vmatprep.subr.mxu0 %v960
  %1026 = vmatpush1.msra.mxu0 %v959
  %1027 = vmatprep.subr.mxu0 %v962
  %1028 = vmatpush1.msra.mxu0 %v961
  %1029 = vmatprep.subr.mxu0 %v964
  %1030 = vmatpush1.msra.mxu0 %v963
  %1031 = vmatprep.subr.mxu0 %v966
  %1032 = vmatpush1.msra.mxu0 %v965
  %1033 = vmatprep.subr.mxu0 %v968
  %1034 = vmatpush1.msra.mxu0 %v967
  %1035 = vmatprep.subr.mxu0 %v970
  %1036 = vmatpush1.msra.mxu0 %v969
  %1037 = vmatprep.subr.mxu0 %v972
  %1038 = vmatpush1.msra.mxu0 %v971
  %1039 = vmatprep.subr.mxu0 %v974
  %1040 = vmatpush1.msra.mxu0 %v973
  %1041 = vmatprep.subr.mxu0 %v976
  %1042 = vmatpush1.msra.mxu0 %v975
  %1043 = vmatprep.subr.mxu0 %v978
  %1044 = vmatpush1.msra.mxu0 %v977
  %1045 = vmatprep.subr.mxu0 %v980
  %1046 = vmatpush1.msra.mxu0 %v979
  %1047 = vmatprep.subr.mxu0 %v982
  %1048 = vmatpush1.msra.mxu0 %v981
  %1049 = vmatprep.subr.mxu0 %v984
  %1050 = vmatpush1.msra.mxu0 %v983
  %1051 = vmatprep.subr.mxu0 %v986
  %1052 = vmatpush1.msra.mxu0 %v985
  %1053 = vmatprep.subr.mxu0 %v988
  %1054 = vmatpush1.msra.mxu0 %v987
  %1055 = vmatprep.subr.mxu0 %v990
  %1056 = vmatpush1.msra.mxu0 %v989
  %1057 = vmatprep.subr.mxu0 %v992
  %1058 = vmatpush1.msra.mxu0 %v991
  %1059 = vmatprep.subr.mxu0 %v994
  %1060 = vmatpush1.msra.mxu0 %v993
  %1061 = vmatprep.subr.mxu0 %v996
  %1062 = vmatpush1.msra.mxu0 %v995
  %1063 = vmatprep.subr.mxu0 %v998
  %1064 = vmatpush1.msra.mxu0 %v997
  %1065 = vmatprep.mubr.f32.mxu0 %v1000
  %1066 = vmatmul.mubr.f32.gmra.mrb[0].mxu0 %v999
  %v1067 = vpop.f32.mrb[0].mxu0
  %v1068 = vadd.f32 0.0, %v1067
  %v1069 = vpop.f32.mrb[0].mxu0
  %v1070 = vadd.f32 0.0, %v1069
  %1071 = vdwg.mxu0
  %v1072 = vlaneseq
  %v1073 = vshrl.u32 %v1072, 7
  %v1074 = vsub.s32 1, %v1073
  %v1075 = vrot.slane %v113, %v1074
  %v1076 = vlaneseq
  %v1077 = vshrl.u32 %v1076, 7
  %v1078 = vsub.s32 3, %v1077
  %v1079 = vrot.slane %v113, %v1078
  %v1080 = vlaneseq
  %v1081 = vshrl.u32 %v1080, 7
  %v1082 = vsub.s32 1, %v1081
  %v1083 = vrot.slane %v1075, %v1082
  %v1084 = vlaneseq
  %v1085 = vshrl.u32 %v1084, 7
  %v1086 = vsub.s32 1, %v1085
  %v1087 = vrot.slane %v1079, %v1086
  %vm1088 = vcmp.eq.s32.totalorder %v1083, %v123
  %vm1089 = vcmp.eq.s32.totalorder %v1087, %v123
  %vm1090 = vcmp.eq.s32.totalorder %v1083, %v124
  %vm1091 = vcmp.eq.s32.totalorder %v1087, %v124
  %vm1092 = vcmp.eq.s32.totalorder %v1083, %v125
  %vm1093 = vcmp.eq.s32.totalorder %v1087, %v125
  %vm1094 = vcmp.eq.s32.totalorder %v1083, %v126
  %vm1095 = vcmp.eq.s32.totalorder %v1087, %v126
  %vm1096 = vcmp.eq.s32.totalorder %v1083, %v127
  %vm1097 = vcmp.eq.s32.totalorder %v1087, %v127
  %vm1098 = vcmp.eq.s32.totalorder %v1083, %v128
  %vm1099 = vcmp.eq.s32.totalorder %v1087, %v128
  %vm1100 = vcmp.eq.s32.totalorder %v1083, %v129
  %vm1101 = vcmp.eq.s32.totalorder %v1087, %v129
  %vm1102 = vcmp.eq.s32.totalorder %v1083, %v130
  %vm1103 = vcmp.eq.s32.totalorder %v1087, %v130
  %vm1104 = vcmp.eq.s32.totalorder %v1083, %v131
  %vm1105 = vcmp.eq.s32.totalorder %v1087, %v131
  %vm1106 = vcmp.eq.s32.totalorder %v1083, %v132
  %vm1107 = vcmp.eq.s32.totalorder %v1087, %v132
  %vm1108 = vcmp.eq.s32.totalorder %v1083, %v133
  %vm1109 = vcmp.eq.s32.totalorder %v1087, %v133
  %vm1110 = vcmp.eq.s32.totalorder %v1083, %v134
  %vm1111 = vcmp.eq.s32.totalorder %v1087, %v134
  %vm1112 = vcmp.eq.s32.totalorder %v1083, %v135
  %vm1113 = vcmp.eq.s32.totalorder %v1087, %v135
  %vm1114 = vcmp.eq.s32.totalorder %v1083, %v136
  %vm1115 = vcmp.eq.s32.totalorder %v1087, %v136
  %vm1116 = vcmp.eq.s32.totalorder %v1083, %v137
  %vm1117 = vcmp.eq.s32.totalorder %v1087, %v137
  %vm1118 = vcmp.eq.s32.totalorder %v1083, %v138
  %vm1119 = vcmp.eq.s32.totalorder %v1087, %v138
  %vm1120 = vcmp.eq.s32.totalorder %v1083, %v139
  %vm1121 = vcmp.eq.s32.totalorder %v1087, %v139
  %vm1122 = vcmp.eq.s32.totalorder %v1083, %v140
  %vm1123 = vcmp.eq.s32.totalorder %v1087, %v140
  %vm1124 = vcmp.eq.s32.totalorder %v1083, %v141
  %vm1125 = vcmp.eq.s32.totalorder %v1087, %v141
  %vm1126 = vcmp.eq.s32.totalorder %v1083, %v142
  %vm1127 = vcmp.eq.s32.totalorder %v1087, %v142
  %vm1128 = vcmp.eq.s32.totalorder %v1083, %v143
  %vm1129 = vcmp.eq.s32.totalorder %v1087, %v143
  %vm1130 = vcmp.eq.s32.totalorder %v1083, %v144
  %vm1131 = vcmp.eq.s32.totalorder %v1087, %v144
  %vm1132 = vcmp.eq.s32.totalorder %v1083, %v145
  %vm1133 = vcmp.eq.s32.totalorder %v1087, %v145
  %vm1134 = vcmp.eq.s32.totalorder %v1083, %v146
  %vm1135 = vcmp.eq.s32.totalorder %v1087, %v146
  %vm1136 = vcmp.eq.s32.totalorder %v1083, %v147
  %vm1137 = vcmp.eq.s32.totalorder %v1087, %v147
  %vm1138 = vcmp.eq.s32.totalorder %v1083, %v148
  %vm1139 = vcmp.eq.s32.totalorder %v1087, %v148
  %vm1140 = vcmp.eq.s32.totalorder %v1083, %v149
  %vm1141 = vcmp.eq.s32.totalorder %v1087, %v149
  %vm1142 = vcmp.eq.s32.totalorder %v1083, %v150
  %vm1143 = vcmp.eq.s32.totalorder %v1087, %v150
  %vm1144 = vcmp.eq.s32.totalorder %v1083, %v151
  %vm1145 = vcmp.eq.s32.totalorder %v1087, %v151
  %vm1146 = vcmp.eq.s32.totalorder %v1083, %v152
  %vm1147 = vcmp.eq.s32.totalorder %v1087, %v152
  %vm1148 = vcmp.eq.s32.totalorder %v1083, %v153
  %vm1149 = vcmp.eq.s32.totalorder %v1087, %v153
  %vm1150 = vcmp.eq.s32.totalorder %v1083, %v154
  %vm1151 = vcmp.eq.s32.totalorder %v1087, %v154
  %v1152 = vlaneseq
  %v1153 = vshrl.u32 %v1152, 7
  %v1154 = vsub.s32 1, %v1153
  %v1155 = vrot.slane %v114, %v1154
  %v1156 = vlaneseq
  %v1157 = vshrl.u32 %v1156, 7
  %v1158 = vsub.s32 3, %v1157
  %v1159 = vrot.slane %v114, %v1158
  %v1162 = vlaneseq
  %v1163 = vshrl.u32 %v1162, 7
  %v1164 = vsub.s32 1, %v1163
  %v1165 = vrot.slane %v1155, %v1164
  %v1166 = vlaneseq
  %v1167 = vshrl.u32 %v1166, 7
  %v1168 = vsub.s32 1, %v1167
  %v1169 = vrot.slane %v1159, %v1168
  %v1170 = vsel %vm1088, %v1165, 0.0
  %v1171 = vsel %vm1089, %v1169, 0.0
  %v1172 = vsel %vm1090, %v1165, 0.0
  %v1173 = vsel %vm1091, %v1169, 0.0
  %v1174 = vsel %vm1092, %v1165, 0.0
  %v1175 = vsel %vm1093, %v1169, 0.0
  %v1176 = vsel %vm1094, %v1165, 0.0
  %v1177 = vsel %vm1095, %v1169, 0.0
  %v1178 = vsel %vm1096, %v1165, 0.0
  %v1179 = vsel %vm1097, %v1169, 0.0
  %v1180 = vsel %vm1098, %v1165, 0.0
  %v1181 = vsel %vm1099, %v1169, 0.0
  %v1182 = vsel %vm1100, %v1165, 0.0
  %v1183 = vsel %vm1101, %v1169, 0.0
  %v1184 = vsel %vm1102, %v1165, 0.0
  %v1185 = vsel %vm1103, %v1169, 0.0
  %v1186 = vsel %vm1104, %v1165, 0.0
  %v1187 = vsel %vm1105, %v1169, 0.0
  %v1188 = vsel %vm1106, %v1165, 0.0
  %v1189 = vsel %vm1107, %v1169, 0.0
  %v1190 = vsel %vm1108, %v1165, 0.0
  %v1191 = vsel %vm1109, %v1169, 0.0
  %v1192 = vsel %vm1110, %v1165, 0.0
  %v1193 = vsel %vm1111, %v1169, 0.0
  %v1194 = vsel %vm1112, %v1165, 0.0
  %v1195 = vsel %vm1113, %v1169, 0.0
  %v1196 = vsel %vm1114, %v1165, 0.0
  %v1197 = vsel %vm1115, %v1169, 0.0
  %v1198 = vsel %vm1116, %v1165, 0.0
  %v1199 = vsel %vm1117, %v1169, 0.0
  %v1200 = vsel %vm1118, %v1165, 0.0
  %v1201 = vsel %vm1119, %v1169, 0.0
  %v1202 = vsel %vm1120, %v1165, 0.0
  %v1203 = vsel %vm1121, %v1169, 0.0
  %v1204 = vsel %vm1122, %v1165, 0.0
  %v1205 = vsel %vm1123, %v1169, 0.0
  %v1206 = vsel %vm1124, %v1165, 0.0
  %v1207 = vsel %vm1125, %v1169, 0.0
  %v1208 = vsel %vm1126, %v1165, 0.0
  %v1209 = vsel %vm1127, %v1169, 0.0
  %v1210 = vsel %vm1128, %v1165, 0.0
  %v1211 = vsel %vm1129, %v1169, 0.0
  %v1212 = vsel %vm1130, %v1165, 0.0
  %v1213 = vsel %vm1131, %v1169, 0.0
  %v1214 = vsel %vm1132, %v1165, 0.0
  %v1215 = vsel %vm1133, %v1169, 0.0
  %v1216 = vsel %vm1134, %v1165, 0.0
  %v1217 = vsel %vm1135, %v1169, 0.0
  %v1218 = vsel %vm1136, %v1165, 0.0
  %v1219 = vsel %vm1137, %v1169, 0.0
  %v1220 = vsel %vm1138, %v1165, 0.0
  %v1221 = vsel %vm1139, %v1169, 0.0
  %v1222 = vsel %vm1140, %v1165, 0.0
  %v1223 = vsel %vm1141, %v1169, 0.0
  %v1224 = vsel %vm1142, %v1165, 0.0
  %v1225 = vsel %vm1143, %v1169, 0.0
  %v1226 = vsel %vm1144, %v1165, 0.0
  %v1227 = vsel %vm1145, %v1169, 0.0
  %v1228 = vsel %vm1146, %v1165, 0.0
  %v1229 = vsel %vm1147, %v1169, 0.0
  %v1230 = vsel %vm1148, %v1165, 0.0
  %v1231 = vsel %vm1149, %v1169, 0.0
  %v1232 = vsel %vm1150, %v1165, 0.0
  %v1233 = vsel %vm1151, %v1169, 0.0
  %v1234 = vlaneseq
  %v1235 = vshrl.u32 %v1234, 7
  %v1236 = vsub.s32 1, %v1235
  %v1237 = vrot.slane %v115, %v1236
  %v1238 = vlaneseq
  %v1239 = vshrl.u32 %v1238, 7
  %v1240 = vsub.s32 3, %v1239
  %v1241 = vrot.slane %v115, %v1240
  %v1242 = vlaneseq
  %v1243 = vshrl.u32 %v1242, 7
  %v1244 = vsub.s32 1, %v1243
  %v1245 = vrot.slane %v1237, %v1244
  %v1246 = vlaneseq
  %v1247 = vshrl.u32 %v1246, 7
  %v1248 = vsub.s32 1, %v1247
  %v1249 = vrot.slane %v1241, %v1248
  %vm1250 = vcmp.eq.s32.totalorder %v1245, %v123
  %vm1251 = vcmp.eq.s32.totalorder %v1249, %v123
  %vm1252 = vcmp.eq.s32.totalorder %v1245, %v124
  %vm1253 = vcmp.eq.s32.totalorder %v1249, %v124
  %vm1254 = vcmp.eq.s32.totalorder %v1245, %v125
  %vm1255 = vcmp.eq.s32.totalorder %v1249, %v125
  %vm1256 = vcmp.eq.s32.totalorder %v1245, %v126
  %vm1257 = vcmp.eq.s32.totalorder %v1249, %v126
  %vm1258 = vcmp.eq.s32.totalorder %v1245, %v127
  %vm1259 = vcmp.eq.s32.totalorder %v1249, %v127
  %vm1260 = vcmp.eq.s32.totalorder %v1245, %v128
  %vm1261 = vcmp.eq.s32.totalorder %v1249, %v128
  %vm1262 = vcmp.eq.s32.totalorder %v1245, %v129
  %vm1263 = vcmp.eq.s32.totalorder %v1249, %v129
  %vm1264 = vcmp.eq.s32.totalorder %v1245, %v130
  %vm1265 = vcmp.eq.s32.totalorder %v1249, %v130
  %vm1266 = vcmp.eq.s32.totalorder %v1245, %v131
  %vm1267 = vcmp.eq.s32.totalorder %v1249, %v131
  %vm1268 = vcmp.eq.s32.totalorder %v1245, %v132
  %vm1269 = vcmp.eq.s32.totalorder %v1249, %v132
  %vm1270 = vcmp.eq.s32.totalorder %v1245, %v133
  %vm1271 = vcmp.eq.s32.totalorder %v1249, %v133
  %vm1272 = vcmp.eq.s32.totalorder %v1245, %v134
  %vm1273 = vcmp.eq.s32.totalorder %v1249, %v134
  %vm1274 = vcmp.eq.s32.totalorder %v1245, %v135
  %vm1275 = vcmp.eq.s32.totalorder %v1249, %v135
  %vm1276 = vcmp.eq.s32.totalorder %v1245, %v136
  %vm1277 = vcmp.eq.s32.totalorder %v1249, %v136
  %vm1278 = vcmp.eq.s32.totalorder %v1245, %v137
  %vm1279 = vcmp.eq.s32.totalorder %v1249, %v137
  %vm1280 = vcmp.eq.s32.totalorder %v1245, %v138
  %vm1281 = vcmp.eq.s32.totalorder %v1249, %v138
  %vm1282 = vcmp.eq.s32.totalorder %v1245, %v139
  %vm1283 = vcmp.eq.s32.totalorder %v1249, %v139
  %vm1284 = vcmp.eq.s32.totalorder %v1245, %v140
  %vm1285 = vcmp.eq.s32.totalorder %v1249, %v140
  %vm1286 = vcmp.eq.s32.totalorder %v1245, %v141
  %vm1287 = vcmp.eq.s32.totalorder %v1249, %v141
  %vm1288 = vcmp.eq.s32.totalorder %v1245, %v142
  %vm1289 = vcmp.eq.s32.totalorder %v1249, %v142
  %vm1290 = vcmp.eq.s32.totalorder %v1245, %v143
  %vm1291 = vcmp.eq.s32.totalorder %v1249, %v143
  %vm1292 = vcmp.eq.s32.totalorder %v1245, %v144
  %vm1293 = vcmp.eq.s32.totalorder %v1249, %v144
  %vm1294 = vcmp.eq.s32.totalorder %v1245, %v145
  %vm1295 = vcmp.eq.s32.totalorder %v1249, %v145
  %vm1296 = vcmp.eq.s32.totalorder %v1245, %v146
  %vm1297 = vcmp.eq.s32.totalorder %v1249, %v146
  %vm1298 = vcmp.eq.s32.totalorder %v1245, %v147
  %vm1299 = vcmp.eq.s32.totalorder %v1249, %v147
  %vm1300 = vcmp.eq.s32.totalorder %v1245, %v148
  %vm1301 = vcmp.eq.s32.totalorder %v1249, %v148
  %vm1302 = vcmp.eq.s32.totalorder %v1245, %v149
  %vm1303 = vcmp.eq.s32.totalorder %v1249, %v149
  %vm1304 = vcmp.eq.s32.totalorder %v1245, %v150
  %vm1305 = vcmp.eq.s32.totalorder %v1249, %v150
  %vm1306 = vcmp.eq.s32.totalorder %v1245, %v151
  %vm1307 = vcmp.eq.s32.totalorder %v1249, %v151
  %vm1308 = vcmp.eq.s32.totalorder %v1245, %v152
  %vm1309 = vcmp.eq.s32.totalorder %v1249, %v152
  %vm1310 = vcmp.eq.s32.totalorder %v1245, %v153
  %vm1311 = vcmp.eq.s32.totalorder %v1249, %v153
  %vm1312 = vcmp.eq.s32.totalorder %v1245, %v154
  %vm1313 = vcmp.eq.s32.totalorder %v1249, %v154
  %v1314 = vlaneseq
  %v1315 = vshrl.u32 %v1314, 7
  %v1316 = vsub.s32 1, %v1315
  %v1317 = vrot.slane %v116, %v1316
  %v1318 = vlaneseq
  %v1319 = vshrl.u32 %v1318, 7
  %v1320 = vsub.s32 3, %v1319
  %v1321 = vrot.slane %v116, %v1320
  %v1324 = vlaneseq
  %v1325 = vshrl.u32 %v1324, 7
  %v1326 = vsub.s32 1, %v1325
  %v1327 = vrot.slane %v1317, %v1326
  %v1328 = vlaneseq
  %v1329 = vshrl.u32 %v1328, 7
  %v1330 = vsub.s32 1, %v1329
  %v1331 = vrot.slane %v1321, %v1330
  %v1332 = vsel %vm1250, %v1327, 0.0
  %v1333 = vsel %vm1251, %v1331, 0.0
  %v1334 = vsel %vm1252, %v1327, 0.0
  %v1335 = vsel %vm1253, %v1331, 0.0
  %v1336 = vsel %vm1254, %v1327, 0.0
  %v1337 = vsel %vm1255, %v1331, 0.0
  %v1338 = vsel %vm1256, %v1327, 0.0
  %v1339 = vsel %vm1257, %v1331, 0.0
  %v1340 = vsel %vm1258, %v1327, 0.0
  %v1341 = vsel %vm1259, %v1331, 0.0
  %v1342 = vsel %vm1260, %v1327, 0.0
  %v1343 = vsel %vm1261, %v1331, 0.0
  %v1344 = vsel %vm1262, %v1327, 0.0
  %v1345 = vsel %vm1263, %v1331, 0.0
  %v1346 = vsel %vm1264, %v1327, 0.0
  %v1347 = vsel %vm1265, %v1331, 0.0
  %v1348 = vsel %vm1266, %v1327, 0.0
  %v1349 = vsel %vm1267, %v1331, 0.0
  %v1350 = vsel %vm1268, %v1327, 0.0
  %v1351 = vsel %vm1269, %v1331, 0.0
  %v1352 = vsel %vm1270, %v1327, 0.0
  %v1353 = vsel %vm1271, %v1331, 0.0
  %v1354 = vsel %vm1272, %v1327, 0.0
  %v1355 = vsel %vm1273, %v1331, 0.0
  %v1356 = vsel %vm1274, %v1327, 0.0
  %v1357 = vsel %vm1275, %v1331, 0.0
  %v1358 = vsel %vm1276, %v1327, 0.0
  %v1359 = vsel %vm1277, %v1331, 0.0
  %v1360 = vsel %vm1278, %v1327, 0.0
  %v1361 = vsel %vm1279, %v1331, 0.0
  %v1362 = vsel %vm1280, %v1327, 0.0
  %v1363 = vsel %vm1281, %v1331, 0.0
  %v1364 = vsel %vm1282, %v1327, 0.0
  %v1365 = vsel %vm1283, %v1331, 0.0
  %v1366 = vsel %vm1284, %v1327, 0.0
  %v1367 = vsel %vm1285, %v1331, 0.0
  %v1368 = vsel %vm1286, %v1327, 0.0
  %v1369 = vsel %vm1287, %v1331, 0.0
  %v1370 = vsel %vm1288, %v1327, 0.0
  %v1371 = vsel %vm1289, %v1331, 0.0
  %v1372 = vsel %vm1290, %v1327, 0.0
  %v1373 = vsel %vm1291, %v1331, 0.0
  %v1374 = vsel %vm1292, %v1327, 0.0
  %v1375 = vsel %vm1293, %v1331, 0.0
  %v1376 = vsel %vm1294, %v1327, 0.0
  %v1377 = vsel %vm1295, %v1331, 0.0
  %v1378 = vsel %vm1296, %v1327, 0.0
  %v1379 = vsel %vm1297, %v1331, 0.0
  %v1380 = vsel %vm1298, %v1327, 0.0
  %v1381 = vsel %vm1299, %v1331, 0.0
  %v1382 = vsel %vm1300, %v1327, 0.0
  %v1383 = vsel %vm1301, %v1331, 0.0
  %v1384 = vsel %vm1302, %v1327, 0.0
  %v1385 = vsel %vm1303, %v1331, 0.0
  %v1386 = vsel %vm1304, %v1327, 0.0
  %v1387 = vsel %vm1305, %v1331, 0.0
  %v1388 = vsel %vm1306, %v1327, 0.0
  %v1389 = vsel %vm1307, %v1331, 0.0
  %v1390 = vsel %vm1308, %v1327, 0.0
  %v1391 = vsel %vm1309, %v1331, 0.0
  %v1392 = vsel %vm1310, %v1327, 0.0
  %v1393 = vsel %vm1311, %v1331, 0.0
  %v1394 = vsel %vm1312, %v1327, 0.0
  %v1395 = vsel %vm1313, %v1331, 0.0
  %v1396 = vadd.f32 %v1170, %v1332
  %v1397 = vadd.f32 %v1171, %v1333
  %v1398 = vadd.f32 %v1172, %v1334
  %v1399 = vadd.f32 %v1173, %v1335
  %v1400 = vadd.f32 %v1174, %v1336
  %v1401 = vadd.f32 %v1175, %v1337
  %v1402 = vadd.f32 %v1176, %v1338
  %v1403 = vadd.f32 %v1177, %v1339
  %v1404 = vadd.f32 %v1178, %v1340
  %v1405 = vadd.f32 %v1179, %v1341
  %v1406 = vadd.f32 %v1180, %v1342
  %v1407 = vadd.f32 %v1181, %v1343
  %v1408 = vadd.f32 %v1182, %v1344
  %v1409 = vadd.f32 %v1183, %v1345
  %v1410 = vadd.f32 %v1184, %v1346
  %v1411 = vadd.f32 %v1185, %v1347
  %v1412 = vadd.f32 %v1186, %v1348
  %v1413 = vadd.f32 %v1187, %v1349
  %v1414 = vadd.f32 %v1188, %v1350
  %v1415 = vadd.f32 %v1189, %v1351
  %v1416 = vadd.f32 %v1190, %v1352
  %v1417 = vadd.f32 %v1191, %v1353
  %v1418 = vadd.f32 %v1192, %v1354
  %v1419 = vadd.f32 %v1193, %v1355
  %v1420 = vadd.f32 %v1194, %v1356
  %v1421 = vadd.f32 %v1195, %v1357
  %v1422 = vadd.f32 %v1196, %v1358
  %v1423 = vadd.f32 %v1197, %v1359
  %v1424 = vadd.f32 %v1198, %v1360
  %v1425 = vadd.f32 %v1199, %v1361
  %v1426 = vadd.f32 %v1200, %v1362
  %v1427 = vadd.f32 %v1201, %v1363
  %v1428 = vadd.f32 %v1202, %v1364
  %v1429 = vadd.f32 %v1203, %v1365
  %v1430 = vadd.f32 %v1204, %v1366
  %v1431 = vadd.f32 %v1205, %v1367
  %v1432 = vadd.f32 %v1206, %v1368
  %v1433 = vadd.f32 %v1207, %v1369
  %v1434 = vadd.f32 %v1208, %v1370
  %v1435 = vadd.f32 %v1209, %v1371
  %v1436 = vadd.f32 %v1210, %v1372
  %v1437 = vadd.f32 %v1211, %v1373
  %v1438 = vadd.f32 %v1212, %v1374
  %v1439 = vadd.f32 %v1213, %v1375
  %v1440 = vadd.f32 %v1214, %v1376
  %v1441 = vadd.f32 %v1215, %v1377
  %v1442 = vadd.f32 %v1216, %v1378
  %v1443 = vadd.f32 %v1217, %v1379
  %v1444 = vadd.f32 %v1218, %v1380
  %v1445 = vadd.f32 %v1219, %v1381
  %v1446 = vadd.f32 %v1220, %v1382
  %v1447 = vadd.f32 %v1221, %v1383
  %v1448 = vadd.f32 %v1222, %v1384
  %v1449 = vadd.f32 %v1223, %v1385
  %v1450 = vadd.f32 %v1224, %v1386
  %v1451 = vadd.f32 %v1225, %v1387
  %v1452 = vadd.f32 %v1226, %v1388
  %v1453 = vadd.f32 %v1227, %v1389
  %v1454 = vadd.f32 %v1228, %v1390
  %v1455 = vadd.f32 %v1229, %v1391
  %v1456 = vadd.f32 %v1230, %v1392
  %v1457 = vadd.f32 %v1231, %v1393
  %v1458 = vadd.f32 %v1232, %v1394
  %v1459 = vadd.f32 %v1233, %v1395
  %v1460 = vlaneseq
  %v1461 = vshrl.u32 %v1460, 7
  %v1462 = vsub.s32 1, %v1461
  %v1463 = vrot.slane %v118, %v1462
  %v1464 = vlaneseq
  %v1465 = vshrl.u32 %v1464, 7
  %v1466 = vsub.s32 3, %v1465
  %v1467 = vrot.slane %v118, %v1466
  %v1468 = vlaneseq
  %v1469 = vshrl.u32 %v1468, 7
  %v1470 = vsub.s32 1, %v1469
  %v1471 = vrot.slane %v1463, %v1470
  %v1472 = vlaneseq
  %v1473 = vshrl.u32 %v1472, 7
  %v1474 = vsub.s32 1, %v1473
  %v1475 = vrot.slane %v1467, %v1474
  %vm1476 = vcmp.eq.s32.totalorder %v1471, %v123
  %vm1477 = vcmp.eq.s32.totalorder %v1475, %v123
  %vm1478 = vcmp.eq.s32.totalorder %v1471, %v124
  %vm1479 = vcmp.eq.s32.totalorder %v1475, %v124
  %vm1480 = vcmp.eq.s32.totalorder %v1471, %v125
  %vm1481 = vcmp.eq.s32.totalorder %v1475, %v125
  %vm1482 = vcmp.eq.s32.totalorder %v1471, %v126
  %vm1483 = vcmp.eq.s32.totalorder %v1475, %v126
  %vm1484 = vcmp.eq.s32.totalorder %v1471, %v127
  %vm1485 = vcmp.eq.s32.totalorder %v1475, %v127
  %vm1486 = vcmp.eq.s32.totalorder %v1471, %v128
  %vm1487 = vcmp.eq.s32.totalorder %v1475, %v128
  %vm1488 = vcmp.eq.s32.totalorder %v1471, %v129
  %vm1489 = vcmp.eq.s32.totalorder %v1475, %v129
  %vm1490 = vcmp.eq.s32.totalorder %v1471, %v130
  %vm1491 = vcmp.eq.s32.totalorder %v1475, %v130
  %vm1492 = vcmp.eq.s32.totalorder %v1471, %v131
  %vm1493 = vcmp.eq.s32.totalorder %v1475, %v131
  %vm1494 = vcmp.eq.s32.totalorder %v1471, %v132
  %vm1495 = vcmp.eq.s32.totalorder %v1475, %v132
  %vm1496 = vcmp.eq.s32.totalorder %v1471, %v133
  %vm1497 = vcmp.eq.s32.totalorder %v1475, %v133
  %vm1498 = vcmp.eq.s32.totalorder %v1471, %v134
  %vm1499 = vcmp.eq.s32.totalorder %v1475, %v134
  %vm1500 = vcmp.eq.s32.totalorder %v1471, %v135
  %vm1501 = vcmp.eq.s32.totalorder %v1475, %v135
  %vm1502 = vcmp.eq.s32.totalorder %v1471, %v136
  %vm1503 = vcmp.eq.s32.totalorder %v1475, %v136
  %vm1504 = vcmp.eq.s32.totalorder %v1471, %v137
  %vm1505 = vcmp.eq.s32.totalorder %v1475, %v137
  %vm1506 = vcmp.eq.s32.totalorder %v1471, %v138
  %vm1507 = vcmp.eq.s32.totalorder %v1475, %v138
  %vm1508 = vcmp.eq.s32.totalorder %v1471, %v139
  %vm1509 = vcmp.eq.s32.totalorder %v1475, %v139
  %vm1510 = vcmp.eq.s32.totalorder %v1471, %v140
  %vm1511 = vcmp.eq.s32.totalorder %v1475, %v140
  %vm1512 = vcmp.eq.s32.totalorder %v1471, %v141
  %vm1513 = vcmp.eq.s32.totalorder %v1475, %v141
  %vm1514 = vcmp.eq.s32.totalorder %v1471, %v142
  %vm1515 = vcmp.eq.s32.totalorder %v1475, %v142
  %vm1516 = vcmp.eq.s32.totalorder %v1471, %v143
  %vm1517 = vcmp.eq.s32.totalorder %v1475, %v143
  %vm1518 = vcmp.eq.s32.totalorder %v1471, %v144
  %vm1519 = vcmp.eq.s32.totalorder %v1475, %v144
  %vm1520 = vcmp.eq.s32.totalorder %v1471, %v145
  %vm1521 = vcmp.eq.s32.totalorder %v1475, %v145
  %vm1522 = vcmp.eq.s32.totalorder %v1471, %v146
  %vm1523 = vcmp.eq.s32.totalorder %v1475, %v146
  %vm1524 = vcmp.eq.s32.totalorder %v1471, %v147
  %vm1525 = vcmp.eq.s32.totalorder %v1475, %v147
  %vm1526 = vcmp.eq.s32.totalorder %v1471, %v148
  %vm1527 = vcmp.eq.s32.totalorder %v1475, %v148
  %vm1528 = vcmp.eq.s32.totalorder %v1471, %v149
  %vm1529 = vcmp.eq.s32.totalorder %v1475, %v149
  %vm1530 = vcmp.eq.s32.totalorder %v1471, %v150
  %vm1531 = vcmp.eq.s32.totalorder %v1475, %v150
  %vm1532 = vcmp.eq.s32.totalorder %v1471, %v151
  %vm1533 = vcmp.eq.s32.totalorder %v1475, %v151
  %vm1534 = vcmp.eq.s32.totalorder %v1471, %v152
  %vm1535 = vcmp.eq.s32.totalorder %v1475, %v152
  %vm1536 = vcmp.eq.s32.totalorder %v1471, %v153
  %vm1537 = vcmp.eq.s32.totalorder %v1475, %v153
  %vm1538 = vcmp.eq.s32.totalorder %v1471, %v154
  %vm1539 = vcmp.eq.s32.totalorder %v1475, %v154
  %v1540 = vlaneseq
  %v1541 = vshrl.u32 %v1540, 7
  %v1542 = vsub.s32 1, %v1541
  %v1543 = vrot.slane %v119, %v1542
  %v1544 = vlaneseq
  %v1545 = vshrl.u32 %v1544, 7
  %v1546 = vsub.s32 3, %v1545
  %v1547 = vrot.slane %v119, %v1546
  %v1550 = vlaneseq
  %v1551 = vshrl.u32 %v1550, 7
  %v1552 = vsub.s32 1, %v1551
  %v1553 = vrot.slane %v1543, %v1552
  %v1554 = vlaneseq
  %v1555 = vshrl.u32 %v1554, 7
  %v1556 = vsub.s32 1, %v1555
  %v1557 = vrot.slane %v1547, %v1556
  %v1558 = vsel %vm1476, %v1553, 0.0
  %v1559 = vsel %vm1477, %v1557, 0.0
  %v1560 = vsel %vm1478, %v1553, 0.0
  %v1561 = vsel %vm1479, %v1557, 0.0
  %v1562 = vsel %vm1480, %v1553, 0.0
  %v1563 = vsel %vm1481, %v1557, 0.0
  %v1564 = vsel %vm1482, %v1553, 0.0
  %v1565 = vsel %vm1483, %v1557, 0.0
  %v1566 = vsel %vm1484, %v1553, 0.0
  %v1567 = vsel %vm1485, %v1557, 0.0
  %v1568 = vsel %vm1486, %v1553, 0.0
  %v1569 = vsel %vm1487, %v1557, 0.0
  %v1570 = vsel %vm1488, %v1553, 0.0
  %v1571 = vsel %vm1489, %v1557, 0.0
  %v1572 = vsel %vm1490, %v1553, 0.0
  %v1573 = vsel %vm1491, %v1557, 0.0
  %v1574 = vsel %vm1492, %v1553, 0.0
  %v1575 = vsel %vm1493, %v1557, 0.0
  %v1576 = vsel %vm1494, %v1553, 0.0
  %v1577 = vsel %vm1495, %v1557, 0.0
  %v1578 = vsel %vm1496, %v1553, 0.0
  %v1579 = vsel %vm1497, %v1557, 0.0
  %v1580 = vsel %vm1498, %v1553, 0.0
  %v1581 = vsel %vm1499, %v1557, 0.0
  %v1582 = vsel %vm1500, %v1553, 0.0
  %v1583 = vsel %vm1501, %v1557, 0.0
  %v1584 = vsel %vm1502, %v1553, 0.0
  %v1585 = vsel %vm1503, %v1557, 0.0
  %v1586 = vsel %vm1504, %v1553, 0.0
  %v1587 = vsel %vm1505, %v1557, 0.0
  %v1588 = vsel %vm1506, %v1553, 0.0
  %v1589 = vsel %vm1507, %v1557, 0.0
  %v1590 = vsel %vm1508, %v1553, 0.0
  %v1591 = vsel %vm1509, %v1557, 0.0
  %v1592 = vsel %vm1510, %v1553, 0.0
  %v1593 = vsel %vm1511, %v1557, 0.0
  %v1594 = vsel %vm1512, %v1553, 0.0
  %v1595 = vsel %vm1513, %v1557, 0.0
  %v1596 = vsel %vm1514, %v1553, 0.0
  %v1597 = vsel %vm1515, %v1557, 0.0
  %v1598 = vsel %vm1516, %v1553, 0.0
  %v1599 = vsel %vm1517, %v1557, 0.0
  %v1600 = vsel %vm1518, %v1553, 0.0
  %v1601 = vsel %vm1519, %v1557, 0.0
  %v1602 = vsel %vm1520, %v1553, 0.0
  %v1603 = vsel %vm1521, %v1557, 0.0
  %v1604 = vsel %vm1522, %v1553, 0.0
  %v1605 = vsel %vm1523, %v1557, 0.0
  %v1606 = vsel %vm1524, %v1553, 0.0
  %v1607 = vsel %vm1525, %v1557, 0.0
  %v1608 = vsel %vm1526, %v1553, 0.0
  %v1609 = vsel %vm1527, %v1557, 0.0
  %v1610 = vsel %vm1528, %v1553, 0.0
  %v1611 = vsel %vm1529, %v1557, 0.0
  %v1612 = vsel %vm1530, %v1553, 0.0
  %v1613 = vsel %vm1531, %v1557, 0.0
  %v1614 = vsel %vm1532, %v1553, 0.0
  %v1615 = vsel %vm1533, %v1557, 0.0
  %v1616 = vsel %vm1534, %v1553, 0.0
  %v1617 = vsel %vm1535, %v1557, 0.0
  %v1618 = vsel %vm1536, %v1553, 0.0
  %v1619 = vsel %vm1537, %v1557, 0.0
  %v1620 = vsel %vm1538, %v1553, 0.0
  %v1621 = vsel %vm1539, %v1557, 0.0
  %v1622 = vadd.f32 %v1396, %v1558
  %v1623 = vadd.f32 %v1397, %v1559
  %v1624 = vadd.f32 %v1398, %v1560
  %v1625 = vadd.f32 %v1399, %v1561
  %v1626 = vadd.f32 %v1400, %v1562
  %v1627 = vadd.f32 %v1401, %v1563
  %v1628 = vadd.f32 %v1402, %v1564
  %v1629 = vadd.f32 %v1403, %v1565
  %v1630 = vadd.f32 %v1404, %v1566
  %v1631 = vadd.f32 %v1405, %v1567
  %v1632 = vadd.f32 %v1406, %v1568
  %v1633 = vadd.f32 %v1407, %v1569
  %v1634 = vadd.f32 %v1408, %v1570
  %v1635 = vadd.f32 %v1409, %v1571
  %v1636 = vadd.f32 %v1410, %v1572
  %v1637 = vadd.f32 %v1411, %v1573
  %v1638 = vadd.f32 %v1412, %v1574
  %v1639 = vadd.f32 %v1413, %v1575
  %v1640 = vadd.f32 %v1414, %v1576
  %v1641 = vadd.f32 %v1415, %v1577
  %v1642 = vadd.f32 %v1416, %v1578
  %v1643 = vadd.f32 %v1417, %v1579
  %v1644 = vadd.f32 %v1418, %v1580
  %v1645 = vadd.f32 %v1419, %v1581
  %v1646 = vadd.f32 %v1420, %v1582
  %v1647 = vadd.f32 %v1421, %v1583
  %v1648 = vadd.f32 %v1422, %v1584
  %v1649 = vadd.f32 %v1423, %v1585
  %v1650 = vadd.f32 %v1424, %v1586
  %v1651 = vadd.f32 %v1425, %v1587
  %v1652 = vadd.f32 %v1426, %v1588
  %v1653 = vadd.f32 %v1427, %v1589
  %v1654 = vadd.f32 %v1428, %v1590
  %v1655 = vadd.f32 %v1429, %v1591
  %v1656 = vadd.f32 %v1430, %v1592
  %v1657 = vadd.f32 %v1431, %v1593
  %v1658 = vadd.f32 %v1432, %v1594
  %v1659 = vadd.f32 %v1433, %v1595
  %v1660 = vadd.f32 %v1434, %v1596
  %v1661 = vadd.f32 %v1435, %v1597
  %v1662 = vadd.f32 %v1436, %v1598
  %v1663 = vadd.f32 %v1437, %v1599
  %v1664 = vadd.f32 %v1438, %v1600
  %v1665 = vadd.f32 %v1439, %v1601
  %v1666 = vadd.f32 %v1440, %v1602
  %v1667 = vadd.f32 %v1441, %v1603
  %v1668 = vadd.f32 %v1442, %v1604
  %v1669 = vadd.f32 %v1443, %v1605
  %v1670 = vadd.f32 %v1444, %v1606
  %v1671 = vadd.f32 %v1445, %v1607
  %v1672 = vadd.f32 %v1446, %v1608
  %v1673 = vadd.f32 %v1447, %v1609
  %v1674 = vadd.f32 %v1448, %v1610
  %v1675 = vadd.f32 %v1449, %v1611
  %v1676 = vadd.f32 %v1450, %v1612
  %v1677 = vadd.f32 %v1451, %v1613
  %v1678 = vadd.f32 %v1452, %v1614
  %v1679 = vadd.f32 %v1453, %v1615
  %v1680 = vadd.f32 %v1454, %v1616
  %v1681 = vadd.f32 %v1455, %v1617
  %v1682 = vadd.f32 %v1456, %v1618
  %v1683 = vadd.f32 %v1457, %v1619
  %v1684 = vadd.f32 %v1458, %v1620
  %v1685 = vadd.f32 %v1459, %v1621
  %v1686 = vlaneseq
  %v1687 = vshrl.u32 %v1686, 7
  %v1688 = vsub.s32 1, %v1687
  %v1689 = vrot.slane %v120, %v1688
  %v1690 = vlaneseq
  %v1691 = vshrl.u32 %v1690, 7
  %v1692 = vsub.s32 3, %v1691
  %v1693 = vrot.slane %v120, %v1692
  %v1694 = vlaneseq
  %v1695 = vshrl.u32 %v1694, 7
  %v1696 = vsub.s32 1, %v1695
  %v1697 = vrot.slane %v1689, %v1696
  %v1698 = vlaneseq
  %v1699 = vshrl.u32 %v1698, 7
  %v1700 = vsub.s32 1, %v1699
  %v1701 = vrot.slane %v1693, %v1700
  %vm1702 = vcmp.eq.s32.totalorder %v1697, %v123
  %vm1703 = vcmp.eq.s32.totalorder %v1701, %v123
  %vm1704 = vcmp.eq.s32.totalorder %v1697, %v124
  %vm1705 = vcmp.eq.s32.totalorder %v1701, %v124
  %vm1706 = vcmp.eq.s32.totalorder %v1697, %v125
  %vm1707 = vcmp.eq.s32.totalorder %v1701, %v125
  %vm1708 = vcmp.eq.s32.totalorder %v1697, %v126
  %vm1709 = vcmp.eq.s32.totalorder %v1701, %v126
  %vm1710 = vcmp.eq.s32.totalorder %v1697, %v127
  %vm1711 = vcmp.eq.s32.totalorder %v1701, %v127
  %vm1712 = vcmp.eq.s32.totalorder %v1697, %v128
  %vm1713 = vcmp.eq.s32.totalorder %v1701, %v128
  %vm1714 = vcmp.eq.s32.totalorder %v1697, %v129
  %vm1715 = vcmp.eq.s32.totalorder %v1701, %v129
  %vm1716 = vcmp.eq.s32.totalorder %v1697, %v130
  %vm1717 = vcmp.eq.s32.totalorder %v1701, %v130
  %vm1718 = vcmp.eq.s32.totalorder %v1697, %v131
  %vm1719 = vcmp.eq.s32.totalorder %v1701, %v131
  %vm1720 = vcmp.eq.s32.totalorder %v1697, %v132
  %vm1721 = vcmp.eq.s32.totalorder %v1701, %v132
  %vm1722 = vcmp.eq.s32.totalorder %v1697, %v133
  %vm1723 = vcmp.eq.s32.totalorder %v1701, %v133
  %vm1724 = vcmp.eq.s32.totalorder %v1697, %v134
  %vm1725 = vcmp.eq.s32.totalorder %v1701, %v134
  %vm1726 = vcmp.eq.s32.totalorder %v1697, %v135
  %vm1727 = vcmp.eq.s32.totalorder %v1701, %v135
  %vm1728 = vcmp.eq.s32.totalorder %v1697, %v136
  %vm1729 = vcmp.eq.s32.totalorder %v1701, %v136
  %vm1730 = vcmp.eq.s32.totalorder %v1697, %v137
  %vm1731 = vcmp.eq.s32.totalorder %v1701, %v137
  %vm1732 = vcmp.eq.s32.totalorder %v1697, %v138
  %vm1733 = vcmp.eq.s32.totalorder %v1701, %v138
  %vm1734 = vcmp.eq.s32.totalorder %v1697, %v139
  %vm1735 = vcmp.eq.s32.totalorder %v1701, %v139
  %vm1736 = vcmp.eq.s32.totalorder %v1697, %v140
  %vm1737 = vcmp.eq.s32.totalorder %v1701, %v140
  %vm1738 = vcmp.eq.s32.totalorder %v1697, %v141
  %vm1739 = vcmp.eq.s32.totalorder %v1701, %v141
  %vm1740 = vcmp.eq.s32.totalorder %v1697, %v142
  %vm1741 = vcmp.eq.s32.totalorder %v1701, %v142
  %vm1742 = vcmp.eq.s32.totalorder %v1697, %v143
  %vm1743 = vcmp.eq.s32.totalorder %v1701, %v143
  %vm1744 = vcmp.eq.s32.totalorder %v1697, %v144
  %vm1745 = vcmp.eq.s32.totalorder %v1701, %v144
  %vm1746 = vcmp.eq.s32.totalorder %v1697, %v145
  %vm1747 = vcmp.eq.s32.totalorder %v1701, %v145
  %vm1748 = vcmp.eq.s32.totalorder %v1697, %v146
  %vm1749 = vcmp.eq.s32.totalorder %v1701, %v146
  %vm1750 = vcmp.eq.s32.totalorder %v1697, %v147
  %vm1751 = vcmp.eq.s32.totalorder %v1701, %v147
  %vm1752 = vcmp.eq.s32.totalorder %v1697, %v148
  %vm1753 = vcmp.eq.s32.totalorder %v1701, %v148
  %vm1754 = vcmp.eq.s32.totalorder %v1697, %v149
  %vm1755 = vcmp.eq.s32.totalorder %v1701, %v149
  %vm1756 = vcmp.eq.s32.totalorder %v1697, %v150
  %vm1757 = vcmp.eq.s32.totalorder %v1701, %v150
  %vm1758 = vcmp.eq.s32.totalorder %v1697, %v151
  %vm1759 = vcmp.eq.s32.totalorder %v1701, %v151
  %vm1760 = vcmp.eq.s32.totalorder %v1697, %v152
  %vm1761 = vcmp.eq.s32.totalorder %v1701, %v152
  %vm1762 = vcmp.eq.s32.totalorder %v1697, %v153
  %vm1763 = vcmp.eq.s32.totalorder %v1701, %v153
  %vm1764 = vcmp.eq.s32.totalorder %v1697, %v154
  %vm1765 = vcmp.eq.s32.totalorder %v1701, %v154
  %v1766 = vlaneseq
  %v1767 = vshrl.u32 %v1766, 7
  %v1768 = vsub.s32 1, %v1767
  %v1769 = vrot.slane %v121, %v1768
  %v1770 = vlaneseq
  %v1771 = vshrl.u32 %v1770, 7
  %v1772 = vsub.s32 3, %v1771
  %v1773 = vrot.slane %v121, %v1772
  %v1776 = vlaneseq
  %v1777 = vshrl.u32 %v1776, 7
  %v1778 = vsub.s32 1, %v1777
  %v1779 = vrot.slane %v1769, %v1778
  %v1780 = vlaneseq
  %v1781 = vshrl.u32 %v1780, 7
  %v1782 = vsub.s32 1, %v1781
  %v1783 = vrot.slane %v1773, %v1782
  %v1784 = vsel %vm1702, %v1779, 0.0
  %v1785 = vsel %vm1703, %v1783, 0.0
  %v1786 = vsel %vm1704, %v1779, 0.0
  %v1787 = vsel %vm1705, %v1783, 0.0
  %v1788 = vsel %vm1706, %v1779, 0.0
  %v1789 = vsel %vm1707, %v1783, 0.0
  %v1790 = vsel %vm1708, %v1779, 0.0
  %v1791 = vsel %vm1709, %v1783, 0.0
  %v1792 = vsel %vm1710, %v1779, 0.0
  %v1793 = vsel %vm1711, %v1783, 0.0
  %v1794 = vsel %vm1712, %v1779, 0.0
  %v1795 = vsel %vm1713, %v1783, 0.0
  %v1796 = vsel %vm1714, %v1779, 0.0
  %v1797 = vsel %vm1715, %v1783, 0.0
  %v1798 = vsel %vm1716, %v1779, 0.0
  %v1799 = vsel %vm1717, %v1783, 0.0
  %v1800 = vsel %vm1718, %v1779, 0.0
  %v1801 = vsel %vm1719, %v1783, 0.0
  %v1802 = vsel %vm1720, %v1779, 0.0
  %v1803 = vsel %vm1721, %v1783, 0.0
  %v1804 = vsel %vm1722, %v1779, 0.0
  %v1805 = vsel %vm1723, %v1783, 0.0
  %v1806 = vsel %vm1724, %v1779, 0.0
  %v1807 = vsel %vm1725, %v1783, 0.0
  %v1808 = vsel %vm1726, %v1779, 0.0
  %v1809 = vsel %vm1727, %v1783, 0.0
  %v1810 = vsel %vm1728, %v1779, 0.0
  %v1811 = vsel %vm1729, %v1783, 0.0
  %v1812 = vsel %vm1730, %v1779, 0.0
  %v1813 = vsel %vm1731, %v1783, 0.0
  %v1814 = vsel %vm1732, %v1779, 0.0
  %v1815 = vsel %vm1733, %v1783, 0.0
  %v1816 = vsel %vm1734, %v1779, 0.0
  %v1817 = vsel %vm1735, %v1783, 0.0
  %v1818 = vsel %vm1736, %v1779, 0.0
  %v1819 = vsel %vm1737, %v1783, 0.0
  %v1820 = vsel %vm1738, %v1779, 0.0
  %v1821 = vsel %vm1739, %v1783, 0.0
  %v1822 = vsel %vm1740, %v1779, 0.0
  %v1823 = vsel %vm1741, %v1783, 0.0
  %v1824 = vsel %vm1742, %v1779, 0.0
  %v1825 = vsel %vm1743, %v1783, 0.0
  %v1826 = vsel %vm1744, %v1779, 0.0
  %v1827 = vsel %vm1745, %v1783, 0.0
  %v1828 = vsel %vm1746, %v1779, 0.0
  %v1829 = vsel %vm1747, %v1783, 0.0
  %v1830 = vsel %vm1748, %v1779, 0.0
  %v1831 = vsel %vm1749, %v1783, 0.0
  %v1832 = vsel %vm1750, %v1779, 0.0
  %v1833 = vsel %vm1751, %v1783, 0.0
  %v1834 = vsel %vm1752, %v1779, 0.0
  %v1835 = vsel %vm1753, %v1783, 0.0
  %v1836 = vsel %vm1754, %v1779, 0.0
  %v1837 = vsel %vm1755, %v1783, 0.0
  %v1838 = vsel %vm1756, %v1779, 0.0
  %v1839 = vsel %vm1757, %v1783, 0.0
  %v1840 = vsel %vm1758, %v1779, 0.0
  %v1841 = vsel %vm1759, %v1783, 0.0
  %v1842 = vsel %vm1760, %v1779, 0.0
  %v1843 = vsel %vm1761, %v1783, 0.0
  %v1844 = vsel %vm1762, %v1779, 0.0
  %v1845 = vsel %vm1763, %v1783, 0.0
  %v1846 = vsel %vm1764, %v1779, 0.0
  %v1847 = vsel %vm1765, %v1783, 0.0
  %v1848 = vadd.f32 %v1622, %v1784
  %v1849 = vadd.f32 %v1623, %v1785
  %v1850 = vadd.f32 %v1624, %v1786
  %v1851 = vadd.f32 %v1625, %v1787
  %v1852 = vadd.f32 %v1626, %v1788
  %v1853 = vadd.f32 %v1627, %v1789
  %v1854 = vadd.f32 %v1628, %v1790
  %v1855 = vadd.f32 %v1629, %v1791
  %v1856 = vadd.f32 %v1630, %v1792
  %v1857 = vadd.f32 %v1631, %v1793
  %v1858 = vadd.f32 %v1632, %v1794
  %v1859 = vadd.f32 %v1633, %v1795
  %v1860 = vadd.f32 %v1634, %v1796
  %v1861 = vadd.f32 %v1635, %v1797
  %v1862 = vadd.f32 %v1636, %v1798
  %v1863 = vadd.f32 %v1637, %v1799
  %v1864 = vadd.f32 %v1638, %v1800
  %v1865 = vadd.f32 %v1639, %v1801
  %v1866 = vadd.f32 %v1640, %v1802
  %v1867 = vadd.f32 %v1641, %v1803
  %v1868 = vadd.f32 %v1642, %v1804
  %v1869 = vadd.f32 %v1643, %v1805
  %v1870 = vadd.f32 %v1644, %v1806
  %v1871 = vadd.f32 %v1645, %v1807
  %v1872 = vadd.f32 %v1646, %v1808
  %v1873 = vadd.f32 %v1647, %v1809
  %v1874 = vadd.f32 %v1648, %v1810
  %v1875 = vadd.f32 %v1649, %v1811
  %v1876 = vadd.f32 %v1650, %v1812
  %v1877 = vadd.f32 %v1651, %v1813
  %v1878 = vadd.f32 %v1652, %v1814
  %v1879 = vadd.f32 %v1653, %v1815
  %v1880 = vadd.f32 %v1654, %v1816
  %v1881 = vadd.f32 %v1655, %v1817
  %v1882 = vadd.f32 %v1656, %v1818
  %v1883 = vadd.f32 %v1657, %v1819
  %v1884 = vadd.f32 %v1658, %v1820
  %v1885 = vadd.f32 %v1659, %v1821
  %v1886 = vadd.f32 %v1660, %v1822
  %v1887 = vadd.f32 %v1661, %v1823
  %v1888 = vadd.f32 %v1662, %v1824
  %v1889 = vadd.f32 %v1663, %v1825
  %v1890 = vadd.f32 %v1664, %v1826
  %v1891 = vadd.f32 %v1665, %v1827
  %v1892 = vadd.f32 %v1666, %v1828
  %v1893 = vadd.f32 %v1667, %v1829
  %v1894 = vadd.f32 %v1668, %v1830
  %v1895 = vadd.f32 %v1669, %v1831
  %v1896 = vadd.f32 %v1670, %v1832
  %v1897 = vadd.f32 %v1671, %v1833
  %v1898 = vadd.f32 %v1672, %v1834
  %v1899 = vadd.f32 %v1673, %v1835
  %v1900 = vadd.f32 %v1674, %v1836
  %v1901 = vadd.f32 %v1675, %v1837
  %v1902 = vadd.f32 %v1676, %v1838
  %v1903 = vadd.f32 %v1677, %v1839
  %v1904 = vadd.f32 %v1678, %v1840
  %v1905 = vadd.f32 %v1679, %v1841
  %v1906 = vadd.f32 %v1680, %v1842
  %v1907 = vadd.f32 %v1681, %v1843
  %v1908 = vadd.f32 %v1682, %v1844
  %v1909 = vadd.f32 %v1683, %v1845
  %v1910 = vadd.f32 %v1684, %v1846
  %v1911 = vadd.f32 %v1685, %v1847
  %v1912 = vld [vmem:[%s2 + $0x10] sm:$0xff]
  %v1913 = vld [vmem:[%s2 + $0x18] sm:$0xff]
  %1914 = vmatprep.subr.mxu0 %v1849
  %1915 = vmatpush1.msra.mxu0 %v1848
  %1916 = vmatprep.subr.mxu0 %v1851
  %1917 = vmatpush1.msra.mxu0 %v1850
  %1918 = vmatprep.subr.mxu0 %v1853
  %1919 = vmatpush1.msra.mxu0 %v1852
  %1920 = vmatprep.subr.mxu0 %v1855
  %1921 = vmatpush1.msra.mxu0 %v1854
  %1922 = vmatprep.subr.mxu0 %v1857
  %1923 = vmatpush1.msra.mxu0 %v1856
  %1924 = vmatprep.subr.mxu0 %v1859
  %1925 = vmatpush1.msra.mxu0 %v1858
  %1926 = vmatprep.subr.mxu0 %v1861
  %1927 = vmatpush1.msra.mxu0 %v1860
  %1928 = vmatprep.subr.mxu0 %v1863
  %1929 = vmatpush1.msra.mxu0 %v1862
  %1930 = vmatprep.subr.mxu0 %v1865
  %1931 = vmatpush1.msra.mxu0 %v1864
  %1932 = vmatprep.subr.mxu0 %v1867
  %1933 = vmatpush1.msra.mxu0 %v1866
  %1934 = vmatprep.subr.mxu0 %v1869
  %1935 = vmatpush1.msra.mxu0 %v1868
  %1936 = vmatprep.subr.mxu0 %v1871
  %1937 = vmatpush1.msra.mxu0 %v1870
  %1938 = vmatprep.subr.mxu0 %v1873
  %1939 = vmatpush1.msra.mxu0 %v1872
  %1940 = vmatprep.subr.mxu0 %v1875
  %1941 = vmatpush1.msra.mxu0 %v1874
  %1942 = vmatprep.subr.mxu0 %v1877
  %1943 = vmatpush1.msra.mxu0 %v1876
  %1944 = vmatprep.subr.mxu0 %v1879
  %1945 = vmatpush1.msra.mxu0 %v1878
  %1946 = vmatprep.subr.mxu0 %v1881
  %1947 = vmatpush1.msra.mxu0 %v1880
  %1948 = vmatprep.subr.mxu0 %v1883
  %1949 = vmatpush1.msra.mxu0 %v1882
  %1950 = vmatprep.subr.mxu0 %v1885
  %1951 = vmatpush1.msra.mxu0 %v1884
  %1952 = vmatprep.subr.mxu0 %v1887
  %1953 = vmatpush1.msra.mxu0 %v1886
  %1954 = vmatprep.subr.mxu0 %v1889
  %1955 = vmatpush1.msra.mxu0 %v1888
  %1956 = vmatprep.subr.mxu0 %v1891
  %1957 = vmatpush1.msra.mxu0 %v1890
  %1958 = vmatprep.subr.mxu0 %v1893
  %1959 = vmatpush1.msra.mxu0 %v1892
  %1960 = vmatprep.subr.mxu0 %v1895
  %1961 = vmatpush1.msra.mxu0 %v1894
  %1962 = vmatprep.subr.mxu0 %v1897
  %1963 = vmatpush1.msra.mxu0 %v1896
  %1964 = vmatprep.subr.mxu0 %v1899
  %1965 = vmatpush1.msra.mxu0 %v1898
  %1966 = vmatprep.subr.mxu0 %v1901
  %1967 = vmatpush1.msra.mxu0 %v1900
  %1968 = vmatprep.subr.mxu0 %v1903
  %1969 = vmatpush1.msra.mxu0 %v1902
  %1970 = vmatprep.subr.mxu0 %v1905
  %1971 = vmatpush1.msra.mxu0 %v1904
  %1972 = vmatprep.subr.mxu0 %v1907
  %1973 = vmatpush1.msra.mxu0 %v1906
  %1974 = vmatprep.subr.mxu0 %v1909
  %1975 = vmatpush1.msra.mxu0 %v1908
  %1976 = vmatprep.subr.mxu0 %v1911
  %1977 = vmatpush1.msra.mxu0 %v1910
  %1978 = vmatprep.mubr.f32.mxu0 %v1913
  %1979 = vmatmul.mubr.f32.gmra.mrb[0].mxu0 %v1912
  %v1980 = vpop.f32.mrb[0].mxu0
  %v1981 = vadd.f32 0.0, %v1980
  %v1982 = vpop.f32.mrb[0].mxu0
  %v1983 = vadd.f32 0.0, %v1982
  %1984 = vdwg.mxu0
  %v1987 = vrot.slane %v1981, 7
  %v1988 = vrot.slane %v1983, 7
  %vm1991 = vcmask 1040384
  %v1992 = vsel %vm1991, %v1068, %v1987
  %v1993 = vsel %vm1991, %v1070, %v1988
  %v1994 = vpack.c.bf16 %v1992, %v1992
  %v1995 = vpack.c.bf16 %v1993, %v1993
  %v1996 = vld [vmem:[%s4] sm:$0xff]
  %v1997 = vld [vmem:[%s4 + $0x8] sm:$0xff]
  %v1998 = vld [vmem:[%s4 + $0x10] sm:$0xff]
  %v1999 = vld [vmem:[%s4 + $0x18] sm:$0xff]
  %v2000 = vld [vmem:[%s4 + $0x20] sm:$0xff]
  %v2001 = vld [vmem:[%s4 + $0x28] sm:$0xff]
  %v2002 = vld [vmem:[%s4 + $0x30] sm:$0xff]
  %v2003 = vld [vmem:[%s4 + $0x38] sm:$0xff]
  %v2004 = vld [vmem:[%s4 + $0x40] sm:$0xff]
  %v2005 = vld [vmem:[%s4 + $0x48] sm:$0xff]
  %v2006 = vld [vmem:[%s4 + $0x50] sm:$0xff]
  %v2007 = vld [vmem:[%s4 + $0x58] sm:$0xff]
  %v2008 = vld [vmem:[%s4 + $0x60] sm:$0xff]
  %v2009 = vld [vmem:[%s4 + $0x68] sm:$0xff]
  %v2010 = vld [vmem:[%s4 + $0x70] sm:$0xff]
  %v2011 = vld [vmem:[%s4 + $0x78] sm:$0xff]
  %v2012 = vld [vmem:[%s4 + $0x80] sm:$0xff]
  %v2013 = vld [vmem:[%s4 + $0x88] sm:$0xff]
  %v2014 = vld [vmem:[%s4 + $0x90] sm:$0xff]
  %v2015 = vld [vmem:[%s4 + $0x98] sm:$0xff]
  %v2016 = vld [vmem:[%s4 + $0xa0] sm:$0xff]
  %v2017 = vld [vmem:[%s4 + $0xa8] sm:$0xff]
  %v2018 = vld [vmem:[%s4 + $0xb0] sm:$0xff]
  %v2019 = vld [vmem:[%s4 + $0xb8] sm:$0xff]
  %v2020 = vld [vmem:[%s4 + $0xc0] sm:$0xff]
  %v2021 = vld [vmem:[%s4 + $0xc8] sm:$0xff]
  %v2022 = vld [vmem:[%s4 + $0xd0] sm:$0xff]
  %v2023 = vld [vmem:[%s4 + $0xd8] sm:$0xff]
  %v2024 = vld [vmem:[%s4 + $0xe0] sm:$0xff]
  %v2025 = vld [vmem:[%s4 + $0xe8] sm:$0xff]
  %v2026 = vld [vmem:[%s4 + $0xf0] sm:$0xff]
  %v2027 = vld [vmem:[%s4 + $0xf8] sm:$0xff]
  %v2028 = vld [vmem:[%s4 + $0x100] sm:$0xff]
  %v2029 = vld [vmem:[%s4 + $0x108] sm:$0xff]
  %v2030 = vld [vmem:[%s4 + $0x110] sm:$0xff]
  %v2031 = vld [vmem:[%s4 + $0x118] sm:$0xff]
  %v2032 = vld [vmem:[%s4 + $0x120] sm:$0xff]
  %v2033 = vld [vmem:[%s4 + $0x128] sm:$0xff]
  %v2034 = vld [vmem:[%s4 + $0x130] sm:$0xff]
  %v2035 = vld [vmem:[%s4 + $0x138] sm:$0xff]
  %v2036 = vld [vmem:[%s4 + $0x140] sm:$0xff]
  %v2037 = vld [vmem:[%s4 + $0x148] sm:$0xff]
  %v2038 = vld [vmem:[%s4 + $0x150] sm:$0xff]
  %v2039 = vld [vmem:[%s4 + $0x158] sm:$0xff]
  %v2040 = vld [vmem:[%s4 + $0x160] sm:$0xff]
  %v2041 = vld [vmem:[%s4 + $0x168] sm:$0xff]
  %v2042 = vld [vmem:[%s4 + $0x170] sm:$0xff]
  %v2043 = vld [vmem:[%s4 + $0x178] sm:$0xff]
  %v2044 = vld [vmem:[%s4 + $0x180] sm:$0xff]
  %v2045 = vld [vmem:[%s4 + $0x188] sm:$0xff]
  %v2046 = vld [vmem:[%s4 + $0x190] sm:$0xff]
  %v2047 = vld [vmem:[%s4 + $0x198] sm:$0xff]
  %v2048 = vld [vmem:[%s4 + $0x1a0] sm:$0xff]
  %v2049 = vld [vmem:[%s4 + $0x1a8] sm:$0xff]
  %v2050 = vld [vmem:[%s4 + $0x1b0] sm:$0xff]
  %v2051 = vld [vmem:[%s4 + $0x1b8] sm:$0xff]
  %v2052 = vld [vmem:[%s4 + $0x1c0] sm:$0xff]
  %v2053 = vld [vmem:[%s4 + $0x1c8] sm:$0xff]
  %v2054 = vld [vmem:[%s4 + $0x1d0] sm:$0xff]
  %v2055 = vld [vmem:[%s4 + $0x1d8] sm:$0xff]
  %v2056 = vld [vmem:[%s4 + $0x1e0] sm:$0xff]
  %v2057 = vld [vmem:[%s4 + $0x1e8] sm:$0xff]
  %v2058 = vld [vmem:[%s4 + $0x1f0] sm:$0xff]
  %v2059 = vld [vmem:[%s4 + $0x1f8] sm:$0xff]
  %v2060 = vld [vmem:[%s5] sm:$0xf]
  %v2062 = vlaneseq
  %v2063 = vshrl.u32 %v2062, 7
  %v2064 = vsub.s32 0, %v2063
  %v2065 = vrot.slane %v2060, %v2064
  %v2066 = vlaneseq
  %v2067 = vshrl.u32 %v2066, 7
  %v2068 = vsub.s32 1, %v2067
  %v2069 = vrot.slane %v2060, %v2068
  %v2070 = vlaneseq
  %v2071 = vshrl.u32 %v2070, 7
  %v2072 = vsub.s32 2, %v2071
  %v2073 = vrot.slane %v2060, %v2072
  %v2074 = vlaneseq
  %v2075 = vshrl.u32 %v2074, 7
  %v2076 = vsub.s32 3, %v2075
  %v2077 = vrot.slane %v2060, %v2076
  %v2146 = vunpack.c.l.b16 %v1996
  %v2147 = vunpack.c.h.b16 %v1996
  %v2148 = vunpack.c.l.b16 %v1997
  %v2149 = vunpack.c.h.b16 %v1997
  %v2150 = vunpack.c.l.b16 %v1998
  %v2151 = vunpack.c.h.b16 %v1998
  %v2152 = vunpack.c.l.b16 %v1999
  %v2153 = vunpack.c.h.b16 %v1999
  %v2154 = vunpack.c.l.b16 %v2000
  %v2155 = vunpack.c.h.b16 %v2000
  %v2156 = vunpack.c.l.b16 %v2001
  %v2157 = vunpack.c.h.b16 %v2001
  %v2158 = vunpack.c.l.b16 %v2002
  %v2159 = vunpack.c.h.b16 %v2002
  %v2160 = vunpack.c.l.b16 %v2003
  %v2161 = vunpack.c.h.b16 %v2003
  %v2162 = vunpack.c.l.b16 %v2004
  %v2163 = vunpack.c.h.b16 %v2004
  %v2164 = vunpack.c.l.b16 %v2005
  %v2165 = vunpack.c.h.b16 %v2005
  %v2166 = vunpack.c.l.b16 %v2006
  %v2167 = vunpack.c.h.b16 %v2006
  %v2168 = vunpack.c.l.b16 %v2007
  %v2169 = vunpack.c.h.b16 %v2007
  %v2170 = vunpack.c.l.b16 %v2008
  %v2171 = vunpack.c.h.b16 %v2008
  %v2172 = vunpack.c.l.b16 %v2009
  %v2173 = vunpack.c.h.b16 %v2009
  %v2174 = vunpack.c.l.b16 %v2010
  %v2175 = vunpack.c.h.b16 %v2010
  %v2176 = vunpack.c.l.b16 %v2011
  %v2177 = vunpack.c.h.b16 %v2011
  %v2178 = vunpack.c.l.b16 %v2012
  %v2179 = vunpack.c.h.b16 %v2012
  %v2180 = vunpack.c.l.b16 %v2013
  %v2181 = vunpack.c.h.b16 %v2013
  %v2182 = vunpack.c.l.b16 %v2014
  %v2183 = vunpack.c.h.b16 %v2014
  %v2184 = vunpack.c.l.b16 %v2015
  %v2185 = vunpack.c.h.b16 %v2015
  %v2186 = vunpack.c.l.b16 %v2016
  %v2187 = vunpack.c.h.b16 %v2016
  %v2188 = vunpack.c.l.b16 %v2017
  %v2189 = vunpack.c.h.b16 %v2017
  %v2190 = vunpack.c.l.b16 %v2018
  %v2191 = vunpack.c.h.b16 %v2018
  %v2192 = vunpack.c.l.b16 %v2019
  %v2193 = vunpack.c.h.b16 %v2019
  %v2194 = vunpack.c.l.b16 %v2020
  %v2195 = vunpack.c.h.b16 %v2020
  %v2196 = vunpack.c.l.b16 %v2021
  %v2197 = vunpack.c.h.b16 %v2021
  %v2198 = vunpack.c.l.b16 %v2022
  %v2199 = vunpack.c.h.b16 %v2022
  %v2200 = vunpack.c.l.b16 %v2023
  %v2201 = vunpack.c.h.b16 %v2023
  %v2202 = vunpack.c.l.b16 %v2024
  %v2203 = vunpack.c.h.b16 %v2024
  %v2204 = vunpack.c.l.b16 %v2025
  %v2205 = vunpack.c.h.b16 %v2025
  %v2206 = vunpack.c.l.b16 %v2026
  %v2207 = vunpack.c.h.b16 %v2026
  %v2208 = vunpack.c.l.b16 %v2027
  %v2209 = vunpack.c.h.b16 %v2027
  %v2210 = vunpack.c.l.b16 %v2028
  %v2211 = vunpack.c.h.b16 %v2028
  %v2212 = vunpack.c.l.b16 %v2029
  %v2213 = vunpack.c.h.b16 %v2029
  %v2214 = vunpack.c.l.b16 %v2030
  %v2215 = vunpack.c.h.b16 %v2030
  %v2216 = vunpack.c.l.b16 %v2031
  %v2217 = vunpack.c.h.b16 %v2031
  %v2218 = vunpack.c.l.b16 %v2032
  %v2219 = vunpack.c.h.b16 %v2032
  %v2220 = vunpack.c.l.b16 %v2033
  %v2221 = vunpack.c.h.b16 %v2033
  %v2222 = vunpack.c.l.b16 %v2034
  %v2223 = vunpack.c.h.b16 %v2034
  %v2224 = vunpack.c.l.b16 %v2035
  %v2225 = vunpack.c.h.b16 %v2035
  %v2226 = vunpack.c.l.b16 %v2036
  %v2227 = vunpack.c.h.b16 %v2036
  %v2228 = vunpack.c.l.b16 %v2037
  %v2229 = vunpack.c.h.b16 %v2037
  %v2230 = vunpack.c.l.b16 %v2038
  %v2231 = vunpack.c.h.b16 %v2038
  %v2232 = vunpack.c.l.b16 %v2039
  %v2233 = vunpack.c.h.b16 %v2039
  %v2234 = vunpack.c.l.b16 %v2040
  %v2235 = vunpack.c.h.b16 %v2040
  %v2236 = vunpack.c.l.b16 %v2041
  %v2237 = vunpack.c.h.b16 %v2041
  %v2238 = vunpack.c.l.b16 %v2042
  %v2239 = vunpack.c.h.b16 %v2042
  %v2240 = vunpack.c.l.b16 %v2043
  %v2241 = vunpack.c.h.b16 %v2043
  %v2242 = vunpack.c.l.b16 %v2044
  %v2243 = vunpack.c.h.b16 %v2044
  %v2244 = vunpack.c.l.b16 %v2045
  %v2245 = vunpack.c.h.b16 %v2045
  %v2246 = vunpack.c.l.b16 %v2046
  %v2247 = vunpack.c.h.b16 %v2046
  %v2248 = vunpack.c.l.b16 %v2047
  %v2249 = vunpack.c.h.b16 %v2047
  %v2250 = vunpack.c.l.b16 %v2048
  %v2251 = vunpack.c.h.b16 %v2048
  %v2252 = vunpack.c.l.b16 %v2049
  %v2253 = vunpack.c.h.b16 %v2049
  %v2254 = vunpack.c.l.b16 %v2050
  %v2255 = vunpack.c.h.b16 %v2050
  %v2256 = vunpack.c.l.b16 %v2051
  %v2257 = vunpack.c.h.b16 %v2051
  %v2258 = vunpack.c.l.b16 %v2052
  %v2259 = vunpack.c.h.b16 %v2052
  %v2260 = vunpack.c.l.b16 %v2053
  %v2261 = vunpack.c.h.b16 %v2053
  %v2262 = vunpack.c.l.b16 %v2054
  %v2263 = vunpack.c.h.b16 %v2054
  %v2264 = vunpack.c.l.b16 %v2055
  %v2265 = vunpack.c.h.b16 %v2055
  %v2266 = vunpack.c.l.b16 %v2056
  %v2267 = vunpack.c.h.b16 %v2056
  %v2268 = vunpack.c.l.b16 %v2057
  %v2269 = vunpack.c.h.b16 %v2057
  %v2270 = vunpack.c.l.b16 %v2058
  %v2271 = vunpack.c.h.b16 %v2058
  %v2272 = vunpack.c.l.b16 %v2059
  %v2273 = vunpack.c.h.b16 %v2059
  %v2274 = vpack.c.b16 %v2150, %v2146
  %v2275 = vpack.c.b16 %v2151, %v2147
  %v2276 = vpack.c.b16 %v2152, %v2148
  %v2277 = vpack.c.b16 %v2153, %v2149
  %v2278 = vpack.c.b16 %v2158, %v2154
  %v2279 = vpack.c.b16 %v2159, %v2155
  %v2280 = vpack.c.b16 %v2160, %v2156
  %v2281 = vpack.c.b16 %v2161, %v2157
  %v2282 = vpack.c.b16 %v2166, %v2162
  %v2283 = vpack.c.b16 %v2167, %v2163
  %v2284 = vpack.c.b16 %v2168, %v2164
  %v2285 = vpack.c.b16 %v2169, %v2165
  %v2286 = vpack.c.b16 %v2174, %v2170
  %v2287 = vpack.c.b16 %v2175, %v2171
  %v2288 = vpack.c.b16 %v2176, %v2172
  %v2289 = vpack.c.b16 %v2177, %v2173
  %v2290 = vpack.c.b16 %v2182, %v2178
  %v2291 = vpack.c.b16 %v2183, %v2179
  %v2292 = vpack.c.b16 %v2184, %v2180
  %v2293 = vpack.c.b16 %v2185, %v2181
  %v2294 = vpack.c.b16 %v2190, %v2186
  %v2295 = vpack.c.b16 %v2191, %v2187
  %v2296 = vpack.c.b16 %v2192, %v2188
  %v2297 = vpack.c.b16 %v2193, %v2189
  %v2298 = vpack.c.b16 %v2198, %v2194
  %v2299 = vpack.c.b16 %v2199, %v2195
  %v2300 = vpack.c.b16 %v2200, %v2196
  %v2301 = vpack.c.b16 %v2201, %v2197
  %v2302 = vpack.c.b16 %v2206, %v2202
  %v2303 = vpack.c.b16 %v2207, %v2203
  %v2304 = vpack.c.b16 %v2208, %v2204
  %v2305 = vpack.c.b16 %v2209, %v2205
  %v2306 = vpack.c.b16 %v2214, %v2210
  %v2307 = vpack.c.b16 %v2215, %v2211
  %v2308 = vpack.c.b16 %v2216, %v2212
  %v2309 = vpack.c.b16 %v2217, %v2213
  %v2310 = vpack.c.b16 %v2222, %v2218
  %v2311 = vpack.c.b16 %v2223, %v2219
  %v2312 = vpack.c.b16 %v2224, %v2220
  %v2313 = vpack.c.b16 %v2225, %v2221
  %v2314 = vpack.c.b16 %v2230, %v2226
  %v2315 = vpack.c.b16 %v2231, %v2227
  %v2316 = vpack.c.b16 %v2232, %v2228
  %v2317 = vpack.c.b16 %v2233, %v2229
  %v2318 = vpack.c.b16 %v2238, %v2234
  %v2319 = vpack.c.b16 %v2239, %v2235
  %v2320 = vpack.c.b16 %v2240, %v2236
  %v2321 = vpack.c.b16 %v2241, %v2237
  %v2322 = vpack.c.b16 %v2246, %v2242
  %v2323 = vpack.c.b16 %v2247, %v2243
  %v2324 = vpack.c.b16 %v2248, %v2244
  %v2325 = vpack.c.b16 %v2249, %v2245
  %v2326 = vpack.c.b16 %v2254, %v2250
  %v2327 = vpack.c.b16 %v2255, %v2251
  %v2328 = vpack.c.b16 %v2256, %v2252
  %v2329 = vpack.c.b16 %v2257, %v2253
  %v2330 = vpack.c.b16 %v2262, %v2258
  %v2331 = vpack.c.b16 %v2263, %v2259
  %v2332 = vpack.c.b16 %v2264, %v2260
  %v2333 = vpack.c.b16 %v2265, %v2261
  %v2334 = vpack.c.b16 %v2270, %v2266
  %v2335 = vpack.c.b16 %v2271, %v2267
  %v2336 = vpack.c.b16 %v2272, %v2268
  %v2337 = vpack.c.b16 %v2273, %v2269
  %2402 = vmatprep.subr.bf16.mxu0 %v2275
  %2403 = vmatpush1.bf16.msra.mxu0 %v2274
  %2404 = vmatprep.subr.bf16.mxu0 %v2279
  %2405 = vmatpush1.bf16.msra.mxu0 %v2278
  %2406 = vmatprep.subr.bf16.mxu0 %v2283
  %2407 = vmatpush1.bf16.msra.mxu0 %v2282
  %2408 = vmatprep.subr.bf16.mxu0 %v2287
  %2409 = vmatpush1.bf16.msra.mxu0 %v2286
  %2410 = vmatprep.subr.bf16.mxu0 %v2291
  %2411 = vmatpush1.bf16.msra.mxu0 %v2290
  %2412 = vmatprep.subr.bf16.mxu0 %v2295
  %2413 = vmatpush1.bf16.msra.mxu0 %v2294
  %2414 = vmatprep.subr.bf16.mxu0 %v2299
  %2415 = vmatpush1.bf16.msra.mxu0 %v2298
  %2416 = vmatprep.subr.bf16.mxu0 %v2303
  %2417 = vmatpush1.bf16.msra.mxu0 %v2302
  %2418 = vmatprep.subr.bf16.mxu0 %v2307
  %2419 = vmatpush1.bf16.msra.mxu0 %v2306
  %2420 = vmatprep.subr.bf16.mxu0 %v2311
  %2421 = vmatpush1.bf16.msra.mxu0 %v2310
  %2422 = vmatprep.subr.bf16.mxu0 %v2315
  %2423 = vmatpush1.bf16.msra.mxu0 %v2314
  %2424 = vmatprep.subr.bf16.mxu0 %v2319
  %2425 = vmatpush1.bf16.msra.mxu0 %v2318
  %2426 = vmatprep.subr.bf16.mxu0 %v2323
  %2427 = vmatpush1.bf16.msra.mxu0 %v2322
  %2428 = vmatprep.subr.bf16.mxu0 %v2327
  %2429 = vmatpush1.bf16.msra.mxu0 %v2326
  %2430 = vmatprep.subr.bf16.mxu0 %v2331
  %2431 = vmatpush1.bf16.msra.mxu0 %v2330
  %2432 = vmatprep.subr.bf16.mxu0 %v2335
  %2433 = vmatpush1.bf16.msra.mxu0 %v2334
  %2434 = vmatprep.mubr.bf16.mxu0 %v1995
  %2435 = vmatmul.mubr.bf16.gmra.mrb[0].mxu0 %v1994
  %v2436 = vpop.f32.mrb[0].mxu0
  %v2437 = vadd.f32 %v2065, %v2436
  %v2438 = vpop.f32.mrb[0].mxu0
  %v2439 = vadd.f32 %v2069, %v2438
  %v2440 = vpop.f32.mrb[0].mxu0
  %v2441 = vpop.f32.mrb[0].mxu0
  %2442 = vdwg.mxu0
  %2443 = vmatprep.subr.bf16.mxu0 %v2277
  %2444 = vmatpush1.bf16.msra.mxu0 %v2276
  %2445 = vmatprep.subr.bf16.mxu0 %v2281
  %2446 = vmatpush1.bf16.msra.mxu0 %v2280
  %2447 = vmatprep.subr.bf16.mxu0 %v2285
  %2448 = vmatpush1.bf16.msra.mxu0 %v2284
  %2449 = vmatprep.subr.bf16.mxu0 %v2289
  %2450 = vmatpush1.bf16.msra.mxu0 %v2288
  %2451 = vmatprep.subr.bf16.mxu0 %v2293
  %2452 = vmatpush1.bf16.msra.mxu0 %v2292
  %2453 = vmatprep.subr.bf16.mxu0 %v2297
  %2454 = vmatpush1.bf16.msra.mxu0 %v2296
  %2455 = vmatprep.subr.bf16.mxu0 %v2301
  %2456 = vmatpush1.bf16.msra.mxu0 %v2300
  %2457 = vmatprep.subr.bf16.mxu0 %v2305
  %2458 = vmatpush1.bf16.msra.mxu0 %v2304
  %2459 = vmatprep.subr.bf16.mxu0 %v2309
  %2460 = vmatpush1.bf16.msra.mxu0 %v2308
  %2461 = vmatprep.subr.bf16.mxu0 %v2313
  %2462 = vmatpush1.bf16.msra.mxu0 %v2312
  %2463 = vmatprep.subr.bf16.mxu0 %v2317
  %2464 = vmatpush1.bf16.msra.mxu0 %v2316
  %2465 = vmatprep.subr.bf16.mxu0 %v2321
  %2466 = vmatpush1.bf16.msra.mxu0 %v2320
  %2467 = vmatprep.subr.bf16.mxu0 %v2325
  %2468 = vmatpush1.bf16.msra.mxu0 %v2324
  %2469 = vmatprep.subr.bf16.mxu0 %v2329
  %2470 = vmatpush1.bf16.msra.mxu0 %v2328
  %2471 = vmatprep.subr.bf16.mxu0 %v2333
  %2472 = vmatpush1.bf16.msra.mxu0 %v2332
  %2473 = vmatprep.subr.bf16.mxu0 %v2337
  %2474 = vmatpush1.bf16.msra.mxu0 %v2336
  %2475 = vmatprep.mubr.bf16.mxu0 %v1995
  %2476 = vmatmul.mubr.bf16.gmra.mrb[0].mxu0 %v1994
  %v2477 = vpop.f32.mrb[0].mxu0
  %v2478 = vadd.f32 %v2073, %v2477
  %v2479 = vpop.f32.mrb[0].mxu0
  %v2480 = vadd.f32 %v2077, %v2479
  %v2481 = vpop.f32.mrb[0].mxu0
  %v2482 = vpop.f32.mrb[0].mxu0
  %2483 = vdwg.mxu0
  %v2484 = vmax.f32 %v2437, 0.0
  %v2485 = vmax.f32 %v2439, 0.0
  %v2486 = vmax.f32 %v2478, 0.0
  %v2487 = vmax.f32 %v2480, 0.0
  %v2488 = vpack.c.bf16 %v2484, %v2484
  %v2489 = vpack.c.bf16 %v2485, %v2485
  %v2490 = vpack.c.bf16 %v2486, %v2486
  %v2491 = vpack.c.bf16 %v2487, %v2487
  %v2492 = vld [vmem:[%s6] sm:$0xf]
  %v2493 = vld [vmem:[%s6 + $0x4] sm:$0xf]
  %v2494 = vld [vmem:[%s6 + $0x8] sm:$0xf]
  %v2495 = vld [vmem:[%s6 + $0xc] sm:$0xf]
  %v2496 = vld [vmem:[%s6 + $0x10] sm:$0xf]
  %v2497 = vld [vmem:[%s6 + $0x14] sm:$0xf]
  %v2498 = vld [vmem:[%s6 + $0x18] sm:$0xf]
  %v2499 = vld [vmem:[%s6 + $0x1c] sm:$0xf]
  %v2500 = vld [vmem:[%s6 + $0x20] sm:$0xf]
  %v2501 = vld [vmem:[%s6 + $0x24] sm:$0xf]
  %v2502 = vld [vmem:[%s6 + $0x28] sm:$0xf]
  %v2503 = vld [vmem:[%s6 + $0x2c] sm:$0xf]
  %v2504 = vld [vmem:[%s6 + $0x30] sm:$0xf]
  %v2505 = vld [vmem:[%s6 + $0x34] sm:$0xf]
  %v2506 = vld [vmem:[%s6 + $0x38] sm:$0xf]
  %v2507 = vld [vmem:[%s6 + $0x3c] sm:$0xf]
  %v2508 = vld [vmem:[%s6 + $0x40] sm:$0xf]
  %v2509 = vld [vmem:[%s6 + $0x44] sm:$0xf]
  %v2510 = vld [vmem:[%s6 + $0x48] sm:$0xf]
  %v2511 = vld [vmem:[%s6 + $0x4c] sm:$0xf]
  %v2512 = vld [vmem:[%s6 + $0x50] sm:$0xf]
  %v2513 = vld [vmem:[%s6 + $0x54] sm:$0xf]
  %v2514 = vld [vmem:[%s6 + $0x58] sm:$0xf]
  %v2515 = vld [vmem:[%s6 + $0x5c] sm:$0xf]
  %v2516 = vld [vmem:[%s6 + $0x60] sm:$0xf]
  %v2517 = vld [vmem:[%s6 + $0x64] sm:$0xf]
  %v2518 = vld [vmem:[%s6 + $0x68] sm:$0xf]
  %v2519 = vld [vmem:[%s6 + $0x6c] sm:$0xf]
  %v2520 = vld [vmem:[%s6 + $0x70] sm:$0xf]
  %v2521 = vld [vmem:[%s6 + $0x74] sm:$0xf]
  %v2522 = vld [vmem:[%s6 + $0x78] sm:$0xf]
  %v2523 = vld [vmem:[%s6 + $0x7c] sm:$0xf]
  %v2524 = vld [vmem:[%s6 + $0x80] sm:$0xf]
  %v2525 = vld [vmem:[%s6 + $0x84] sm:$0xf]
  %v2526 = vld [vmem:[%s6 + $0x88] sm:$0xf]
  %v2527 = vld [vmem:[%s6 + $0x8c] sm:$0xf]
  %v2528 = vld [vmem:[%s6 + $0x90] sm:$0xf]
  %v2529 = vld [vmem:[%s6 + $0x94] sm:$0xf]
  %v2530 = vld [vmem:[%s6 + $0x98] sm:$0xf]
  %v2531 = vld [vmem:[%s6 + $0x9c] sm:$0xf]
  %v2532 = vld [vmem:[%s6 + $0xa0] sm:$0xf]
  %v2533 = vld [vmem:[%s6 + $0xa4] sm:$0xf]
  %v2534 = vld [vmem:[%s6 + $0xa8] sm:$0xf]
  %v2535 = vld [vmem:[%s6 + $0xac] sm:$0xf]
  %v2536 = vld [vmem:[%s6 + $0xb0] sm:$0xf]
  %v2537 = vld [vmem:[%s6 + $0xb4] sm:$0xf]
  %v2538 = vld [vmem:[%s6 + $0xb8] sm:$0xf]
  %v2539 = vld [vmem:[%s6 + $0xbc] sm:$0xf]
  %v2540 = vld [vmem:[%s6 + $0xc0] sm:$0xf]
  %v2541 = vld [vmem:[%s6 + $0xc4] sm:$0xf]
  %v2542 = vld [vmem:[%s6 + $0xc8] sm:$0xf]
  %v2543 = vld [vmem:[%s6 + $0xcc] sm:$0xf]
  %v2544 = vld [vmem:[%s6 + $0xd0] sm:$0xf]
  %v2545 = vld [vmem:[%s6 + $0xd4] sm:$0xf]
  %v2546 = vld [vmem:[%s6 + $0xd8] sm:$0xf]
  %v2547 = vld [vmem:[%s6 + $0xdc] sm:$0xf]
  %v2548 = vld [vmem:[%s7] sm:$0x1]
  %v2550 = vlaneseq
  %v2551 = vshrl.u32 %v2550, 7
  %v2552 = vsub.s32 0, %v2551
  %v2553 = vrot.slane %v2548, %v2552
  %v2611 = vunpack.c.l.b16 %v2492
  %v2612 = vunpack.c.l.b16 %v2493
  %v2613 = vunpack.c.l.b16 %v2494
  %v2614 = vunpack.c.l.b16 %v2495
  %v2615 = vunpack.c.l.b16 %v2496
  %v2616 = vunpack.c.l.b16 %v2497
  %v2617 = vunpack.c.l.b16 %v2498
  %v2618 = vunpack.c.l.b16 %v2499
  %v2619 = vunpack.c.l.b16 %v2500
  %v2620 = vunpack.c.l.b16 %v2501
  %v2621 = vunpack.c.l.b16 %v2502
  %v2622 = vunpack.c.l.b16 %v2503
  %v2623 = vunpack.c.l.b16 %v2504
  %v2624 = vunpack.c.l.b16 %v2505
  %v2625 = vunpack.c.l.b16 %v2506
  %v2626 = vunpack.c.l.b16 %v2507
  %v2627 = vunpack.c.l.b16 %v2508
  %v2628 = vunpack.c.l.b16 %v2509
  %v2629 = vunpack.c.l.b16 %v2510
  %v2630 = vunpack.c.l.b16 %v2511
  %v2631 = vunpack.c.l.b16 %v2512
  %v2632 = vunpack.c.l.b16 %v2513
  %v2633 = vunpack.c.l.b16 %v2514
  %v2634 = vunpack.c.l.b16 %v2515
  %v2635 = vunpack.c.l.b16 %v2516
  %v2636 = vunpack.c.l.b16 %v2517
  %v2637 = vunpack.c.l.b16 %v2518
  %v2638 = vunpack.c.l.b16 %v2519
  %v2639 = vunpack.c.l.b16 %v2520
  %v2640 = vunpack.c.l.b16 %v2521
  %v2641 = vunpack.c.l.b16 %v2522
  %v2642 = vunpack.c.l.b16 %v2523
  %v2643 = vunpack.c.l.b16 %v2524
  %v2644 = vunpack.c.l.b16 %v2525
  %v2645 = vunpack.c.l.b16 %v2526
  %v2646 = vunpack.c.l.b16 %v2527
  %v2647 = vunpack.c.l.b16 %v2528
  %v2648 = vunpack.c.l.b16 %v2529
  %v2649 = vunpack.c.l.b16 %v2530
  %v2650 = vunpack.c.l.b16 %v2531
  %v2651 = vunpack.c.l.b16 %v2532
  %v2652 = vunpack.c.l.b16 %v2533
  %v2653 = vunpack.c.l.b16 %v2534
  %v2654 = vunpack.c.l.b16 %v2535
  %v2655 = vunpack.c.l.b16 %v2536
  %v2656 = vunpack.c.l.b16 %v2537
  %v2657 = vunpack.c.l.b16 %v2538
  %v2658 = vunpack.c.l.b16 %v2539
  %v2659 = vunpack.c.l.b16 %v2540
  %v2660 = vunpack.c.l.b16 %v2541
  %v2661 = vunpack.c.l.b16 %v2542
  %v2662 = vunpack.c.l.b16 %v2543
  %v2663 = vunpack.c.l.b16 %v2544
  %v2664 = vunpack.c.l.b16 %v2545
  %v2665 = vunpack.c.l.b16 %v2546
  %v2666 = vunpack.c.l.b16 %v2547
  %v2667 = vpack.c.b16 %v2612, %v2611
  %v2668 = vpack.c.b16 %v2614, %v2613
  %v2669 = vpack.c.b16 %v2616, %v2615
  %v2670 = vpack.c.b16 %v2618, %v2617
  %v2671 = vpack.c.b16 %v2620, %v2619
  %v2672 = vpack.c.b16 %v2622, %v2621
  %v2673 = vpack.c.b16 %v2624, %v2623
  %v2674 = vpack.c.b16 %v2626, %v2625
  %v2675 = vpack.c.b16 %v2628, %v2627
  %v2676 = vpack.c.b16 %v2630, %v2629
  %v2677 = vpack.c.b16 %v2632, %v2631
  %v2678 = vpack.c.b16 %v2634, %v2633
  %v2679 = vpack.c.b16 %v2636, %v2635
  %v2680 = vpack.c.b16 %v2638, %v2637
  %v2681 = vpack.c.b16 %v2640, %v2639
  %v2682 = vpack.c.b16 %v2642, %v2641
  %v2683 = vpack.c.b16 %v2644, %v2643
  %v2684 = vpack.c.b16 %v2646, %v2645
  %v2685 = vpack.c.b16 %v2648, %v2647
  %v2686 = vpack.c.b16 %v2650, %v2649
  %v2687 = vpack.c.b16 %v2652, %v2651
  %v2688 = vpack.c.b16 %v2654, %v2653
  %v2689 = vpack.c.b16 %v2656, %v2655
  %v2690 = vpack.c.b16 %v2658, %v2657
  %v2691 = vpack.c.b16 %v2660, %v2659
  %v2692 = vpack.c.b16 %v2662, %v2661
  %v2693 = vpack.c.b16 %v2664, %v2663
  %v2694 = vpack.c.b16 %v2666, %v2665
  %vm2723 = vcmask 523264
  %v2725 = vsel %vm2723, %v2491, 0
  %2727 = vmatprep.subr.bf16.mxu0 0
  %2728 = vmatpush1.bf16.msra.mxu0 %v2667
  %2729 = vmatprep.subr.bf16.mxu0 0
  %2730 = vmatpush1.bf16.msra.mxu0 %v2668
  %2731 = vmatprep.subr.bf16.mxu0 0
  %2732 = vmatpush1.bf16.msra.mxu0 %v2669
  %2733 = vmatprep.subr.bf16.mxu0 0
  %2734 = vmatpush1.bf16.msra.mxu0 %v2670
  %2735 = vmatprep.subr.bf16.mxu0 0
  %2736 = vmatpush1.bf16.msra.mxu0 %v2671
  %2737 = vmatprep.subr.bf16.mxu0 0
  %2738 = vmatpush1.bf16.msra.mxu0 %v2672
  %2739 = vmatprep.subr.bf16.mxu0 0
  %2740 = vmatpush1.bf16.msra.mxu0 %v2673
  %2741 = vmatprep.subr.bf16.mxu0 0
  %2742 = vmatpush1.bf16.msra.mxu0 %v2674
  %2743 = vmatprep.subr.bf16.mxu0 0
  %2744 = vmatpush1.bf16.msra.mxu0 %v2675
  %2745 = vmatprep.subr.bf16.mxu0 0
  %2746 = vmatpush1.bf16.msra.mxu0 %v2676
  %2747 = vmatprep.subr.bf16.mxu0 0
  %2748 = vmatpush1.bf16.msra.mxu0 %v2677
  %2749 = vmatprep.subr.bf16.mxu0 0
  %2750 = vmatpush1.bf16.msra.mxu0 %v2678
  %2751 = vmatprep.subr.bf16.mxu0 0
  %2752 = vmatpush1.bf16.msra.mxu0 %v2679
  %2753 = vmatprep.subr.bf16.mxu0 0
  %2754 = vmatpush1.bf16.msra.mxu0 %v2680
  %2755 = vmatprep.subr.bf16.mxu0 0
  %2756 = vmatpush1.bf16.msra.mxu0 %v2681
  %2757 = vmatprep.subr.bf16.mxu0 0
  %2758 = vmatpush1.bf16.msra.mxu0 %v2682
  %2759 = vmatprep.mubr.bf16.mxu0 %v2489
  %2760 = vmatmul.mubr.bf16.gmra.mrb[0].mxu0 %v2488
  %v2761 = vpop.f32.mrb[0].mxu0
  %v2762 = vadd.f32 %v2553, %v2761
  %v2763 = vpop.f32.mrb[0].mxu0
  %v2764 = vpop.f32.mrb[0].mxu0
  %v2765 = vpop.f32.mrb[0].mxu0
  %2766 = vdwg.mxu0
  %2767 = vmatprep.subr.bf16.mxu0 0
  %2768 = vmatpush1.bf16.msra.mxu0 %v2683
  %2769 = vmatprep.subr.bf16.mxu0 0
  %2770 = vmatpush1.bf16.msra.mxu0 %v2684
  %2771 = vmatprep.subr.bf16.mxu0 0
  %2772 = vmatpush1.bf16.msra.mxu0 %v2685
  %2773 = vmatprep.subr.bf16.mxu0 0
  %2774 = vmatpush1.bf16.msra.mxu0 %v2686
  %2775 = vmatprep.subr.bf16.mxu0 0
  %2776 = vmatpush1.bf16.msra.mxu0 %v2687
  %2777 = vmatprep.subr.bf16.mxu0 0
  %2778 = vmatpush1.bf16.msra.mxu0 %v2688
  %2779 = vmatprep.subr.bf16.mxu0 0
  %2780 = vmatpush1.bf16.msra.mxu0 %v2689
  %2781 = vmatprep.subr.bf16.mxu0 0
  %2782 = vmatpush1.bf16.msra.mxu0 %v2690
  %2783 = vmatprep.subr.bf16.mxu0 0
  %2784 = vmatpush1.bf16.msra.mxu0 %v2691
  %2785 = vmatprep.subr.bf16.mxu0 0
  %2786 = vmatpush1.bf16.msra.mxu0 %v2692
  %2787 = vmatprep.subr.bf16.mxu0 0
  %2788 = vmatpush1.bf16.msra.mxu0 %v2693
  %2789 = vmatprep.subr.bf16.mxu0 0
  %2790 = vmatpush1.bf16.msra.mxu0 %v2694
  %2791 = vmatprep.subr.bf16.mxu0 0
  %2792 = vmatpush1.bf16.msra.mxu0 0
  %2793 = vmatprep.subr.bf16.mxu0 0
  %2794 = vmatpush1.bf16.msra.mxu0 0
  %2795 = vmatprep.subr.bf16.mxu0 0
  %2796 = vmatpush1.bf16.msra.mxu0 0
  %2797 = vmatprep.subr.bf16.mxu0 0
  %2798 = vmatpush1.bf16.msra.mxu0 0
  %2799 = vmatprep.mubr.bf16.mxu0 %v2725
  %2800 = vmatmul.mubr.bf16.gmra.mrb[0].mxu0 %v2490
  %v2801 = vpop.f32.mrb[0].mxu0
  %v2802 = vadd.f32 %v2762, %v2801
  %v2803 = vpop.f32.mrb[0].mxu0
  %v2804 = vpop.f32.mrb[0].mxu0
  %v2805 = vpop.f32.mrb[0].mxu0
  %2806 = vdwg.mxu0
  %v2807 = vmax.f32 %v2802, 0.0
  %v2808 = vpack.c.bf16 %v2807, %v2807
  %v2809 = vld [vmem:[%s8] sm:$0xf]
  %v2810 = vld [vmem:[%s8 + $0x4] sm:$0xf]
  %v2811 = vld [vmem:[%s8 + $0x8] sm:$0xf]
  %v2812 = vld [vmem:[%s8 + $0xc] sm:$0xf]
  %v2813 = vld [vmem:[%s8 + $0x10] sm:$0xf]
  %v2814 = vld [vmem:[%s8 + $0x14] sm:$0xf]
  %v2815 = vld [vmem:[%s8 + $0x18] sm:$0xf]
  %v2816 = vld [vmem:[%s8 + $0x1c] sm:$0xf]
  %v2817 = vld [vmem:[%s8 + $0x20] sm:$0xf]
  %v2818 = vld [vmem:[%s8 + $0x24] sm:$0xf]
  %v2819 = vld [vmem:[%s8 + $0x28] sm:$0xf]
  %v2820 = vld [vmem:[%s8 + $0x2c] sm:$0xf]
  %v2821 = vld [vmem:[%s8 + $0x30] sm:$0xf]
  %v2822 = vld [vmem:[%s8 + $0x34] sm:$0xf]
  %v2823 = vld [vmem:[%s9] sm:$0x1]
  %v2825 = vlaneseq
  %v2826 = vshrl.u32 %v2825, 7
  %v2827 = vsub.s32 0, %v2826
  %v2828 = vrot.slane %v2823, %v2827
  %v2844 = vunpack.c.l.b16 %v2809
  %v2845 = vunpack.c.l.b16 %v2810
  %v2846 = vunpack.c.l.b16 %v2811
  %v2847 = vunpack.c.l.b16 %v2812
  %v2848 = vunpack.c.l.b16 %v2813
  %v2849 = vunpack.c.l.b16 %v2814
  %v2850 = vunpack.c.l.b16 %v2815
  %v2851 = vunpack.c.l.b16 %v2816
  %v2852 = vunpack.c.l.b16 %v2817
  %v2853 = vunpack.c.l.b16 %v2818
  %v2854 = vunpack.c.l.b16 %v2819
  %v2855 = vunpack.c.l.b16 %v2820
  %v2856 = vunpack.c.l.b16 %v2821
  %v2857 = vunpack.c.l.b16 %v2822
  %v2858 = vpack.c.b16 %v2845, %v2844
  %v2859 = vpack.c.b16 %v2847, %v2846
  %v2860 = vpack.c.b16 %v2849, %v2848
  %v2861 = vpack.c.b16 %v2851, %v2850
  %v2862 = vpack.c.b16 %v2853, %v2852
  %v2863 = vpack.c.b16 %v2855, %v2854
  %v2864 = vpack.c.b16 %v2857, %v2856
  %vm2872 = vcmask 916480
  %v2874 = vsel %vm2872, %v2808, 0
  %2876 = vmatprep.subr.bf16.mxu0 0
  %2877 = vmatpush1.bf16.msra.mxu0 %v2858
  %2878 = vmatprep.subr.bf16.mxu0 0
  %2879 = vmatpush1.bf16.msra.mxu0 %v2859
  %2880 = vmatprep.subr.bf16.mxu0 0
  %2881 = vmatpush1.bf16.msra.mxu0 %v2860
  %2882 = vmatprep.subr.bf16.mxu0 0
  %2883 = vmatpush1.bf16.msra.mxu0 %v2861
  %2884 = vmatprep.subr.bf16.mxu0 0
  %2885 = vmatpush1.bf16.msra.mxu0 %v2862
  %2886 = vmatprep.subr.bf16.mxu0 0
  %2887 = vmatpush1.bf16.msra.mxu0 %v2863
  %2888 = vmatprep.subr.bf16.mxu0 0
  %2889 = vmatpush1.bf16.msra.mxu0 %v2864
  %2890 = vmatprep.subr.bf16.mxu0 0
  %2891 = vmatpush1.bf16.msra.mxu0 0
  %2892 = vmatprep.subr.bf16.mxu0 0
  %2893 = vmatpush1.bf16.msra.mxu0 0
  %2894 = vmatprep.subr.bf16.mxu0 0
  %2895 = vmatpush1.bf16.msra.mxu0 0
  %2896 = vmatprep.subr.bf16.mxu0 0
  %2897 = vmatpush1.bf16.msra.mxu0 0
  %2898 = vmatprep.subr.bf16.mxu0 0
  %2899 = vmatpush1.bf16.msra.mxu0 0
  %2900 = vmatprep.subr.bf16.mxu0 0
  %2901 = vmatpush1.bf16.msra.mxu0 0
  %2902 = vmatprep.subr.bf16.mxu0 0
  %2903 = vmatpush1.bf16.msra.mxu0 0
  %2904 = vmatprep.subr.bf16.mxu0 0
  %2905 = vmatpush1.bf16.msra.mxu0 0
  %2906 = vmatprep.subr.bf16.mxu0 0
  %2907 = vmatpush1.bf16.msra.mxu0 0
  %2908 = vmatprep.mubr.bf16.mxu0 0
  %2909 = vmatmul.mubr.bf16.gmra.mrb[0].mxu0 %v2874
  %v2910 = vpop.f32.mrb[0].mxu0
  %v2911 = vadd.f32 %v2828, %v2910
  %v2912 = vpop.f32.mrb[0].mxu0
  %v2913 = vpop.f32.mrb[0].mxu0
  %v2914 = vpop.f32.mrb[0].mxu0
  %2915 = vdwg.mxu0
  %v2916 = vmax.f32 %v2911, 0.0
  %v2917 = vpack.c.bf16 %v2916, %v2916
  %v2918 = vld [vmem:[%s10] sm:$0xff]
  %v2919 = vld [vmem:[%s10 + $0x8] sm:$0xff]
  %v2920 = vld [vmem:[%s10 + $0x10] sm:$0xff]
  %v2921 = vld [vmem:[%s10 + $0x18] sm:$0x33]
  %v2922 = vld [vmem:[%s11] sm:$0x3]
  %v2924 = vlaneseq
  %v2925 = vshrl.u32 %v2924, 7
  %v2926 = vsub.s32 0, %v2925
  %v2927 = vrot.slane %v2922, %v2926
  %v2928 = vlaneseq
  %v2929 = vshrl.u32 %v2928, 7
  %v2930 = vsub.s32 1, %v2929
  %v2931 = vrot.slane %v2922, %v2930
  %v2938 = vunpack.c.l.b16 %v2918
  %v2939 = vunpack.c.h.b16 %v2918
  %v2940 = vunpack.c.l.b16 %v2919
  %v2941 = vunpack.c.h.b16 %v2919
  %v2942 = vunpack.c.l.b16 %v2920
  %v2943 = vunpack.c.h.b16 %v2920
  %v2944 = vunpack.c.l.b16 %v2921
  %v2945 = vunpack.c.h.b16 %v2921
  %v2946 = vpack.c.b16 %v2940, %v2938
  %v2947 = vpack.c.b16 %v2941, %v2939
  %v2948 = vpack.c.b16 %v2944, %v2942
  %v2949 = vpack.c.b16 %v2945, %v2943
  %vm2952 = vcmask 228352
  %v2954 = vsel %vm2952, %v2917, 0
  %vm2956 = vcmask 1045504
  %v2958 = vsel %vm2956, %v2948, 0
  %v2961 = vsel %vm2956, %v2949, 0
  %2963 = vmatprep.subr.bf16.mxu0 %v2947
  %2964 = vmatpush1.bf16.msra.mxu0 %v2946
  %2965 = vmatprep.subr.bf16.mxu0 %v2961
  %2966 = vmatpush1.bf16.msra.mxu0 %v2958
  %2967 = vmatprep.subr.bf16.mxu0 0
  %2968 = vmatpush1.bf16.msra.mxu0 0
  %2969 = vmatprep.subr.bf16.mxu0 0
  %2970 = vmatpush1.bf16.msra.mxu0 0
  %2971 = vmatprep.subr.bf16.mxu0 0
  %2972 = vmatpush1.bf16.msra.mxu0 0
  %2973 = vmatprep.subr.bf16.mxu0 0
  %2974 = vmatpush1.bf16.msra.mxu0 0
  %2975 = vmatprep.subr.bf16.mxu0 0
  %2976 = vmatpush1.bf16.msra.mxu0 0
  %2977 = vmatprep.subr.bf16.mxu0 0
  %2978 = vmatpush1.bf16.msra.mxu0 0
  %2979 = vmatprep.subr.bf16.mxu0 0
  %2980 = vmatpush1.bf16.msra.mxu0 0
  %2981 = vmatprep.subr.bf16.mxu0 0
  %2982 = vmatpush1.bf16.msra.mxu0 0
  %2983 = vmatprep.subr.bf16.mxu0 0
  %2984 = vmatpush1.bf16.msra.mxu0 0
  %2985 = vmatprep.subr.bf16.mxu0 0
  %2986 = vmatpush1.bf16.msra.mxu0 0
  %2987 = vmatprep.subr.bf16.mxu0 0
  %2988 = vmatpush1.bf16.msra.mxu0 0
  %2989 = vmatprep.subr.bf16.mxu0 0
  %2990 = vmatpush1.bf16.msra.mxu0 0
  %2991 = vmatprep.subr.bf16.mxu0 0
  %2992 = vmatpush1.bf16.msra.mxu0 0
  %2993 = vmatprep.subr.bf16.mxu0 0
  %2994 = vmatpush1.bf16.msra.mxu0 0
  %2995 = vmatprep.mubr.bf16.mxu0 0
  %2996 = vmatmul.mubr.bf16.gmra.mrb[0].mxu0 %v2954
  %v2997 = vpop.f32.mrb[0].mxu0
  %v2998 = vadd.f32 %v2927, %v2997
  %v2999 = vpop.f32.mrb[0].mxu0
  %v3000 = vadd.f32 %v2931, %v2999
  %v3001 = vpop.f32.mrb[0].mxu0
  %v3002 = vpop.f32.mrb[0].mxu0
  %3003 = vdwg.mxu0
  %v3004 = vld [vmem:[%s3] sm:$0x3]
  %v3005 = vmul.f32 %v3000, 0.5
  %v3006 = vmul.f32 %v3005, 1.442695
  %v3007 = vpow.pop %v3006
  %v3008 = vmul.f32 %v3004, %v3007
  %v3009 = vadd.f32 %v2998, %v3008
  %v3010 = vld [vmem:[%s12] sm:$0x1]
  %v3012 = vlaneseq
  %v3013 = vshrl.u32 %v3012, 7
  %v3014 = vsub.s32 0, %v3013
  %v3015 = vrot.slane %v3010, %v3014
  %v3017 = vmax.f32 %v3009, %v3015
  %v3018 = vld [vmem:[%s13] sm:$0x1]
  %v3020 = vlaneseq
  %v3021 = vshrl.u32 %v3020, 7
  %v3022 = vsub.s32 0, %v3021
  %v3023 = vrot.slane %v3018, %v3022
  %v3025 = vmin.f32 %v3017, %v3023
  %v3026 = vpack.c.bf16 %v3025, %v3025
  %v3027 = vld [vmem:[%s14] sm:$0xf]
  %v3028 = vld [vmem:[%s14 + $0x4] sm:$0xf]
  %v3029 = vld [vmem:[%s14 + $0x8] sm:$0xf]
  %v3030 = vld [vmem:[%s14 + $0xc] sm:$0xf]
  %v3031 = vld [vmem:[%s15] sm:$0x1]
  %v3033 = vlaneseq
  %v3034 = vshrl.u32 %v3033, 7
  %v3035 = vsub.s32 0, %v3034
  %v3036 = vrot.slane %v3031, %v3035
  %v3042 = vunpack.c.l.b16 %v3027
  %v3043 = vunpack.c.l.b16 %v3028
  %v3044 = vunpack.c.l.b16 %v3029
  %v3045 = vunpack.c.l.b16 %v3030
  %v3046 = vpack.c.b16 %v3043, %v3042
  %v3047 = vpack.c.b16 %v3045, %v3044
  %vm3050 = vcmask 261120
  %v3052 = vsel %vm3050, %v3026, 0
  %3054 = vmatprep.subr.bf16.mxu0 0
  %3055 = vmatpush1.bf16.msra.mxu0 %v3046
  %3056 = vmatprep.subr.bf16.mxu0 0
  %3057 = vmatpush1.bf16.msra.mxu0 %v3047
  %3058 = vmatprep.subr.bf16.mxu0 0
  %3059 = vmatpush1.bf16.msra.mxu0 0
  %3060 = vmatprep.subr.bf16.mxu0 0
  %3061 = vmatpush1.bf16.msra.mxu0 0
  %3062 = vmatprep.subr.bf16.mxu0 0
  %3063 = vmatpush1.bf16.msra.mxu0 0
  %3064 = vmatprep.subr.bf16.mxu0 0
  %3065 = vmatpush1.bf16.msra.mxu0 0
  %3066 = vmatprep.subr.bf16.mxu0 0
  %3067 = vmatpush1.bf16.msra.mxu0 0
  %3068 = vmatprep.subr.bf16.mxu0 0
  %3069 = vmatpush1.bf16.msra.mxu0 0
  %3070 = vmatprep.subr.bf16.mxu0 0
  %3071 = vmatpush1.bf16.msra.mxu0 0
  %3072 = vmatprep.subr.bf16.mxu0 0
  %3073 = vmatpush1.bf16.msra.mxu0 0
  %3074 = vmatprep.subr.bf16.mxu0 0
  %3075 = vmatpush1.bf16.msra.mxu0 0
  %3076 = vmatprep.subr.bf16.mxu0 0
  %3077 = vmatpush1.bf16.msra.mxu0 0
  %3078 = vmatprep.subr.bf16.mxu0 0
  %3079 = vmatpush1.bf16.msra.mxu0 0
  %3080 = vmatprep.subr.bf16.mxu0 0
  %3081 = vmatpush1.bf16.msra.mxu0 0
  %3082 = vmatprep.subr.bf16.mxu0 0
  %3083 = vmatpush1.bf16.msra.mxu0 0
  %3084 = vmatprep.subr.bf16.mxu0 0
  %3085 = vmatpush1.bf16.msra.mxu0 0
  %3086 = vmatprep.mubr.bf16.mxu0 0
  %3087 = vmatmul.mubr.bf16.gmra.mrb[0].mxu0 %v3052
  %v3088 = vpop.f32.mrb[0].mxu0
  %v3089 = vadd.f32 %v3036, %v3088
  %v3090 = vpop.f32.mrb[0].mxu0
  %v3091 = vpop.f32.mrb[0].mxu0
  %v3092 = vpop.f32.mrb[0].mxu0
  %3093 = vdwg.mxu0
  %v3094 = vmax.f32 %v3089, 0.0
  %v3095 = vpack.c.bf16 %v3094, %v3094
  %v3096 = vld [vmem:[%s16] sm:$0xff]
  %v3097 = vld [vmem:[%s16 + $0x8] sm:$0xff]
  %v3098 = vld [vmem:[%s16 + $0x10] sm:$0xff]
  %v3099 = vld [vmem:[%s16 + $0x18] sm:$0xff]
  %v3100 = vld [vmem:[%s16 + $0x20] sm:$0xff]
  %v3101 = vld [vmem:[%s16 + $0x28] sm:$0xff]
  %v3102 = vld [vmem:[%s16 + $0x30] sm:$0xff]
  %v3103 = vld [vmem:[%s16 + $0x38] sm:$0xff]
  %v3104 = vld [vmem:[%s17] sm:$0x3]
  %v3106 = vlaneseq
  %v3107 = vshrl.u32 %v3106, 7
  %v3108 = vsub.s32 0, %v3107
  %v3109 = vrot.slane %v3104, %v3108
  %v3110 = vlaneseq
  %v3111 = vshrl.u32 %v3110, 7
  %v3112 = vsub.s32 1, %v3111
  %v3113 = vrot.slane %v3104, %v3112
  %v3124 = vunpack.c.l.b16 %v3096
  %v3125 = vunpack.c.h.b16 %v3096
  %v3126 = vunpack.c.l.b16 %v3097
  %v3127 = vunpack.c.h.b16 %v3097
  %v3128 = vunpack.c.l.b16 %v3098
  %v3129 = vunpack.c.h.b16 %v3098
  %v3130 = vunpack.c.l.b16 %v3099
  %v3131 = vunpack.c.h.b16 %v3099
  %v3132 = vunpack.c.l.b16 %v3100
  %v3133 = vunpack.c.h.b16 %v3100
  %v3134 = vunpack.c.l.b16 %v3101
  %v3135 = vunpack.c.h.b16 %v3101
  %v3136 = vunpack.c.l.b16 %v3102
  %v3137 = vunpack.c.h.b16 %v3102
  %v3138 = vunpack.c.l.b16 %v3103
  %v3139 = vunpack.c.h.b16 %v3103
  %v3140 = vpack.c.b16 %v3126, %v3124
  %v3141 = vpack.c.b16 %v3127, %v3125
  %v3142 = vpack.c.b16 %v3130, %v3128
  %v3143 = vpack.c.b16 %v3131, %v3129
  %v3144 = vpack.c.b16 %v3134, %v3132
  %v3145 = vpack.c.b16 %v3135, %v3133
  %v3146 = vpack.c.b16 %v3138, %v3136
  %v3147 = vpack.c.b16 %v3139, %v3137
  %v3157 = vsel %vm2723, %v3095, 0
  %3159 = vmatprep.subr.bf16.mxu0 %v3141
  %3160 = vmatpush1.bf16.msra.mxu0 %v3140
  %3161 = vmatprep.subr.bf16.mxu0 %v3143
  %3162 = vmatpush1.bf16.msra.mxu0 %v3142
  %3163 = vmatprep.subr.bf16.mxu0 %v3145
  %3164 = vmatpush1.bf16.msra.mxu0 %v3144
  %3165 = vmatprep.subr.bf16.mxu0 %v3147
  %3166 = vmatpush1.bf16.msra.mxu0 %v3146
  %3167 = vmatprep.subr.bf16.mxu0 0
  %3168 = vmatpush1.bf16.msra.mxu0 0
  %3169 = vmatprep.subr.bf16.mxu0 0
  %3170 = vmatpush1.bf16.msra.mxu0 0
  %3171 = vmatprep.subr.bf16.mxu0 0
  %3172 = vmatpush1.bf16.msra.mxu0 0
  %3173 = vmatprep.subr.bf16.mxu0 0
  %3174 = vmatpush1.bf16.msra.mxu0 0
  %3175 = vmatprep.subr.bf16.mxu0 0
  %3176 = vmatpush1.bf16.msra.mxu0 0
  %3177 = vmatprep.subr.bf16.mxu0 0
  %3178 = vmatpush1.bf16.msra.mxu0 0
  %3179 = vmatprep.subr.bf16.mxu0 0
  %3180 = vmatpush1.bf16.msra.mxu0 0
  %3181 = vmatprep.subr.bf16.mxu0 0
  %3182 = vmatpush1.bf16.msra.mxu0 0
  %3183 = vmatprep.subr.bf16.mxu0 0
  %3184 = vmatpush1.bf16.msra.mxu0 0
  %3185 = vmatprep.subr.bf16.mxu0 0
  %3186 = vmatpush1.bf16.msra.mxu0 0
  %3187 = vmatprep.subr.bf16.mxu0 0
  %3188 = vmatpush1.bf16.msra.mxu0 0
  %3189 = vmatprep.subr.bf16.mxu0 0
  %3190 = vmatpush1.bf16.msra.mxu0 0
  %3191 = vmatprep.mubr.bf16.mxu0 0
  %3192 = vmatmul.mubr.bf16.gmra.mrb[0].mxu0 %v3157
  %v3193 = vpop.f32.mrb[0].mxu0
  %v3194 = vadd.f32 %v3109, %v3193
  %v3195 = vpop.f32.mrb[0].mxu0
  %v3196 = vadd.f32 %v3113, %v3195
  %v3197 = vpop.f32.mrb[0].mxu0
  %v3198 = vpop.f32.mrb[0].mxu0
  %3199 = vdwg.mxu0
  %v3200 = vsub.f32 0.0, %v3194
  %v3201 = vsub.f32 0.0, %v3196
  %v3202 = vmul.f32 %v3200, 1.442695
  %v3203 = vpow.pop %v3202
  %v3204 = vmul.f32 %v3201, 1.442695
  %v3205 = vpow.pop %v3204
  %v3206 = vadd.f32 %v3203, 1.0
  %v3207 = vadd.f32 %v3205, 1.0
  %v3208 = vrcp.pop %v3206
  %v3209 = vmul.f32 1.0, %v3208
  %v3210 = vrcp.pop %v3207
  %v3211 = vmul.f32 1.0, %v3210
  %v3214 = vcombine.low %v3209, %v3211
  %v3216 = vunpack.c.l.s4 1983009808
  %v3217 = vunpack.c.0.s8 %v3216
  %v3218 = vlaneseq
  %v3219 = vshrl.u32 %v3218, 7
  %v3220 = vsub.s32 %v3217, %v3219
  %v3221 = vrot.slane %v3214, %v3220
  %3223 = vst [vmem:[%s18] sm:$0xf] %v3221
  // Predicated region
  $region74: #{vae_forward.3} parent=0 // pred_check
    _
  $region75: #{vae_forward.3} parent=0 // pred_check_branch
    %3225 = sbr.rel (0) target = $region77
  $region76: #{vae_forward.3} parent=0 // pred_region
    _
  $region77: #{vae_forward.3} parent=0 // pred_fallthru
    _
  // Predicated region
  $region78: #{vae_forward.3} parent=0 // pred_check
    _
  $region79: #{vae_forward.3} parent=0 // pred_check_branch
    %3227 = sbr.rel (0) target = $region81
  $region80: #{vae_forward.3} parent=0 // pred_region
    _
  $region81: #{vae_forward.3} parent=0 // pred_fallthru
    _

</llo_original>
